<compile_context>
chip_gen: v5e
topology: v5e:2x2
jax: 0.10.0
libtpu: 0.0.40
codegen_flags: <defaults>
</compile_context>

<pallas_src>
import jax
import jax.numpy as jnp
import numpy as np
from jax.experimental import pallas as pl
from jax.experimental.pallas import tpu as pltpu


def _sigmoid(v):
    # exp -> EUP, approx reciprocal -> EUP; keeps the divide off the VALU.
    return pl.reciprocal(1.0 + jnp.exp(-v), approx=True)


def _silu(v):
    return v * _sigmoid(v)


def _make_kernel(total_l):
    inv_l = 1.0 / float(total_l)

    def kernel(x_ref, w1_ref, b1_ref, w2_ref, b2_ref, out_ref, sum_acc, max_acc):
        step = pl.program_id(0)

        @pl.when(step == 0)
        def _init():
            sum_acc[...] = jnp.zeros(sum_acc.shape, jnp.float32)
            max_acc[...] = jnp.full(max_acc.shape, -jnp.inf, jnp.float32)

        xb = x_ref[...]                                        # (B, tL, C) f32
        sum_acc[...] = sum_acc[...] + jnp.sum(xb, axis=1)      # running avg-pool
        max_acc[...] = jnp.maximum(max_acc[...], jnp.max(xb, axis=1))  # running max-pool

        @pl.when(step == pl.num_programs(0) - 1)
        def _finalize():
            w1 = w1_ref[...]      # (C, H)
            b1 = b1_ref[...]      # (1, H)
            w2 = w2_ref[...]      # (H, C)
            b2 = b2_ref[...]      # (1, C)

            def fc(v):            # shared MLP: Linear -> SiLU -> Linear
                h = jnp.dot(v, w1, preferred_element_type=jnp.float32) + b1
                h = _silu(h)
                return jnp.dot(h, w2, preferred_element_type=jnp.float32) + b2

            avg = sum_acc[...] * inv_l
            out_ref[...] = _sigmoid(fc(avg) + fc(max_acc[...])).astype(out_ref.dtype)

    return kernel


def _pick_tile_l(length, max_tile):
    """Largest tile <= max_tile that divides L and is a multiple of 8 (or = L)."""
    t = min(length, max_tile)
    while t > 1:
        if length % t == 0 and (t % 8 == 0 or t == length):
            return t
        t -= 1
    return length


def channel_attention_forward(x_ncl, params, *, max_tile_l=512):
    """x_ncl: (B, C, L) float32 (PyTorch layout). Returns the (B, C, 1) gate."""
    b, c, length = x_ncl.shape
    hidden = params["w1"].shape[0]

    # Channel-last so C is on the lane axis; L is tiled across the grid.
    x_blc = jnp.transpose(x_ncl, (0, 2, 1)).astype(jnp.float32)   # (B, L, C)
    tile_l = _pick_tile_l(length, max_tile_l)
    grid = (length // tile_l,)

    w1 = jnp.transpose(params["w1"]).astype(jnp.float32)          # (C, H)
    b1 = params["b1"].reshape(1, hidden).astype(jnp.float32)      # (1, H)
    w2 = jnp.transpose(params["w2"]).astype(jnp.float32)          # (H, C)
    b2 = params["b2"].reshape(1, c).astype(jnp.float32)           # (1, C)

    gate = pl.pallas_call(
        _make_kernel(length),
        out_shape=jax.ShapeDtypeStruct((b, c), jnp.float32),
        grid_spec=pltpu.PrefetchScalarGridSpec(
            num_scalar_prefetch=0,
            grid=grid,
            in_specs=[
                pl.BlockSpec((b, tile_l, c), lambda i: (0, i, 0)),   # x tiles over L
                pl.BlockSpec((c, hidden), lambda i: (0, 0)),         # fc weights stay resident
                pl.BlockSpec((1, hidden), lambda i: (0, 0)),
                pl.BlockSpec((hidden, c), lambda i: (0, 0)),
                pl.BlockSpec((1, c), lambda i: (0, 0)),
            ],
            out_specs=pl.BlockSpec((b, c), lambda i: (0, 0)),
            scratch_shapes=[
                pltpu.VMEM((b, c), jnp.float32),   # running sum (avg pool)
                pltpu.VMEM((b, c), jnp.float32),   # running max (max pool)
            ],
        ),
        compiler_params=pltpu.CompilerParams(
            dimension_semantics=("arbitrary",),
        ),
    )(x_blc, w1, b1, w2, b2)

    return gate[:, :, None]   # (B, C, 1)


def _ref_forward(x_ncl, params):
    """Pure-JAX reference mirroring the PyTorch forward."""
    avg = jnp.mean(x_ncl, axis=2)    # (B, C)
    mx = jnp.max(x_ncl, axis=2)      # (B, C)

    def fc(v):
        h = v @ params["w1"].T + params["b1"]
        h = h * jax.nn.sigmoid(h)
        return h @ params["w2"].T + params["b2"]

    return jax.nn.sigmoid(fc(avg) + fc(mx))[:, :, None]


if __name__ == "__main__":
    # ChannelAttention(in_planes=128, ratio=16) on a (4, 128, 1024) input.
    B, C, L, RATIO = 4, 128, 1024, 16
    H = C // RATIO

    key = jax.random.PRNGKey(0)
    kx, k1, k2, k3, k4 = jax.random.split(key, 5)

    def linear_w(kk, out_f, in_f):
        bound = 1.0 / np.sqrt(in_f)
        return jax.random.uniform(kk, (out_f, in_f), jnp.float32, -bound, bound)

    def linear_b(kk, out_f, in_f):
        bound = 1.0 / np.sqrt(in_f)
        return jax.random.uniform(kk, (out_f,), jnp.float32, -bound, bound)

    params = {
        "w1": linear_w(k1, H, C), "b1": linear_b(k2, H, C),   # Linear(C -> C//ratio)
        "w2": linear_w(k3, C, H), "b2": linear_b(k4, C, H),   # Linear(C//ratio -> C)
    }
    x = jax.random.normal(kx, (B, C, L), jnp.float32)          # PyTorch NCL input

    fwd = jax.jit(channel_attention_forward)
    out = jax.block_until_ready(fwd(x, params))
    ref = _ref_forward(x, params)

    assert out.shape == (B, C, 1)
    np.testing.assert_allclose(np.asarray(out), np.asarray(ref), atol=5e-3, rtol=5e-3)
    print("KERNEL_OK")
</pallas_src>

<mosaic_0001>
module attributes {stable_mosaic.version = 11 : i64} {
  func.func @kernel(%arg0: i32, %arg1: memref<4x512x128xf32, #tpu.memory_space<vmem>>, %arg2: memref<128x8xf32, #tpu.memory_space<vmem>>, %arg3: memref<1x8xf32, #tpu.memory_space<vmem>>, %arg4: memref<8x128xf32, #tpu.memory_space<vmem>>, %arg5: memref<1x128xf32, #tpu.memory_space<vmem>>, %arg6: memref<4x128xf32, #tpu.memory_space<vmem>>, %arg7: memref<4x128xf32, #tpu.memory_space<vmem>>, %arg8: memref<4x128xf32, #tpu.memory_space<vmem>>) attributes {dimension_semantics = [#tpu.dimension_semantics<arbitrary>], iteration_bounds = array<i64: 2>, scalar_prefetch = 0 : i64, scratch_operands = 2 : i64, tpu.core_type = #tpu.core_type<tc>, window_params = [{transform_indices = @transform_0, window_bounds = array<i64: 4, 512, 128>}, {pipeline_mode = #tpu.pipeline_mode<synchronous>, transform_indices = @transform_1, window_bounds = array<i64: 128, 8>}, {pipeline_mode = #tpu.pipeline_mode<synchronous>, transform_indices = @transform_2, window_bounds = array<i64: 1, 8>}, {pipeline_mode = #tpu.pipeline_mode<synchronous>, transform_indices = @transform_3, window_bounds = array<i64: 8, 128>}, {pipeline_mode = #tpu.pipeline_mode<synchronous>, transform_indices = @transform_4, window_bounds = array<i64: 1, 128>}, {pipeline_mode = #tpu.pipeline_mode<synchronous>, transform_indices = @transform_5, window_bounds = array<i64: 4, 128>}]} {
    %c0_i32 = arith.constant 0 : i32
    %0 = arith.cmpi eq, %arg0, %c0_i32 : i32
    %1 = arith.extui %0 : i1 to i32
    %c0_i32_0 = arith.constant 0 : i32
    %2 = arith.cmpi ne, %1, %c0_i32_0 : i32
    scf.if %2 {
      %cst_13 = arith.constant 0.000000e+00 : f32
      %15 = vector.broadcast %cst_13 : f32 to vector<4x128xf32>
      %c0_14 = arith.constant 0 : index
      %c0_15 = arith.constant 0 : index
      %16 = vector.load %arg7[%c0_14, %c0_15] : memref<4x128xf32, #tpu.memory_space<vmem>>, vector<4x128xf32>
      tpu.vector_store %arg7[%c0_14, %c0_15], %15 {strides = array<i32>} : memref<4x128xf32, #tpu.memory_space<vmem>>, vector<4x128xf32>,
      %cst_16 = arith.constant 0xFF800000 : f32
      %17 = vector.broadcast %cst_16 : f32 to vector<4x128xf32>
      %c0_17 = arith.constant 0 : index
      %c0_18 = arith.constant 0 : index
      %18 = vector.load %arg8[%c0_17, %c0_18] : memref<4x128xf32, #tpu.memory_space<vmem>>, vector<4x128xf32>
      tpu.vector_store %arg8[%c0_17, %c0_18], %17 {strides = array<i32>} : memref<4x128xf32, #tpu.memory_space<vmem>>, vector<4x128xf32>,
    } else {
    }
    %c0 = arith.constant 0 : index
    %c0_1 = arith.constant 0 : index
    %c0_2 = arith.constant 0 : index
    %3 = vector.load %arg1[%c0, %c0_1, %c0_2] : memref<4x512x128xf32, #tpu.memory_space<vmem>>, vector<4x512x128xf32>
    %c0_3 = arith.constant 0 : index
    %c0_4 = arith.constant 0 : index
    %4 = vector.load %arg7[%c0_3, %c0_4] : memref<4x128xf32, #tpu.memory_space<vmem>>, vector<4x128xf32>
    %cst = arith.constant dense<0.000000e+00> : vector<4x128xf32>
    %5 = vector.multi_reduction <add>, %3, %cst [1] : vector<4x512x128xf32> to vector<4x128xf32>
    %6 = arith.addf %4, %5 : vector<4x128xf32>
    %c0_5 = arith.constant 0 : index
    %c0_6 = arith.constant 0 : index
    %7 = vector.load %arg7[%c0_5, %c0_6] : memref<4x128xf32, #tpu.memory_space<vmem>>, vector<4x128xf32>
    tpu.vector_store %arg7[%c0_5, %c0_6], %6 {strides = array<i32>} : memref<4x128xf32, #tpu.memory_space<vmem>>, vector<4x128xf32>,
    %c0_7 = arith.constant 0 : index
    %c0_8 = arith.constant 0 : index
    %8 = vector.load %arg8[%c0_7, %c0_8] : memref<4x128xf32, #tpu.memory_space<vmem>>, vector<4x128xf32>
    %cst_9 = arith.constant dense<0xFF800000> : vector<4x128xf32>
    %9 = vector.multi_reduction <maximumf>, %3, %cst_9 [1] : vector<4x512x128xf32> to vector<4x128xf32>
    %10 = arith.maximumf %8, %9 : vector<4x128xf32>
    %c0_10 = arith.constant 0 : index
    %c0_11 = arith.constant 0 : index
    %11 = vector.load %arg8[%c0_10, %c0_11] : memref<4x128xf32, #tpu.memory_space<vmem>>, vector<4x128xf32>
    tpu.vector_store %arg8[%c0_10, %c0_11], %10 {strides = array<i32>} : memref<4x128xf32, #tpu.memory_space<vmem>>, vector<4x128xf32>,
    %c1_i32 = arith.constant 1 : i32
    %12 = arith.cmpi eq, %arg0, %c1_i32 : i32
    %13 = arith.extui %12 : i1 to i32
    %c0_i32_12 = arith.constant 0 : i32
    %14 = arith.cmpi ne, %13, %c0_i32_12 : i32
    scf.if %14 {
      %c0_13 = arith.constant 0 : index
      %c0_14 = arith.constant 0 : index
      %15 = vector.load %arg2[%c0_13, %c0_14] : memref<128x8xf32, #tpu.memory_space<vmem>>, vector<128x8xf32>
      %c0_15 = arith.constant 0 : index
      %c0_16 = arith.constant 0 : index
      %16 = vector.load %arg3[%c0_15, %c0_16] : memref<1x8xf32, #tpu.memory_space<vmem>>, vector<1x8xf32>
      %c0_17 = arith.constant 0 : index
      %c0_18 = arith.constant 0 : index
      %17 = vector.load %arg4[%c0_17, %c0_18] : memref<8x128xf32, #tpu.memory_space<vmem>>, vector<8x128xf32>
      %c0_19 = arith.constant 0 : index
      %c0_20 = arith.constant 0 : index
      %18 = vector.load %arg5[%c0_19, %c0_20] : memref<1x128xf32, #tpu.memory_space<vmem>>, vector<1x128xf32>
      %c0_21 = arith.constant 0 : index
      %c0_22 = arith.constant 0 : index
      %19 = vector.load %arg7[%c0_21, %c0_22] : memref<4x128xf32, #tpu.memory_space<vmem>>, vector<4x128xf32>
      %cst_23 = arith.constant 9.765625E-4 : f32
      %20 = vector.broadcast %cst_23 : f32 to vector<4x128xf32>
      %21 = arith.mulf %19, %20 : vector<4x128xf32>
      %cst_24 = arith.constant dense<0.000000e+00> : vector<4x8xf32>
      %22 = tpu.matmul %21, %15, %cst_24 {dimension_numbers = #tpu.dot_dimension_numbers<[1], [0], [0], [1], [0, 0, 1, 1], [], []>} : vector<4x128xf32>, vector<128x8xf32>, vector<4x8xf32> -> vector<4x8xf32>
      %23 = vector.broadcast %16 : vector<1x8xf32> to vector<4x8xf32>
      %24 = arith.addf %22, %23 : vector<4x8xf32>
      %cst_25 = arith.constant 0.000000e+00 : f32
      %25 = vector.broadcast %cst_25 : f32 to vector<4x8xf32>
      %26 = arith.subf %25, %24 : vector<4x8xf32>
      %27 = math.exp %26 : vector<4x8xf32>
      %cst_26 = arith.constant 1.000000e+00 : f32
      %28 = vector.broadcast %cst_26 : f32 to vector<4x8xf32>
      %29 = arith.addf %28, %27 : vector<4x8xf32>
      %30 = tpu.reciprocal %29 {approx = true} : vector<4x8xf32> -> vector<4x8xf32>
      %31 = arith.mulf %24, %30 : vector<4x8xf32>
      %cst_27 = arith.constant dense<0.000000e+00> : vector<4x128xf32>
      %32 = tpu.matmul %31, %17, %cst_27 {dimension_numbers = #tpu.dot_dimension_numbers<[1], [0], [0], [1], [0, 0, 1, 1], [], []>} : vector<4x8xf32>, vector<8x128xf32>, vector<4x128xf32> -> vector<4x128xf32>
      %33 = vector.broadcast %18 : vector<1x128xf32> to vector<4x128xf32>
      %34 = arith.addf %32, %33 : vector<4x128xf32>
      %c0_28 = arith.constant 0 : index
      %c0_29 = arith.constant 0 : index
      %35 = vector.load %arg8[%c0_28, %c0_29] : memref<4x128xf32, #tpu.memory_space<vmem>>, vector<4x128xf32>
      %cst_30 = arith.constant dense<0.000000e+00> : vector<4x8xf32>
      %36 = tpu.matmul %35, %15, %cst_30 {dimension_numbers = #tpu.dot_dimension_numbers<[1], [0], [0], [1], [0, 0, 1, 1], [], []>} : vector<4x128xf32>, vector<128x8xf32>, vector<4x8xf32> -> vector<4x8xf32>
      %37 = vector.broadcast %16 : vector<1x8xf32> to vector<4x8xf32>
      %38 = arith.addf %36, %37 : vector<4x8xf32>
      %cst_31 = arith.constant 0.000000e+00 : f32
      %39 = vector.broadcast %cst_31 : f32 to vector<4x8xf32>
      %40 = arith.subf %39, %38 : vector<4x8xf32>
      %41 = math.exp %40 : vector<4x8xf32>
      %cst_32 = arith.constant 1.000000e+00 : f32
      %42 = vector.broadcast %cst_32 : f32 to vector<4x8xf32>
      %43 = arith.addf %42, %41 : vector<4x8xf32>
      %44 = tpu.reciprocal %43 {approx = true} : vector<4x8xf32> -> vector<4x8xf32>
      %45 = arith.mulf %38, %44 : vector<4x8xf32>
      %cst_33 = arith.constant dense<0.000000e+00> : vector<4x128xf32>
      %46 = tpu.matmul %45, %17, %cst_33 {dimension_numbers = #tpu.dot_dimension_numbers<[1], [0], [0], [1], [0, 0, 1, 1], [], []>} : vector<4x8xf32>, vector<8x128xf32>, vector<4x128xf32> -> vector<4x128xf32>
      %47 = vector.broadcast %18 : vector<1x128xf32> to vector<4x128xf32>
      %48 = arith.addf %46, %47 : vector<4x128xf32>
      %49 = arith.addf %34, %48 : vector<4x128xf32>
      %cst_34 = arith.constant 0.000000e+00 : f32
      %50 = vector.broadcast %cst_34 : f32 to vector<4x128xf32>
      %51 = arith.subf %50, %49 : vector<4x128xf32>
      %52 = math.exp %51 : vector<4x128xf32>
      %cst_35 = arith.constant 1.000000e+00 : f32
      %53 = vector.broadcast %cst_35 : f32 to vector<4x128xf32>
      %54 = arith.addf %53, %52 : vector<4x128xf32>
      %55 = tpu.reciprocal %54 {approx = true} : vector<4x128xf32> -> vector<4x128xf32>
      %c0_36 = arith.constant 0 : index
      %c0_37 = arith.constant 0 : index
      %56 = vector.load %arg6[%c0_36, %c0_37] : memref<4x128xf32, #tpu.memory_space<vmem>>, vector<4x128xf32>
      tpu.vector_store %arg6[%c0_36, %c0_37], %55 {strides = array<i32>} : memref<4x128xf32, #tpu.memory_space<vmem>>, vector<4x128xf32>,
    } else {
    }
    return
  }
  func.func @transform_0(%arg0: i32) -> (i32, i32, i32) {
    %c0_i32 = arith.constant 0 : i32
    %c0_i32_0 = arith.constant 0 : i32
    %c0_i32_1 = arith.constant 0 : i32
    return %c0_i32, %arg0, %c0_i32_0 : i32, i32, i32
  }
  func.func @transform_1(%arg0: i32) -> (i32, i32) {
    %c0_i32 = arith.constant 0 : i32
    %c0_i32_0 = arith.constant 0 : i32
    %c0_i32_1 = arith.constant 0 : i32
    return %c0_i32, %c0_i32_0 : i32, i32
  }
  func.func @transform_2(%arg0: i32) -> (i32, i32) {
    %c0_i32 = arith.constant 0 : i32
    %c0_i32_0 = arith.constant 0 : i32
    %c0_i32_1 = arith.constant 0 : i32
    return %c0_i32, %c0_i32_0 : i32, i32
  }
  func.func @transform_3(%arg0: i32) -> (i32, i32) {
    %c0_i32 = arith.constant 0 : i32
    %c0_i32_0 = arith.constant 0 : i32
    %c0_i32_1 = arith.constant 0 : i32
    return %c0_i32, %c0_i32_0 : i32, i32
  }
  func.func @transform_4(%arg0: i32) -> (i32, i32) {
    %c0_i32 = arith.constant 0 : i32
    %c0_i32_0 = arith.constant 0 : i32
    %c0_i32_1 = arith.constant 0 : i32
    return %c0_i32, %c0_i32_0 : i32, i32
  }
  func.func @transform_5(%arg0: i32) -> (i32, i32) {
    %c0_i32 = arith.constant 0 : i32
    %c0_i32_0 = arith.constant 0 : i32
    %c0_i32_1 = arith.constant 0 : i32
    return %c0_i32, %c0_i32_0 : i32, i32
  }
}

</mosaic_0001>

<llo_original>
// kernel: channel_attention_forward.1
$region0: #{channel_attention_forward.1}
  #allocation0 [shape = 'u32[]', space=smem, size = 0x4, offset = 0x4, fixed_abs, tag = 'smem constant byte address 0x4 - core index']
  #allocation1 [shape = 'u32[72,128]{1,0:T(1,128)}', space=vmem, size = 0x9000, scoped, tag = 'internal scratch']
  #allocation2 [shape = 'f32[4,128]{1,0:T(4,128)}', space=vmem, size = 0x800, scoped, tag = 'scratch operand']
  #allocation3 [shape = 'f32[4,128]{1,0:T(4,128)}', space=vmem, size = 0x800, scoped, tag = 'scratch operand']
  %s0 = inlined_call_operand.vmem [shape: f32[4,1024,128], index: 0, kind: input, shape index: {}]
  %s1 = inlined_call_operand.vmem [shape: f32[128,8], index: 1, kind: input, shape index: {}]
  %s2 = inlined_call_operand.vmem [shape: f32[1,8], index: 2, kind: input, shape index: {}]
  %s3 = inlined_call_operand.vmem [shape: f32[8,128], index: 3, kind: input, shape index: {}]
  %s4 = inlined_call_operand.vmem [shape: f32[1,128], index: 4, kind: input, shape index: {}]
  %s5 = inlined_call_operand.hbm [shape: f32[4,128], index: 5, kind: output, shape index: {}]
  %s6 = sld [smem:[#allocation0]]
  $region113: #{channel_attention_forward.1} parent=0
    _
  %s8 = ssub.s32 1, %s6
  %s9 = scalar_select 0, %s8, %s6
  $region1: #{channel_attention_forward.1} parent=0
    #allocation4 [shape = 'u8[2097152]{0}', space=vmem, size = 0x200000, scoped, tag = 'input window, operand 0']
    #allocation5 [shape = 'u8[2048]{0}', space=vmem, size = 0x800, scoped, tag = 'output window, operand 0, single buffered']
    #allocation6 [shape = 's32[2]{0}', space=sflag, size = 0x8, scoped, tag = 'scoped memory for channel_attention_forward.1']
    %10 = vsyncpa [#allocation6], 0
    loop: start=0, step=1, limit=4
    $region2: #{channel_attention_forward.1} parent=1 // loop_pre_header
      _
    $region3: #{channel_attention_forward.1} parent=1 // loop_header
      %s12 = sphi 0, %s16
      %p13 = scmp.ge.s32.totalorder %s12, 4
      %s22 = sphi 0, %s24
      %s25 = sphi 0, %s22
      %s26 = sphi 0, %s25
      %s42 = sphi 0, %s26
      %s46 = sphi 0, %s46
      %s48 = sphi 0, %s46
      %s49 = sphi 0, %s48
      %s63 = sphi 0, %s49
      %s67 = sphi 0, %s67
      %s69 = sphi 0, %s67
      %s70 = sphi 0, %s69
      %s84 = sphi 0, %s70
      %s88 = sphi 0, %s88
      %s90 = sphi 0, %s88
      %s91 = sphi 0, %s90
      %s105 = sphi 0, %s91
      %s109 = sphi 0, %s109
      %s111 = sphi 0, %s109
      %s112 = sphi 0, %s111
      %s126 = sphi 0, %s112
      %s130 = sphi 0, %s130
      %s132 = sphi 0, %s130
      %s133 = sphi 0, %s132
      %s147 = sphi 0, %s133
    $region4: #{channel_attention_forward.1} parent=1 // loop_header_branch
      %15 = sbr.rel (%p13) target = $region8
    $region5: #{channel_attention_forward.1} parent=1 // loop_body
      %s17 = ssub.s32 %s12, 1
      %s18 = ssub.s32 %s12, 2
      %s19 = sadd.s32 %s12, 1
      %s20 = ssub.s32 %s12, %s19
      %p21 = scmp.eq.s32.totalorder %s20, 0
      %s23 = sadd.s32 %s22, 1
      %s24 = scalar_select %p21, %s22, %s23
      %p27 = pneg %p21
      %p28 = scmp.eq.s32.totalorder %s12, 1
      %p29 = por %p27, %p28
      %p30 = scmp.ne.s32.totalorder %s22, %s25
      %p31 = scmp.eq.s32.totalorder %s12, 0
      %p32 = por %p30, %p31
      %p33 = scmp.ne.s32.totalorder %s22, %s25
      %p34 = scmp.eq.s32.totalorder %s17, 1
      %p35 = por %p33, %p34
      %p36 = scmp.ne.s32.totalorder %s25, %s26
      %p37 = scmp.eq.s32.totalorder %s17, 0
      %p38 = por %p36, %p37
      %p39 = scmp.ne.s32.totalorder %s25, %s26
      %p40 = scmp.eq.s32.totalorder %s18, 1
      %p41 = por %p39, %p40
      %p43 = scmp.ne.s32.totalorder %s26, %s42
      %p44 = scmp.eq.s32.totalorder %s18, 0
      %p45 = por %p43, %p44
      %s47 = sadd.s32 %s46, 1
      %p50 = scmp.eq.s32.totalorder %s12, 1
      %p51 = scmp.ne.s32.totalorder %s46, %s48
      %p52 = scmp.eq.s32.totalorder %s12, 0
      %p53 = por %p51, %p52
      %p54 = scmp.ne.s32.totalorder %s46, %s48
      %p55 = scmp.eq.s32.totalorder %s17, 1
      %p56 = por %p54, %p55
      %p57 = scmp.ne.s32.totalorder %s48, %s49
      %p58 = scmp.eq.s32.totalorder %s17, 0
      %p59 = por %p57, %p58
      %p60 = scmp.ne.s32.totalorder %s48, %s49
      %p61 = scmp.eq.s32.totalorder %s18, 1
      %p62 = por %p60, %p61
      %p64 = scmp.ne.s32.totalorder %s49, %s63
      %p65 = scmp.eq.s32.totalorder %s18, 0
      %p66 = por %p64, %p65
      %s68 = sadd.s32 %s67, 1
      %p71 = scmp.eq.s32.totalorder %s12, 1
      %p72 = scmp.ne.s32.totalorder %s67, %s69
      %p73 = scmp.eq.s32.totalorder %s12, 0
      %p74 = por %p72, %p73
      %p75 = scmp.ne.s32.totalorder %s67, %s69
      %p76 = scmp.eq.s32.totalorder %s17, 1
      %p77 = por %p75, %p76
      %p78 = scmp.ne.s32.totalorder %s69, %s70
      %p79 = scmp.eq.s32.totalorder %s17, 0
      %p80 = por %p78, %p79
      %p81 = scmp.ne.s32.totalorder %s69, %s70
      %p82 = scmp.eq.s32.totalorder %s18, 1
      %p83 = por %p81, %p82
      %p85 = scmp.ne.s32.totalorder %s70, %s84
      %p86 = scmp.eq.s32.totalorder %s18, 0
      %p87 = por %p85, %p86
      %s89 = sadd.s32 %s88, 1
      %p92 = scmp.eq.s32.totalorder %s12, 1
      %p93 = scmp.ne.s32.totalorder %s88, %s90
      %p94 = scmp.eq.s32.totalorder %s12, 0
      %p95 = por %p93, %p94
      %p96 = scmp.ne.s32.totalorder %s88, %s90
      %p97 = scmp.eq.s32.totalorder %s17, 1
      %p98 = por %p96, %p97
      %p99 = scmp.ne.s32.totalorder %s90, %s91
      %p100 = scmp.eq.s32.totalorder %s17, 0
      %p101 = por %p99, %p100
      %p102 = scmp.ne.s32.totalorder %s90, %s91
      %p103 = scmp.eq.s32.totalorder %s18, 1
      %p104 = por %p102, %p103
      %p106 = scmp.ne.s32.totalorder %s91, %s105
      %p107 = scmp.eq.s32.totalorder %s18, 0
      %p108 = por %p106, %p107
      %s110 = sadd.s32 %s109, 1
      %p113 = scmp.eq.s32.totalorder %s12, 1
      %p114 = scmp.ne.s32.totalorder %s109, %s111
      %p115 = scmp.eq.s32.totalorder %s12, 0
      %p116 = por %p114, %p115
      %p117 = scmp.ne.s32.totalorder %s109, %s111
      %p118 = scmp.eq.s32.totalorder %s17, 1
      %p119 = por %p117, %p118
      %p120 = scmp.ne.s32.totalorder %s111, %s112
      %p121 = scmp.eq.s32.totalorder %s17, 0
      %p122 = por %p120, %p121
      %p123 = scmp.ne.s32.totalorder %s111, %s112
      %p124 = scmp.eq.s32.totalorder %s18, 1
      %p125 = por %p123, %p124
      %p127 = scmp.ne.s32.totalorder %s112, %s126
      %p128 = scmp.eq.s32.totalorder %s18, 0
      %p129 = por %p127, %p128
      %s131 = sadd.s32 %s130, 1
      %p134 = scmp.eq.s32.totalorder %s12, 1
      %p135 = scmp.ne.s32.totalorder %s130, %s132
      %p136 = scmp.eq.s32.totalorder %s12, 0
      %p137 = por %p135, %p136
      %p138 = scmp.ne.s32.totalorder %s130, %s132
      %p139 = scmp.eq.s32.totalorder %s17, 1
      %p140 = por %p138, %p139
      %p141 = scmp.ne.s32.totalorder %s132, %s133
      %p142 = scmp.eq.s32.totalorder %s17, 0
      %p143 = por %p141, %p142
      %p144 = scmp.ne.s32.totalorder %s132, %s133
      %p145 = scmp.eq.s32.totalorder %s18, 1
      %p146 = por %p144, %p145
      %p148 = scmp.ne.s32.totalorder %s133, %s147
      %p149 = scmp.eq.s32.totalorder %s18, 0
      %p150 = por %p148, %p149
      %p151 = scmp.le.s32.totalorder 1, %s12
      %p152 = scmp.lt.s32.totalorder %s12, 3
      %p153 = pnand %p151, %p152
      %p154 = pneg %p153
      // Predicated region
      $region9: #{channel_attention_forward.1} parent=5 // pred_check
        _
      $region10: #{channel_attention_forward.1} parent=5 // pred_check_branch
        %156 = sbr.rel (%p153) target = $region12
      $region11: #{channel_attention_forward.1} parent=5 // pred_region
        %s157 = ssub.s32 %s12, 1
        // Predicated region
        $region13: #{channel_attention_forward.1} parent=11 // pred_check
          %p158 = pneg %p59
        $region14: #{channel_attention_forward.1} parent=11 // pred_check_branch
          %160 = sbr.rel (%p158) target = $region16
        $region15: #{channel_attention_forward.1} parent=11 // pred_region
          _
        $region16: #{channel_attention_forward.1} parent=11 // pred_fallthru
          _
        // Predicated region
        $region17: #{channel_attention_forward.1} parent=11 // pred_check
          %p161 = pneg %p80
        $region18: #{channel_attention_forward.1} parent=11 // pred_check_branch
          %163 = sbr.rel (%p161) target = $region20
        $region19: #{channel_attention_forward.1} parent=11 // pred_region
          _
        $region20: #{channel_attention_forward.1} parent=11 // pred_fallthru
          _
        // Predicated region
        $region21: #{channel_attention_forward.1} parent=11 // pred_check
          %p164 = pneg %p101
        $region22: #{channel_attention_forward.1} parent=11 // pred_check_branch
          %166 = sbr.rel (%p164) target = $region24
        $region23: #{channel_attention_forward.1} parent=11 // pred_region
          _
        $region24: #{channel_attention_forward.1} parent=11 // pred_fallthru
          _
        // Predicated region
        $region25: #{channel_attention_forward.1} parent=11 // pred_check
          %p167 = pneg %p122
        $region26: #{channel_attention_forward.1} parent=11 // pred_check_branch
          %169 = sbr.rel (%p167) target = $region28
        $region27: #{channel_attention_forward.1} parent=11 // pred_region
          _
        $region28: #{channel_attention_forward.1} parent=11 // pred_fallthru
          _
      $region12: #{channel_attention_forward.1} parent=5 // pred_fallthru
        _
      %p170 = scmp.lt.s32.totalorder %s12, 2
      // Predicated region
      $region29: #{channel_attention_forward.1} parent=5 // pred_check
        %p171 = pneg %p170
      $region30: #{channel_attention_forward.1} parent=5 // pred_check_branch
        %173 = sbr.rel (%p171) target = $region32
      $region31: #{channel_attention_forward.1} parent=5 // pred_region
        // Predicated region
        $region33: #{channel_attention_forward.1} parent=31 // pred_check
          %p174 = pneg %p32
        $region34: #{channel_attention_forward.1} parent=31 // pred_check_branch
          %176 = sbr.rel (%p174) target = $region36
        $region35: #{channel_attention_forward.1} parent=31 // pred_region
          %s177 = sand.u32 %s22, 1
          %s178 = sand.u32 %s22, 1
          %s179 = smul.addr %s178, 2048
          %s180 = scalar_lea.vmem [#allocation4], %s179
          %s181 = smul.u32 64, %s12
          %s182 = smul.addr %s181, 8
          %s183 = scalar_lea.vmem %s0, %s182
          // Predicated region
          $region37: #{channel_attention_forward.1} parent=35 // pred_check
            _
          $region38: #{channel_attention_forward.1} parent=35 // pred_check_branch
            %185 = sbr.rel (0) target = $region40
          $region39: #{channel_attention_forward.1} parent=35 // pred_region
            // Predicated region
            $region41: #{channel_attention_forward.1} parent=39 // pred_check
              _
            $region42: #{channel_attention_forward.1} parent=39 // pred_check_branch
              %187 = sbr.rel (0) target = $region44
            $region43: #{channel_attention_forward.1} parent=39 // pred_region
              // Predicated region
              $region56: #{channel_attention_forward.1} parent=43 // pred_check
                _
              $region57: #{channel_attention_forward.1} parent=43 // pred_check_branch
                %713 = sbr.rel (0) target = $region59
              $region58: #{channel_attention_forward.1} parent=43 // pred_region
                loop: start=0, step=1, limit=1
                $region60: #{channel_attention_forward.1} parent=58 // loop_pre_header
                  _
                $region61: #{channel_attention_forward.1} parent=58 // loop_header
                  %s715 = sphi 0, %s719
                  %p716 = scmp.ge.s32.totalorder %s715, 1
                  %s720 = sphi 0, %s1237
                  %s721 = sphi %s183, %s1240
                  %s722 = sphi %s180, %s1241
                $region62: #{channel_attention_forward.1} parent=58 // loop_header_branch
                  %718 = sbr.rel (%p716) target = $region66
                $region63: #{channel_attention_forward.1} parent=58 // loop_body
                  %v723 = vld [vmem:[%s721] sm:$0xff]
                  %724 = vst [vmem:[%s722] sm:$0xff] %v723
                  %v725 = vld [vmem:[%s721 + $0x8] sm:$0xff]
                  %726 = vst [vmem:[%s722 + $0x8] sm:$0xff] %v725
                  %v727 = vld [vmem:[%s721 + $0x10] sm:$0xff]
                  %728 = vst [vmem:[%s722 + $0x10] sm:$0xff] %v727
                  %v729 = vld [vmem:[%s721 + $0x18] sm:$0xff]
                  %730 = vst [vmem:[%s722 + $0x18] sm:$0xff] %v729
                  %v731 = vld [vmem:[%s721 + $0x20] sm:$0xff]
                  %732 = vst [vmem:[%s722 + $0x20] sm:$0xff] %v731
                  %v733 = vld [vmem:[%s721 + $0x28] sm:$0xff]
                  %734 = vst [vmem:[%s722 + $0x28] sm:$0xff] %v733
                  %v735 = vld [vmem:[%s721 + $0x30] sm:$0xff]
                  %736 = vst [vmem:[%s722 + $0x30] sm:$0xff] %v735
                  %v737 = vld [vmem:[%s721 + $0x38] sm:$0xff]
                  %738 = vst [vmem:[%s722 + $0x38] sm:$0xff] %v737
                  %v739 = vld [vmem:[%s721 + $0x40] sm:$0xff]
                  %740 = vst [vmem:[%s722 + $0x40] sm:$0xff] %v739
                  %v741 = vld [vmem:[%s721 + $0x48] sm:$0xff]
                  %742 = vst [vmem:[%s722 + $0x48] sm:$0xff] %v741
                  %v743 = vld [vmem:[%s721 + $0x50] sm:$0xff]
                  %744 = vst [vmem:[%s722 + $0x50] sm:$0xff] %v743
                  %v745 = vld [vmem:[%s721 + $0x58] sm:$0xff]
                  %746 = vst [vmem:[%s722 + $0x58] sm:$0xff] %v745
                  %v747 = vld [vmem:[%s721 + $0x60] sm:$0xff]
                  %748 = vst [vmem:[%s722 + $0x60] sm:$0xff] %v747
                  %v749 = vld [vmem:[%s721 + $0x68] sm:$0xff]
                  %750 = vst [vmem:[%s722 + $0x68] sm:$0xff] %v749
                  %v751 = vld [vmem:[%s721 + $0x70] sm:$0xff]
                  %752 = vst [vmem:[%s722 + $0x70] sm:$0xff] %v751
                  %v753 = vld [vmem:[%s721 + $0x78] sm:$0xff]
                  %754 = vst [vmem:[%s722 + $0x78] sm:$0xff] %v753
                  %v755 = vld [vmem:[%s721 + $0x80] sm:$0xff]
                  %756 = vst [vmem:[%s722 + $0x80] sm:$0xff] %v755
                  %v757 = vld [vmem:[%s721 + $0x88] sm:$0xff]
                  %758 = vst [vmem:[%s722 + $0x88] sm:$0xff] %v757
                  %v759 = vld [vmem:[%s721 + $0x90] sm:$0xff]
                  %760 = vst [vmem:[%s722 + $0x90] sm:$0xff] %v759
                  %v761 = vld [vmem:[%s721 + $0x98] sm:$0xff]
                  %762 = vst [vmem:[%s722 + $0x98] sm:$0xff] %v761
                  %v763 = vld [vmem:[%s721 + $0xa0] sm:$0xff]
                  %764 = vst [vmem:[%s722 + $0xa0] sm:$0xff] %v763
                  %v765 = vld [vmem:[%s721 + $0xa8] sm:$0xff]
                  %766 = vst [vmem:[%s722 + $0xa8] sm:$0xff] %v765
                  %v767 = vld [vmem:[%s721 + $0xb0] sm:$0xff]
                  %768 = vst [vmem:[%s722 + $0xb0] sm:$0xff] %v767
                  %v769 = vld [vmem:[%s721 + $0xb8] sm:$0xff]
                  %770 = vst [vmem:[%s722 + $0xb8] sm:$0xff] %v769
                  %v771 = vld [vmem:[%s721 + $0xc0] sm:$0xff]
                  %772 = vst [vmem:[%s722 + $0xc0] sm:$0xff] %v771
                  %v773 = vld [vmem:[%s721 + $0xc8] sm:$0xff]
                  %774 = vst [vmem:[%s722 + $0xc8] sm:$0xff] %v773
                  %v775 = vld [vmem:[%s721 + $0xd0] sm:$0xff]
                  %776 = vst [vmem:[%s722 + $0xd0] sm:$0xff] %v775
                  %v777 = vld [vmem:[%s721 + $0xd8] sm:$0xff]
                  %778 = vst [vmem:[%s722 + $0xd8] sm:$0xff] %v777
                  %v779 = vld [vmem:[%s721 + $0xe0] sm:$0xff]
                  %780 = vst [vmem:[%s722 + $0xe0] sm:$0xff] %v779
                  %v781 = vld [vmem:[%s721 + $0xe8] sm:$0xff]
                  %782 = vst [vmem:[%s722 + $0xe8] sm:$0xff] %v781
                  %v783 = vld [vmem:[%s721 + $0xf0] sm:$0xff]
                  %784 = vst [vmem:[%s722 + $0xf0] sm:$0xff] %v783
                  %v785 = vld [vmem:[%s721 + $0xf8] sm:$0xff]
                  %786 = vst [vmem:[%s722 + $0xf8] sm:$0xff] %v785
                  %v787 = vld [vmem:[%s721 + $0x100] sm:$0xff]
                  %788 = vst [vmem:[%s722 + $0x100] sm:$0xff] %v787
                  %v789 = vld [vmem:[%s721 + $0x108] sm:$0xff]
                  %790 = vst [vmem:[%s722 + $0x108] sm:$0xff] %v789
                  %v791 = vld [vmem:[%s721 + $0x110] sm:$0xff]
                  %792 = vst [vmem:[%s722 + $0x110] sm:$0xff] %v791
                  %v793 = vld [vmem:[%s721 + $0x118] sm:$0xff]
                  %794 = vst [vmem:[%s722 + $0x118] sm:$0xff] %v793
                  %v795 = vld [vmem:[%s721 + $0x120] sm:$0xff]
                  %796 = vst [vmem:[%s722 + $0x120] sm:$0xff] %v795
                  %v797 = vld [vmem:[%s721 + $0x128] sm:$0xff]
                  %798 = vst [vmem:[%s722 + $0x128] sm:$0xff] %v797
                  %v799 = vld [vmem:[%s721 + $0x130] sm:$0xff]
                  %800 = vst [vmem:[%s722 + $0x130] sm:$0xff] %v799
                  %v801 = vld [vmem:[%s721 + $0x138] sm:$0xff]
                  %802 = vst [vmem:[%s722 + $0x138] sm:$0xff] %v801
                  %v803 = vld [vmem:[%s721 + $0x140] sm:$0xff]
                  %804 = vst [vmem:[%s722 + $0x140] sm:$0xff] %v803
                  %v805 = vld [vmem:[%s721 + $0x148] sm:$0xff]
                  %806 = vst [vmem:[%s722 + $0x148] sm:$0xff] %v805
                  %v807 = vld [vmem:[%s721 + $0x150] sm:$0xff]
                  %808 = vst [vmem:[%s722 + $0x150] sm:$0xff] %v807
                  %v809 = vld [vmem:[%s721 + $0x158] sm:$0xff]
                  %810 = vst [vmem:[%s722 + $0x158] sm:$0xff] %v809
                  %v811 = vld [vmem:[%s721 + $0x160] sm:$0xff]
                  %812 = vst [vmem:[%s722 + $0x160] sm:$0xff] %v811
                  %v813 = vld [vmem:[%s721 + $0x168] sm:$0xff]
                  %814 = vst [vmem:[%s722 + $0x168] sm:$0xff] %v813
                  %v815 = vld [vmem:[%s721 + $0x170] sm:$0xff]
                  %816 = vst [vmem:[%s722 + $0x170] sm:$0xff] %v815
                  %v817 = vld [vmem:[%s721 + $0x178] sm:$0xff]
                  %818 = vst [vmem:[%s722 + $0x178] sm:$0xff] %v817
                  %v819 = vld [vmem:[%s721 + $0x180] sm:$0xff]
                  %820 = vst [vmem:[%s722 + $0x180] sm:$0xff] %v819
                  %v821 = vld [vmem:[%s721 + $0x188] sm:$0xff]
                  %822 = vst [vmem:[%s722 + $0x188] sm:$0xff] %v821
                  %v823 = vld [vmem:[%s721 + $0x190] sm:$0xff]
                  %824 = vst [vmem:[%s722 + $0x190] sm:$0xff] %v823
                  %v825 = vld [vmem:[%s721 + $0x198] sm:$0xff]
                  %826 = vst [vmem:[%s722 + $0x198] sm:$0xff] %v825
                  %v827 = vld [vmem:[%s721 + $0x1a0] sm:$0xff]
                  %828 = vst [vmem:[%s722 + $0x1a0] sm:$0xff] %v827
                  %v829 = vld [vmem:[%s721 + $0x1a8] sm:$0xff]
                  %830 = vst [vmem:[%s722 + $0x1a8] sm:$0xff] %v829
                  %v831 = vld [vmem:[%s721 + $0x1b0] sm:$0xff]
                  %832 = vst [vmem:[%s722 + $0x1b0] sm:$0xff] %v831
                  %v833 = vld [vmem:[%s721 + $0x1b8] sm:$0xff]
                  %834 = vst [vmem:[%s722 + $0x1b8] sm:$0xff] %v833
                  %v835 = vld [vmem:[%s721 + $0x1c0] sm:$0xff]
                  %836 = vst [vmem:[%s722 + $0x1c0] sm:$0xff] %v835
                  %v837 = vld [vmem:[%s721 + $0x1c8] sm:$0xff]
                  %838 = vst [vmem:[%s722 + $0x1c8] sm:$0xff] %v837
                  %v839 = vld [vmem:[%s721 + $0x1d0] sm:$0xff]
                  %840 = vst [vmem:[%s722 + $0x1d0] sm:$0xff] %v839
                  %v841 = vld [vmem:[%s721 + $0x1d8] sm:$0xff]
                  %842 = vst [vmem:[%s722 + $0x1d8] sm:$0xff] %v841
                  %v843 = vld [vmem:[%s721 + $0x1e0] sm:$0xff]
                  %844 = vst [vmem:[%s722 + $0x1e0] sm:$0xff] %v843
                  %v845 = vld [vmem:[%s721 + $0x1e8] sm:$0xff]
                  %846 = vst [vmem:[%s722 + $0x1e8] sm:$0xff] %v845
                  %v847 = vld [vmem:[%s721 + $0x1f0] sm:$0xff]
                  %848 = vst [vmem:[%s722 + $0x1f0] sm:$0xff] %v847
                  %v849 = vld [vmem:[%s721 + $0x1f8] sm:$0xff]
                  %850 = vst [vmem:[%s722 + $0x1f8] sm:$0xff] %v849
                  %v851 = vld [vmem:[%s721 + $0x400] sm:$0xff]
                  %852 = vst [vmem:[%s722 + $0x200] sm:$0xff] %v851
                  %v853 = vld [vmem:[%s721 + $0x408] sm:$0xff]
                  %854 = vst [vmem:[%s722 + $0x208] sm:$0xff] %v853
                  %v855 = vld [vmem:[%s721 + $0x410] sm:$0xff]
                  %856 = vst [vmem:[%s722 + $0x210] sm:$0xff] %v855
                  %v857 = vld [vmem:[%s721 + $0x418] sm:$0xff]
                  %858 = vst [vmem:[%s722 + $0x218] sm:$0xff] %v857
                  %v859 = vld [vmem:[%s721 + $0x420] sm:$0xff]
                  %860 = vst [vmem:[%s722 + $0x220] sm:$0xff] %v859
                  %v861 = vld [vmem:[%s721 + $0x428] sm:$0xff]
                  %862 = vst [vmem:[%s722 + $0x228] sm:$0xff] %v861
                  %v863 = vld [vmem:[%s721 + $0x430] sm:$0xff]
                  %864 = vst [vmem:[%s722 + $0x230] sm:$0xff] %v863
                  %v865 = vld [vmem:[%s721 + $0x438] sm:$0xff]
                  %866 = vst [vmem:[%s722 + $0x238] sm:$0xff] %v865
                  %v867 = vld [vmem:[%s721 + $0x440] sm:$0xff]
                  %868 = vst [vmem:[%s722 + $0x240] sm:$0xff] %v867
                  %v869 = vld [vmem:[%s721 + $0x448] sm:$0xff]
                  %870 = vst [vmem:[%s722 + $0x248] sm:$0xff] %v869
                  %v871 = vld [vmem:[%s721 + $0x450] sm:$0xff]
                  %872 = vst [vmem:[%s722 + $0x250] sm:$0xff] %v871
                  %v873 = vld [vmem:[%s721 + $0x458] sm:$0xff]
                  %874 = vst [vmem:[%s722 + $0x258] sm:$0xff] %v873
                  %v875 = vld [vmem:[%s721 + $0x460] sm:$0xff]
                  %876 = vst [vmem:[%s722 + $0x260] sm:$0xff] %v875
                  %v877 = vld [vmem:[%s721 + $0x468] sm:$0xff]
                  %878 = vst [vmem:[%s722 + $0x268] sm:$0xff] %v877
                  %v879 = vld [vmem:[%s721 + $0x470] sm:$0xff]
                  %880 = vst [vmem:[%s722 + $0x270] sm:$0xff] %v879
                  %v881 = vld [vmem:[%s721 + $0x478] sm:$0xff]
                  %882 = vst [vmem:[%s722 + $0x278] sm:$0xff] %v881
                  %v883 = vld [vmem:[%s721 + $0x480] sm:$0xff]
                  %884 = vst [vmem:[%s722 + $0x280] sm:$0xff] %v883
                  %v885 = vld [vmem:[%s721 + $0x488] sm:$0xff]
                  %886 = vst [vmem:[%s722 + $0x288] sm:$0xff] %v885
                  %v887 = vld [vmem:[%s721 + $0x490] sm:$0xff]
                  %888 = vst [vmem:[%s722 + $0x290] sm:$0xff] %v887
                  %v889 = vld [vmem:[%s721 + $0x498] sm:$0xff]
                  %890 = vst [vmem:[%s722 + $0x298] sm:$0xff] %v889
                  %v891 = vld [vmem:[%s721 + $0x4a0] sm:$0xff]
                  %892 = vst [vmem:[%s722 + $0x2a0] sm:$0xff] %v891
                  %v893 = vld [vmem:[%s721 + $0x4a8] sm:$0xff]
                  %894 = vst [vmem:[%s722 + $0x2a8] sm:$0xff] %v893
                  %v895 = vld [vmem:[%s721 + $0x4b0] sm:$0xff]
                  %896 = vst [vmem:[%s722 + $0x2b0] sm:$0xff] %v895
                  %v897 = vld [vmem:[%s721 + $0x4b8] sm:$0xff]
                  %898 = vst [vmem:[%s722 + $0x2b8] sm:$0xff] %v897
                  %v899 = vld [vmem:[%s721 + $0x4c0] sm:$0xff]
                  %900 = vst [vmem:[%s722 + $0x2c0] sm:$0xff] %v899
                  %v901 = vld [vmem:[%s721 + $0x4c8] sm:$0xff]
                  %902 = vst [vmem:[%s722 + $0x2c8] sm:$0xff] %v901
                  %v903 = vld [vmem:[%s721 + $0x4d0] sm:$0xff]
                  %904 = vst [vmem:[%s722 + $0x2d0] sm:$0xff] %v903
                  %v905 = vld [vmem:[%s721 + $0x4d8] sm:$0xff]
                  %906 = vst [vmem:[%s722 + $0x2d8] sm:$0xff] %v905
                  %v907 = vld [vmem:[%s721 + $0x4e0] sm:$0xff]
                  %908 = vst [vmem:[%s722 + $0x2e0] sm:$0xff] %v907
                  %v909 = vld [vmem:[%s721 + $0x4e8] sm:$0xff]
                  %910 = vst [vmem:[%s722 + $0x2e8] sm:$0xff] %v909
                  %v911 = vld [vmem:[%s721 + $0x4f0] sm:$0xff]
                  %912 = vst [vmem:[%s722 + $0x2f0] sm:$0xff] %v911
                  %v913 = vld [vmem:[%s721 + $0x4f8] sm:$0xff]
                  %914 = vst [vmem:[%s722 + $0x2f8] sm:$0xff] %v913
                  %v915 = vld [vmem:[%s721 + $0x500] sm:$0xff]
                  %916 = vst [vmem:[%s722 + $0x300] sm:$0xff] %v915
                  %v917 = vld [vmem:[%s721 + $0x508] sm:$0xff]
                  %918 = vst [vmem:[%s722 + $0x308] sm:$0xff] %v917
                  %v919 = vld [vmem:[%s721 + $0x510] sm:$0xff]
                  %920 = vst [vmem:[%s722 + $0x310] sm:$0xff] %v919
                  %v921 = vld [vmem:[%s721 + $0x518] sm:$0xff]
                  %922 = vst [vmem:[%s722 + $0x318] sm:$0xff] %v921
                  %v923 = vld [vmem:[%s721 + $0x520] sm:$0xff]
                  %924 = vst [vmem:[%s722 + $0x320] sm:$0xff] %v923
                  %v925 = vld [vmem:[%s721 + $0x528] sm:$0xff]
                  %926 = vst [vmem:[%s722 + $0x328] sm:$0xff] %v925
                  %v927 = vld [vmem:[%s721 + $0x530] sm:$0xff]
                  %928 = vst [vmem:[%s722 + $0x330] sm:$0xff] %v927
                  %v929 = vld [vmem:[%s721 + $0x538] sm:$0xff]
                  %930 = vst [vmem:[%s722 + $0x338] sm:$0xff] %v929
                  %v931 = vld [vmem:[%s721 + $0x540] sm:$0xff]
                  %932 = vst [vmem:[%s722 + $0x340] sm:$0xff] %v931
                  %v933 = vld [vmem:[%s721 + $0x548] sm:$0xff]
                  %934 = vst [vmem:[%s722 + $0x348] sm:$0xff] %v933
                  %v935 = vld [vmem:[%s721 + $0x550] sm:$0xff]
                  %936 = vst [vmem:[%s722 + $0x350] sm:$0xff] %v935
                  %v937 = vld [vmem:[%s721 + $0x558] sm:$0xff]
                  %938 = vst [vmem:[%s722 + $0x358] sm:$0xff] %v937
                  %v939 = vld [vmem:[%s721 + $0x560] sm:$0xff]
                  %940 = vst [vmem:[%s722 + $0x360] sm:$0xff] %v939
                  %v941 = vld [vmem:[%s721 + $0x568] sm:$0xff]
                  %942 = vst [vmem:[%s722 + $0x368] sm:$0xff] %v941
                  %v943 = vld [vmem:[%s721 + $0x570] sm:$0xff]
                  %944 = vst [vmem:[%s722 + $0x370] sm:$0xff] %v943
                  %v945 = vld [vmem:[%s721 + $0x578] sm:$0xff]
                  %946 = vst [vmem:[%s722 + $0x378] sm:$0xff] %v945
                  %v947 = vld [vmem:[%s721 + $0x580] sm:$0xff]
                  %948 = vst [vmem:[%s722 + $0x380] sm:$0xff] %v947
                  %v949 = vld [vmem:[%s721 + $0x588] sm:$0xff]
                  %950 = vst [vmem:[%s722 + $0x388] sm:$0xff] %v949
                  %v951 = vld [vmem:[%s721 + $0x590] sm:$0xff]
                  %952 = vst [vmem:[%s722 + $0x390] sm:$0xff] %v951
                  %v953 = vld [vmem:[%s721 + $0x598] sm:$0xff]
                  %954 = vst [vmem:[%s722 + $0x398] sm:$0xff] %v953
                  %v955 = vld [vmem:[%s721 + $0x5a0] sm:$0xff]
                  %956 = vst [vmem:[%s722 + $0x3a0] sm:$0xff] %v955
                  %v957 = vld [vmem:[%s721 + $0x5a8] sm:$0xff]
                  %958 = vst [vmem:[%s722 + $0x3a8] sm:$0xff] %v957
                  %v959 = vld [vmem:[%s721 + $0x5b0] sm:$0xff]
                  %960 = vst [vmem:[%s722 + $0x3b0] sm:$0xff] %v959
                  %v961 = vld [vmem:[%s721 + $0x5b8] sm:$0xff]
                  %962 = vst [vmem:[%s722 + $0x3b8] sm:$0xff] %v961
                  %v963 = vld [vmem:[%s721 + $0x5c0] sm:$0xff]
                  %964 = vst [vmem:[%s722 + $0x3c0] sm:$0xff] %v963
                  %v965 = vld [vmem:[%s721 + $0x5c8] sm:$0xff]
                  %966 = vst [vmem:[%s722 + $0x3c8] sm:$0xff] %v965
                  %v967 = vld [vmem:[%s721 + $0x5d0] sm:$0xff]
                  %968 = vst [vmem:[%s722 + $0x3d0] sm:$0xff] %v967
                  %v969 = vld [vmem:[%s721 + $0x5d8] sm:$0xff]
                  %970 = vst [vmem:[%s722 + $0x3d8] sm:$0xff] %v969
                  %v971 = vld [vmem:[%s721 + $0x5e0] sm:$0xff]
                  %972 = vst [vmem:[%s722 + $0x3e0] sm:$0xff] %v971
                  %v973 = vld [vmem:[%s721 + $0x5e8] sm:$0xff]
                  %974 = vst [vmem:[%s722 + $0x3e8] sm:$0xff] %v973
                  %v975 = vld [vmem:[%s721 + $0x5f0] sm:$0xff]
                  %976 = vst [vmem:[%s722 + $0x3f0] sm:$0xff] %v975
                  %v977 = vld [vmem:[%s721 + $0x5f8] sm:$0xff]
                  %978 = vst [vmem:[%s722 + $0x3f8] sm:$0xff] %v977
                  %v979 = vld [vmem:[%s721 + $0x800] sm:$0xff]
                  %980 = vst [vmem:[%s722 + $0x400] sm:$0xff] %v979
                  %v981 = vld [vmem:[%s721 + $0x808] sm:$0xff]
                  %982 = vst [vmem:[%s722 + $0x408] sm:$0xff] %v981
                  %v983 = vld [vmem:[%s721 + $0x810] sm:$0xff]
                  %984 = vst [vmem:[%s722 + $0x410] sm:$0xff] %v983
                  %v985 = vld [vmem:[%s721 + $0x818] sm:$0xff]
                  %986 = vst [vmem:[%s722 + $0x418] sm:$0xff] %v985
                  %v987 = vld [vmem:[%s721 + $0x820] sm:$0xff]
                  %988 = vst [vmem:[%s722 + $0x420] sm:$0xff] %v987
                  %v989 = vld [vmem:[%s721 + $0x828] sm:$0xff]
                  %990 = vst [vmem:[%s722 + $0x428] sm:$0xff] %v989
                  %v991 = vld [vmem:[%s721 + $0x830] sm:$0xff]
                  %992 = vst [vmem:[%s722 + $0x430] sm:$0xff] %v991
                  %v993 = vld [vmem:[%s721 + $0x838] sm:$0xff]
                  %994 = vst [vmem:[%s722 + $0x438] sm:$0xff] %v993
                  %v995 = vld [vmem:[%s721 + $0x840] sm:$0xff]
                  %996 = vst [vmem:[%s722 + $0x440] sm:$0xff] %v995
                  %v997 = vld [vmem:[%s721 + $0x848] sm:$0xff]
                  %998 = vst [vmem:[%s722 + $0x448] sm:$0xff] %v997
                  %v999 = vld [vmem:[%s721 + $0x850] sm:$0xff]
                  %1000 = vst [vmem:[%s722 + $0x450] sm:$0xff] %v999
                  %v1001 = vld [vmem:[%s721 + $0x858] sm:$0xff]
                  %1002 = vst [vmem:[%s722 + $0x458] sm:$0xff] %v1001
                  %v1003 = vld [vmem:[%s721 + $0x860] sm:$0xff]
                  %1004 = vst [vmem:[%s722 + $0x460] sm:$0xff] %v1003
                  %v1005 = vld [vmem:[%s721 + $0x868] sm:$0xff]
                  %1006 = vst [vmem:[%s722 + $0x468] sm:$0xff] %v1005
                  %v1007 = vld [vmem:[%s721 + $0x870] sm:$0xff]
                  %1008 = vst [vmem:[%s722 + $0x470] sm:$0xff] %v1007
                  %v1009 = vld [vmem:[%s721 + $0x878] sm:$0xff]
                  %1010 = vst [vmem:[%s722 + $0x478] sm:$0xff] %v1009
                  %v1011 = vld [vmem:[%s721 + $0x880] sm:$0xff]
                  %1012 = vst [vmem:[%s722 + $0x480] sm:$0xff] %v1011
                  %v1013 = vld [vmem:[%s721 + $0x888] sm:$0xff]
                  %1014 = vst [vmem:[%s722 + $0x488] sm:$0xff] %v1013
                  %v1015 = vld [vmem:[%s721 + $0x890] sm:$0xff]
                  %1016 = vst [vmem:[%s722 + $0x490] sm:$0xff] %v1015
                  %v1017 = vld [vmem:[%s721 + $0x898] sm:$0xff]
                  %1018 = vst [vmem:[%s722 + $0x498] sm:$0xff] %v1017
                  %v1019 = vld [vmem:[%s721 + $0x8a0] sm:$0xff]
                  %1020 = vst [vmem:[%s722 + $0x4a0] sm:$0xff] %v1019
                  %v1021 = vld [vmem:[%s721 + $0x8a8] sm:$0xff]
                  %1022 = vst [vmem:[%s722 + $0x4a8] sm:$0xff] %v1021
                  %v1023 = vld [vmem:[%s721 + $0x8b0] sm:$0xff]
                  %1024 = vst [vmem:[%s722 + $0x4b0] sm:$0xff] %v1023
                  %v1025 = vld [vmem:[%s721 + $0x8b8] sm:$0xff]
                  %1026 = vst [vmem:[%s722 + $0x4b8] sm:$0xff] %v1025
                  %v1027 = vld [vmem:[%s721 + $0x8c0] sm:$0xff]
                  %1028 = vst [vmem:[%s722 + $0x4c0] sm:$0xff] %v1027
                  %v1029 = vld [vmem:[%s721 + $0x8c8] sm:$0xff]
                  %1030 = vst [vmem:[%s722 + $0x4c8] sm:$0xff] %v1029
                  %v1031 = vld [vmem:[%s721 + $0x8d0] sm:$0xff]
                  %1032 = vst [vmem:[%s722 + $0x4d0] sm:$0xff] %v1031
                  %v1033 = vld [vmem:[%s721 + $0x8d8] sm:$0xff]
                  %1034 = vst [vmem:[%s722 + $0x4d8] sm:$0xff] %v1033
                  %v1035 = vld [vmem:[%s721 + $0x8e0] sm:$0xff]
                  %1036 = vst [vmem:[%s722 + $0x4e0] sm:$0xff] %v1035
                  %v1037 = vld [vmem:[%s721 + $0x8e8] sm:$0xff]
                  %1038 = vst [vmem:[%s722 + $0x4e8] sm:$0xff] %v1037
                  %v1039 = vld [vmem:[%s721 + $0x8f0] sm:$0xff]
                  %1040 = vst [vmem:[%s722 + $0x4f0] sm:$0xff] %v1039
                  %v1041 = vld [vmem:[%s721 + $0x8f8] sm:$0xff]
                  %1042 = vst [vmem:[%s722 + $0x4f8] sm:$0xff] %v1041
                  %v1043 = vld [vmem:[%s721 + $0x900] sm:$0xff]
                  %1044 = vst [vmem:[%s722 + $0x500] sm:$0xff] %v1043
                  %v1045 = vld [vmem:[%s721 + $0x908] sm:$0xff]
                  %1046 = vst [vmem:[%s722 + $0x508] sm:$0xff] %v1045
                  %v1047 = vld [vmem:[%s721 + $0x910] sm:$0xff]
                  %1048 = vst [vmem:[%s722 + $0x510] sm:$0xff] %v1047
                  %v1049 = vld [vmem:[%s721 + $0x918] sm:$0xff]
                  %1050 = vst [vmem:[%s722 + $0x518] sm:$0xff] %v1049
                  %v1051 = vld [vmem:[%s721 + $0x920] sm:$0xff]
                  %1052 = vst [vmem:[%s722 + $0x520] sm:$0xff] %v1051
                  %v1053 = vld [vmem:[%s721 + $0x928] sm:$0xff]
                  %1054 = vst [vmem:[%s722 + $0x528] sm:$0xff] %v1053
                  %v1055 = vld [vmem:[%s721 + $0x930] sm:$0xff]
                  %1056 = vst [vmem:[%s722 + $0x530] sm:$0xff] %v1055
                  %v1057 = vld [vmem:[%s721 + $0x938] sm:$0xff]
                  %1058 = vst [vmem:[%s722 + $0x538] sm:$0xff] %v1057
                  %v1059 = vld [vmem:[%s721 + $0x940] sm:$0xff]
                  %1060 = vst [vmem:[%s722 + $0x540] sm:$0xff] %v1059
                  %v1061 = vld [vmem:[%s721 + $0x948] sm:$0xff]
                  %1062 = vst [vmem:[%s722 + $0x548] sm:$0xff] %v1061
                  %v1063 = vld [vmem:[%s721 + $0x950] sm:$0xff]
                  %1064 = vst [vmem:[%s722 + $0x550] sm:$0xff] %v1063
                  %v1065 = vld [vmem:[%s721 + $0x958] sm:$0xff]
                  %1066 = vst [vmem:[%s722 + $0x558] sm:$0xff] %v1065
                  %v1067 = vld [vmem:[%s721 + $0x960] sm:$0xff]
                  %1068 = vst [vmem:[%s722 + $0x560] sm:$0xff] %v1067
                  %v1069 = vld [vmem:[%s721 + $0x968] sm:$0xff]
                  %1070 = vst [vmem:[%s722 + $0x568] sm:$0xff] %v1069
                  %v1071 = vld [vmem:[%s721 + $0x970] sm:$0xff]
                  %1072 = vst [vmem:[%s722 + $0x570] sm:$0xff] %v1071
                  %v1073 = vld [vmem:[%s721 + $0x978] sm:$0xff]
                  %1074 = vst [vmem:[%s722 + $0x578] sm:$0xff] %v1073
                  %v1075 = vld [vmem:[%s721 + $0x980] sm:$0xff]
                  %1076 = vst [vmem:[%s722 + $0x580] sm:$0xff] %v1075
                  %v1077 = vld [vmem:[%s721 + $0x988] sm:$0xff]
                  %1078 = vst [vmem:[%s722 + $0x588] sm:$0xff] %v1077
                  %v1079 = vld [vmem:[%s721 + $0x990] sm:$0xff]
                  %1080 = vst [vmem:[%s722 + $0x590] sm:$0xff] %v1079
                  %v1081 = vld [vmem:[%s721 + $0x998] sm:$0xff]
                  %1082 = vst [vmem:[%s722 + $0x598] sm:$0xff] %v1081
                  %v1083 = vld [vmem:[%s721 + $0x9a0] sm:$0xff]
                  %1084 = vst [vmem:[%s722 + $0x5a0] sm:$0xff] %v1083
                  %v1085 = vld [vmem:[%s721 + $0x9a8] sm:$0xff]
                  %1086 = vst [vmem:[%s722 + $0x5a8] sm:$0xff] %v1085
                  %v1087 = vld [vmem:[%s721 + $0x9b0] sm:$0xff]
                  %1088 = vst [vmem:[%s722 + $0x5b0] sm:$0xff] %v1087
                  %v1089 = vld [vmem:[%s721 + $0x9b8] sm:$0xff]
                  %1090 = vst [vmem:[%s722 + $0x5b8] sm:$0xff] %v1089
                  %v1091 = vld [vmem:[%s721 + $0x9c0] sm:$0xff]
                  %1092 = vst [vmem:[%s722 + $0x5c0] sm:$0xff] %v1091
                  %v1093 = vld [vmem:[%s721 + $0x9c8] sm:$0xff]
                  %1094 = vst [vmem:[%s722 + $0x5c8] sm:$0xff] %v1093
                  %v1095 = vld [vmem:[%s721 + $0x9d0] sm:$0xff]
                  %1096 = vst [vmem:[%s722 + $0x5d0] sm:$0xff] %v1095
                  %v1097 = vld [vmem:[%s721 + $0x9d8] sm:$0xff]
                  %1098 = vst [vmem:[%s722 + $0x5d8] sm:$0xff] %v1097
                  %v1099 = vld [vmem:[%s721 + $0x9e0] sm:$0xff]
                  %1100 = vst [vmem:[%s722 + $0x5e0] sm:$0xff] %v1099
                  %v1101 = vld [vmem:[%s721 + $0x9e8] sm:$0xff]
                  %1102 = vst [vmem:[%s722 + $0x5e8] sm:$0xff] %v1101
                  %v1103 = vld [vmem:[%s721 + $0x9f0] sm:$0xff]
                  %1104 = vst [vmem:[%s722 + $0x5f0] sm:$0xff] %v1103
                  %v1105 = vld [vmem:[%s721 + $0x9f8] sm:$0xff]
                  %1106 = vst [vmem:[%s722 + $0x5f8] sm:$0xff] %v1105
                  %v1107 = vld [vmem:[%s721 + $0xc00] sm:$0xff]
                  %1108 = vst [vmem:[%s722 + $0x600] sm:$0xff] %v1107
                  %v1109 = vld [vmem:[%s721 + $0xc08] sm:$0xff]
                  %1110 = vst [vmem:[%s722 + $0x608] sm:$0xff] %v1109
                  %v1111 = vld [vmem:[%s721 + $0xc10] sm:$0xff]
                  %1112 = vst [vmem:[%s722 + $0x610] sm:$0xff] %v1111
                  %v1113 = vld [vmem:[%s721 + $0xc18] sm:$0xff]
                  %1114 = vst [vmem:[%s722 + $0x618] sm:$0xff] %v1113
                  %v1115 = vld [vmem:[%s721 + $0xc20] sm:$0xff]
                  %1116 = vst [vmem:[%s722 + $0x620] sm:$0xff] %v1115
                  %v1117 = vld [vmem:[%s721 + $0xc28] sm:$0xff]
                  %1118 = vst [vmem:[%s722 + $0x628] sm:$0xff] %v1117
                  %v1119 = vld [vmem:[%s721 + $0xc30] sm:$0xff]
                  %1120 = vst [vmem:[%s722 + $0x630] sm:$0xff] %v1119
                  %v1121 = vld [vmem:[%s721 + $0xc38] sm:$0xff]
                  %1122 = vst [vmem:[%s722 + $0x638] sm:$0xff] %v1121
                  %v1123 = vld [vmem:[%s721 + $0xc40] sm:$0xff]
                  %1124 = vst [vmem:[%s722 + $0x640] sm:$0xff] %v1123
                  %v1125 = vld [vmem:[%s721 + $0xc48] sm:$0xff]
                  %1126 = vst [vmem:[%s722 + $0x648] sm:$0xff] %v1125
                  %v1127 = vld [vmem:[%s721 + $0xc50] sm:$0xff]
                  %1128 = vst [vmem:[%s722 + $0x650] sm:$0xff] %v1127
                  %v1129 = vld [vmem:[%s721 + $0xc58] sm:$0xff]
                  %1130 = vst [vmem:[%s722 + $0x658] sm:$0xff] %v1129
                  %v1131 = vld [vmem:[%s721 + $0xc60] sm:$0xff]
                  %1132 = vst [vmem:[%s722 + $0x660] sm:$0xff] %v1131
                  %v1133 = vld [vmem:[%s721 + $0xc68] sm:$0xff]
                  %1134 = vst [vmem:[%s722 + $0x668] sm:$0xff] %v1133
                  %v1135 = vld [vmem:[%s721 + $0xc70] sm:$0xff]
                  %1136 = vst [vmem:[%s722 + $0x670] sm:$0xff] %v1135
                  %v1137 = vld [vmem:[%s721 + $0xc78] sm:$0xff]
                  %1138 = vst [vmem:[%s722 + $0x678] sm:$0xff] %v1137
                  %v1139 = vld [vmem:[%s721 + $0xc80] sm:$0xff]
                  %1140 = vst [vmem:[%s722 + $0x680] sm:$0xff] %v1139
                  %v1141 = vld [vmem:[%s721 + $0xc88] sm:$0xff]
                  %1142 = vst [vmem:[%s722 + $0x688] sm:$0xff] %v1141
                  %v1143 = vld [vmem:[%s721 + $0xc90] sm:$0xff]
                  %1144 = vst [vmem:[%s722 + $0x690] sm:$0xff] %v1143
                  %v1145 = vld [vmem:[%s721 + $0xc98] sm:$0xff]
                  %1146 = vst [vmem:[%s722 + $0x698] sm:$0xff] %v1145
                  %v1147 = vld [vmem:[%s721 + $0xca0] sm:$0xff]
                  %1148 = vst [vmem:[%s722 + $0x6a0] sm:$0xff] %v1147
                  %v1149 = vld [vmem:[%s721 + $0xca8] sm:$0xff]
                  %1150 = vst [vmem:[%s722 + $0x6a8] sm:$0xff] %v1149
                  %v1151 = vld [vmem:[%s721 + $0xcb0] sm:$0xff]
                  %1152 = vst [vmem:[%s722 + $0x6b0] sm:$0xff] %v1151
                  %v1153 = vld [vmem:[%s721 + $0xcb8] sm:$0xff]
                  %1154 = vst [vmem:[%s722 + $0x6b8] sm:$0xff] %v1153
                  %v1155 = vld [vmem:[%s721 + $0xcc0] sm:$0xff]
                  %1156 = vst [vmem:[%s722 + $0x6c0] sm:$0xff] %v1155
                  %v1157 = vld [vmem:[%s721 + $0xcc8] sm:$0xff]
                  %1158 = vst [vmem:[%s722 + $0x6c8] sm:$0xff] %v1157
                  %v1159 = vld [vmem:[%s721 + $0xcd0] sm:$0xff]
                  %1160 = vst [vmem:[%s722 + $0x6d0] sm:$0xff] %v1159
                  %v1161 = vld [vmem:[%s721 + $0xcd8] sm:$0xff]
                  %1162 = vst [vmem:[%s722 + $0x6d8] sm:$0xff] %v1161
                  %v1163 = vld [vmem:[%s721 + $0xce0] sm:$0xff]
                  %1164 = vst [vmem:[%s722 + $0x6e0] sm:$0xff] %v1163
                  %v1165 = vld [vmem:[%s721 + $0xce8] sm:$0xff]
                  %1166 = vst [vmem:[%s722 + $0x6e8] sm:$0xff] %v1165
                  %v1167 = vld [vmem:[%s721 + $0xcf0] sm:$0xff]
                  %1168 = vst [vmem:[%s722 + $0x6f0] sm:$0xff] %v1167
                  %v1169 = vld [vmem:[%s721 + $0xcf8] sm:$0xff]
                  %1170 = vst [vmem:[%s722 + $0x6f8] sm:$0xff] %v1169
                  %v1171 = vld [vmem:[%s721 + $0xd00] sm:$0xff]
                  %1172 = vst [vmem:[%s722 + $0x700] sm:$0xff] %v1171
                  %v1173 = vld [vmem:[%s721 + $0xd08] sm:$0xff]
                  %1174 = vst [vmem:[%s722 + $0x708] sm:$0xff] %v1173
                  %v1175 = vld [vmem:[%s721 + $0xd10] sm:$0xff]
                  %1176 = vst [vmem:[%s722 + $0x710] sm:$0xff] %v1175
                  %v1177 = vld [vmem:[%s721 + $0xd18] sm:$0xff]
                  %1178 = vst [vmem:[%s722 + $0x718] sm:$0xff] %v1177
                  %v1179 = vld [vmem:[%s721 + $0xd20] sm:$0xff]
                  %1180 = vst [vmem:[%s722 + $0x720] sm:$0xff] %v1179
                  %v1181 = vld [vmem:[%s721 + $0xd28] sm:$0xff]
                  %1182 = vst [vmem:[%s722 + $0x728] sm:$0xff] %v1181
                  %v1183 = vld [vmem:[%s721 + $0xd30] sm:$0xff]
                  %1184 = vst [vmem:[%s722 + $0x730] sm:$0xff] %v1183
                  %v1185 = vld [vmem:[%s721 + $0xd38] sm:$0xff]
                  %1186 = vst [vmem:[%s722 + $0x738] sm:$0xff] %v1185
                  %v1187 = vld [vmem:[%s721 + $0xd40] sm:$0xff]
                  %1188 = vst [vmem:[%s722 + $0x740] sm:$0xff] %v1187
                  %v1189 = vld [vmem:[%s721 + $0xd48] sm:$0xff]
                  %1190 = vst [vmem:[%s722 + $0x748] sm:$0xff] %v1189
                  %v1191 = vld [vmem:[%s721 + $0xd50] sm:$0xff]
                  %1192 = vst [vmem:[%s722 + $0x750] sm:$0xff] %v1191
                  %v1193 = vld [vmem:[%s721 + $0xd58] sm:$0xff]
                  %1194 = vst [vmem:[%s722 + $0x758] sm:$0xff] %v1193
                  %v1195 = vld [vmem:[%s721 + $0xd60] sm:$0xff]
                  %1196 = vst [vmem:[%s722 + $0x760] sm:$0xff] %v1195
                  %v1197 = vld [vmem:[%s721 + $0xd68] sm:$0xff]
                  %1198 = vst [vmem:[%s722 + $0x768] sm:$0xff] %v1197
                  %v1199 = vld [vmem:[%s721 + $0xd70] sm:$0xff]
                  %1200 = vst [vmem:[%s722 + $0x770] sm:$0xff] %v1199
                  %v1201 = vld [vmem:[%s721 + $0xd78] sm:$0xff]
                  %1202 = vst [vmem:[%s722 + $0x778] sm:$0xff] %v1201
                  %v1203 = vld [vmem:[%s721 + $0xd80] sm:$0xff]
                  %1204 = vst [vmem:[%s722 + $0x780] sm:$0xff] %v1203
                  %v1205 = vld [vmem:[%s721 + $0xd88] sm:$0xff]
                  %1206 = vst [vmem:[%s722 + $0x788] sm:$0xff] %v1205
                  %v1207 = vld [vmem:[%s721 + $0xd90] sm:$0xff]
                  %1208 = vst [vmem:[%s722 + $0x790] sm:$0xff] %v1207
                  %v1209 = vld [vmem:[%s721 + $0xd98] sm:$0xff]
                  %1210 = vst [vmem:[%s722 + $0x798] sm:$0xff] %v1209
                  %v1211 = vld [vmem:[%s721 + $0xda0] sm:$0xff]
                  %1212 = vst [vmem:[%s722 + $0x7a0] sm:$0xff] %v1211
                  %v1213 = vld [vmem:[%s721 + $0xda8] sm:$0xff]
                  %1214 = vst [vmem:[%s722 + $0x7a8] sm:$0xff] %v1213
                  %v1215 = vld [vmem:[%s721 + $0xdb0] sm:$0xff]
                  %1216 = vst [vmem:[%s722 + $0x7b0] sm:$0xff] %v1215
                  %v1217 = vld [vmem:[%s721 + $0xdb8] sm:$0xff]
                  %1218 = vst [vmem:[%s722 + $0x7b8] sm:$0xff] %v1217
                  %v1219 = vld [vmem:[%s721 + $0xdc0] sm:$0xff]
                  %1220 = vst [vmem:[%s722 + $0x7c0] sm:$0xff] %v1219
                  %v1221 = vld [vmem:[%s721 + $0xdc8] sm:$0xff]
                  %1222 = vst [vmem:[%s722 + $0x7c8] sm:$0xff] %v1221
                  %v1223 = vld [vmem:[%s721 + $0xdd0] sm:$0xff]
                  %1224 = vst [vmem:[%s722 + $0x7d0] sm:$0xff] %v1223
                  %v1225 = vld [vmem:[%s721 + $0xdd8] sm:$0xff]
                  %1226 = vst [vmem:[%s722 + $0x7d8] sm:$0xff] %v1225
                  %v1227 = vld [vmem:[%s721 + $0xde0] sm:$0xff]
                  %1228 = vst [vmem:[%s722 + $0x7e0] sm:$0xff] %v1227
                  %v1229 = vld [vmem:[%s721 + $0xde8] sm:$0xff]
                  %1230 = vst [vmem:[%s722 + $0x7e8] sm:$0xff] %v1229
                  %v1231 = vld [vmem:[%s721 + $0xdf0] sm:$0xff]
                  %1232 = vst [vmem:[%s722 + $0x7f0] sm:$0xff] %v1231
                  %v1233 = vld [vmem:[%s721 + $0xdf8] sm:$0xff]
                  %1234 = vst [vmem:[%s722 + $0x7f8] sm:$0xff] %v1233
                  %s1235 = sadd.s32 1, %s720
                  %p1236 = scmp.ge.s32.totalorder %s1235, 1
                  %s1237 = scalar_select %p1236, 0, %s1235
                  %s1238 = smul.u32 %s1237, 8
                  %s1239 = smul.u32 %s1237, 8
                  %s1240 = scalar_lea.vmem %s183, %s1238
                  %s1241 = scalar_lea.vmem %s180, %s1239 [#allocation4]
                $region64: #{channel_attention_forward.1} parent=58 // loop_footer
                  %s719 = sadd.s32 1, %s715
                $region65: #{channel_attention_forward.1} parent=58 // loop_footer_branch
                  %714 = sbr.rel target = $region61
                $region66: #{channel_attention_forward.1} parent=58 // loop_exit
                  _
              $region59: #{channel_attention_forward.1} parent=43 // pred_fallthru
                _
              // Predicated region
              $region67: #{channel_attention_forward.1} parent=43 // pred_check
                _
              $region68: #{channel_attention_forward.1} parent=43 // pred_check_branch
                %1243 = sbr.rel target = $region70
              $region69: #{channel_attention_forward.1} parent=43 // pred_region
                %s1244 = scalar_lea.vmem %s183, 8
                %s1245 = scalar_lea.vmem %s180, 8 [#allocation4]
                loop: start=0, step=1, limit=1
                $region71: #{channel_attention_forward.1} parent=69 // loop_pre_header
                  _
                $region72: #{channel_attention_forward.1} parent=69 // loop_header
                  %s1247 = sphi 0, %s1251
                  %p1248 = scmp.ge.s32.totalorder %s1247, 1
                  %s1252 = sphi 0, %s1769
                  %s1253 = sphi %s183, %s1772
                  %s1254 = sphi %s180, %s1773
                $region73: #{channel_attention_forward.1} parent=69 // loop_header_branch
                  %1250 = sbr.rel (%p1248) target = $region77
                $region74: #{channel_attention_forward.1} parent=69 // loop_body
                  %v1255 = vld [vmem:[%s1253] sm:$0xff]
                  %1256 = vst [vmem:[%s1254] sm:$0xff] %v1255
                  %v1257 = vld [vmem:[%s1253 + $0x8] sm:$0xff]
                  %1258 = vst [vmem:[%s1254 + $0x8] sm:$0xff] %v1257
                  %v1259 = vld [vmem:[%s1253 + $0x10] sm:$0xff]
                  %1260 = vst [vmem:[%s1254 + $0x10] sm:$0xff] %v1259
                  %v1261 = vld [vmem:[%s1253 + $0x18] sm:$0xff]
                  %1262 = vst [vmem:[%s1254 + $0x18] sm:$0xff] %v1261
                  %v1263 = vld [vmem:[%s1253 + $0x20] sm:$0xff]
                  %1264 = vst [vmem:[%s1254 + $0x20] sm:$0xff] %v1263
                  %v1265 = vld [vmem:[%s1253 + $0x28] sm:$0xff]
                  %1266 = vst [vmem:[%s1254 + $0x28] sm:$0xff] %v1265
                  %v1267 = vld [vmem:[%s1253 + $0x30] sm:$0xff]
                  %1268 = vst [vmem:[%s1254 + $0x30] sm:$0xff] %v1267
                  %v1269 = vld [vmem:[%s1253 + $0x38] sm:$0xff]
                  %1270 = vst [vmem:[%s1254 + $0x38] sm:$0xff] %v1269
                  %v1271 = vld [vmem:[%s1253 + $0x40] sm:$0xff]
                  %1272 = vst [vmem:[%s1254 + $0x40] sm:$0xff] %v1271
                  %v1273 = vld [vmem:[%s1253 + $0x48] sm:$0xff]
                  %1274 = vst [vmem:[%s1254 + $0x48] sm:$0xff] %v1273
                  %v1275 = vld [vmem:[%s1253 + $0x50] sm:$0xff]
                  %1276 = vst [vmem:[%s1254 + $0x50] sm:$0xff] %v1275
                  %v1277 = vld [vmem:[%s1253 + $0x58] sm:$0xff]
                  %1278 = vst [vmem:[%s1254 + $0x58] sm:$0xff] %v1277
                  %v1279 = vld [vmem:[%s1253 + $0x60] sm:$0xff]
                  %1280 = vst [vmem:[%s1254 + $0x60] sm:$0xff] %v1279
                  %v1281 = vld [vmem:[%s1253 + $0x68] sm:$0xff]
                  %1282 = vst [vmem:[%s1254 + $0x68] sm:$0xff] %v1281
                  %v1283 = vld [vmem:[%s1253 + $0x70] sm:$0xff]
                  %1284 = vst [vmem:[%s1254 + $0x70] sm:$0xff] %v1283
                  %v1285 = vld [vmem:[%s1253 + $0x78] sm:$0xff]
                  %1286 = vst [vmem:[%s1254 + $0x78] sm:$0xff] %v1285
                  %v1287 = vld [vmem:[%s1253 + $0x80] sm:$0xff]
                  %1288 = vst [vmem:[%s1254 + $0x80] sm:$0xff] %v1287
                  %v1289 = vld [vmem:[%s1253 + $0x88] sm:$0xff]
                  %1290 = vst [vmem:[%s1254 + $0x88] sm:$0xff] %v1289
                  %v1291 = vld [vmem:[%s1253 + $0x90] sm:$0xff]
                  %1292 = vst [vmem:[%s1254 + $0x90] sm:$0xff] %v1291
                  %v1293 = vld [vmem:[%s1253 + $0x98] sm:$0xff]
                  %1294 = vst [vmem:[%s1254 + $0x98] sm:$0xff] %v1293
                  %v1295 = vld [vmem:[%s1253 + $0xa0] sm:$0xff]
                  %1296 = vst [vmem:[%s1254 + $0xa0] sm:$0xff] %v1295
                  %v1297 = vld [vmem:[%s1253 + $0xa8] sm:$0xff]
                  %1298 = vst [vmem:[%s1254 + $0xa8] sm:$0xff] %v1297
                  %v1299 = vld [vmem:[%s1253 + $0xb0] sm:$0xff]
                  %1300 = vst [vmem:[%s1254 + $0xb0] sm:$0xff] %v1299
                  %v1301 = vld [vmem:[%s1253 + $0xb8] sm:$0xff]
                  %1302 = vst [vmem:[%s1254 + $0xb8] sm:$0xff] %v1301
                  %v1303 = vld [vmem:[%s1253 + $0xc0] sm:$0xff]
                  %1304 = vst [vmem:[%s1254 + $0xc0] sm:$0xff] %v1303
                  %v1305 = vld [vmem:[%s1253 + $0xc8] sm:$0xff]
                  %1306 = vst [vmem:[%s1254 + $0xc8] sm:$0xff] %v1305
                  %v1307 = vld [vmem:[%s1253 + $0xd0] sm:$0xff]
                  %1308 = vst [vmem:[%s1254 + $0xd0] sm:$0xff] %v1307
                  %v1309 = vld [vmem:[%s1253 + $0xd8] sm:$0xff]
                  %1310 = vst [vmem:[%s1254 + $0xd8] sm:$0xff] %v1309
                  %v1311 = vld [vmem:[%s1253 + $0xe0] sm:$0xff]
                  %1312 = vst [vmem:[%s1254 + $0xe0] sm:$0xff] %v1311
                  %v1313 = vld [vmem:[%s1253 + $0xe8] sm:$0xff]
                  %1314 = vst [vmem:[%s1254 + $0xe8] sm:$0xff] %v1313
                  %v1315 = vld [vmem:[%s1253 + $0xf0] sm:$0xff]
                  %1316 = vst [vmem:[%s1254 + $0xf0] sm:$0xff] %v1315
                  %v1317 = vld [vmem:[%s1253 + $0xf8] sm:$0xff]
                  %1318 = vst [vmem:[%s1254 + $0xf8] sm:$0xff] %v1317
                  %v1319 = vld [vmem:[%s1253 + $0x100] sm:$0xff]
                  %1320 = vst [vmem:[%s1254 + $0x100] sm:$0xff] %v1319
                  %v1321 = vld [vmem:[%s1253 + $0x108] sm:$0xff]
                  %1322 = vst [vmem:[%s1254 + $0x108] sm:$0xff] %v1321
                  %v1323 = vld [vmem:[%s1253 + $0x110] sm:$0xff]
                  %1324 = vst [vmem:[%s1254 + $0x110] sm:$0xff] %v1323
                  %v1325 = vld [vmem:[%s1253 + $0x118] sm:$0xff]
                  %1326 = vst [vmem:[%s1254 + $0x118] sm:$0xff] %v1325
                  %v1327 = vld [vmem:[%s1253 + $0x120] sm:$0xff]
                  %1328 = vst [vmem:[%s1254 + $0x120] sm:$0xff] %v1327
                  %v1329 = vld [vmem:[%s1253 + $0x128] sm:$0xff]
                  %1330 = vst [vmem:[%s1254 + $0x128] sm:$0xff] %v1329
                  %v1331 = vld [vmem:[%s1253 + $0x130] sm:$0xff]
                  %1332 = vst [vmem:[%s1254 + $0x130] sm:$0xff] %v1331
                  %v1333 = vld [vmem:[%s1253 + $0x138] sm:$0xff]
                  %1334 = vst [vmem:[%s1254 + $0x138] sm:$0xff] %v1333
                  %v1335 = vld [vmem:[%s1253 + $0x140] sm:$0xff]
                  %1336 = vst [vmem:[%s1254 + $0x140] sm:$0xff] %v1335
                  %v1337 = vld [vmem:[%s1253 + $0x148] sm:$0xff]
                  %1338 = vst [vmem:[%s1254 + $0x148] sm:$0xff] %v1337
                  %v1339 = vld [vmem:[%s1253 + $0x150] sm:$0xff]
                  %1340 = vst [vmem:[%s1254 + $0x150] sm:$0xff] %v1339
                  %v1341 = vld [vmem:[%s1253 + $0x158] sm:$0xff]
                  %1342 = vst [vmem:[%s1254 + $0x158] sm:$0xff] %v1341
                  %v1343 = vld [vmem:[%s1253 + $0x160] sm:$0xff]
                  %1344 = vst [vmem:[%s1254 + $0x160] sm:$0xff] %v1343
                  %v1345 = vld [vmem:[%s1253 + $0x168] sm:$0xff]
                  %1346 = vst [vmem:[%s1254 + $0x168] sm:$0xff] %v1345
                  %v1347 = vld [vmem:[%s1253 + $0x170] sm:$0xff]
                  %1348 = vst [vmem:[%s1254 + $0x170] sm:$0xff] %v1347
                  %v1349 = vld [vmem:[%s1253 + $0x178] sm:$0xff]
                  %1350 = vst [vmem:[%s1254 + $0x178] sm:$0xff] %v1349
                  %v1351 = vld [vmem:[%s1253 + $0x180] sm:$0xff]
                  %1352 = vst [vmem:[%s1254 + $0x180] sm:$0xff] %v1351
                  %v1353 = vld [vmem:[%s1253 + $0x188] sm:$0xff]
                  %1354 = vst [vmem:[%s1254 + $0x188] sm:$0xff] %v1353
                  %v1355 = vld [vmem:[%s1253 + $0x190] sm:$0xff]
                  %1356 = vst [vmem:[%s1254 + $0x190] sm:$0xff] %v1355
                  %v1357 = vld [vmem:[%s1253 + $0x198] sm:$0xff]
                  %1358 = vst [vmem:[%s1254 + $0x198] sm:$0xff] %v1357
                  %v1359 = vld [vmem:[%s1253 + $0x1a0] sm:$0xff]
                  %1360 = vst [vmem:[%s1254 + $0x1a0] sm:$0xff] %v1359
                  %v1361 = vld [vmem:[%s1253 + $0x1a8] sm:$0xff]
                  %1362 = vst [vmem:[%s1254 + $0x1a8] sm:$0xff] %v1361
                  %v1363 = vld [vmem:[%s1253 + $0x1b0] sm:$0xff]
                  %1364 = vst [vmem:[%s1254 + $0x1b0] sm:$0xff] %v1363
                  %v1365 = vld [vmem:[%s1253 + $0x1b8] sm:$0xff]
                  %1366 = vst [vmem:[%s1254 + $0x1b8] sm:$0xff] %v1365
                  %v1367 = vld [vmem:[%s1253 + $0x1c0] sm:$0xff]
                  %1368 = vst [vmem:[%s1254 + $0x1c0] sm:$0xff] %v1367
                  %v1369 = vld [vmem:[%s1253 + $0x1c8] sm:$0xff]
                  %1370 = vst [vmem:[%s1254 + $0x1c8] sm:$0xff] %v1369
                  %v1371 = vld [vmem:[%s1253 + $0x1d0] sm:$0xff]
                  %1372 = vst [vmem:[%s1254 + $0x1d0] sm:$0xff] %v1371
                  %v1373 = vld [vmem:[%s1253 + $0x1d8] sm:$0xff]
                  %1374 = vst [vmem:[%s1254 + $0x1d8] sm:$0xff] %v1373
                  %v1375 = vld [vmem:[%s1253 + $0x1e0] sm:$0xff]
                  %1376 = vst [vmem:[%s1254 + $0x1e0] sm:$0xff] %v1375
                  %v1377 = vld [vmem:[%s1253 + $0x1e8] sm:$0xff]
                  %1378 = vst [vmem:[%s1254 + $0x1e8] sm:$0xff] %v1377
                  %v1379 = vld [vmem:[%s1253 + $0x1f0] sm:$0xff]
                  %1380 = vst [vmem:[%s1254 + $0x1f0] sm:$0xff] %v1379
                  %v1381 = vld [vmem:[%s1253 + $0x1f8] sm:$0xff]
                  %1382 = vst [vmem:[%s1254 + $0x1f8] sm:$0xff] %v1381
                  %v1383 = vld [vmem:[%s1253 + $0x400] sm:$0xff]
                  %1384 = vst [vmem:[%s1254 + $0x200] sm:$0xff] %v1383
                  %v1385 = vld [vmem:[%s1253 + $0x408] sm:$0xff]
                  %1386 = vst [vmem:[%s1254 + $0x208] sm:$0xff] %v1385
                  %v1387 = vld [vmem:[%s1253 + $0x410] sm:$0xff]
                  %1388 = vst [vmem:[%s1254 + $0x210] sm:$0xff] %v1387
                  %v1389 = vld [vmem:[%s1253 + $0x418] sm:$0xff]
                  %1390 = vst [vmem:[%s1254 + $0x218] sm:$0xff] %v1389
                  %v1391 = vld [vmem:[%s1253 + $0x420] sm:$0xff]
                  %1392 = vst [vmem:[%s1254 + $0x220] sm:$0xff] %v1391
                  %v1393 = vld [vmem:[%s1253 + $0x428] sm:$0xff]
                  %1394 = vst [vmem:[%s1254 + $0x228] sm:$0xff] %v1393
                  %v1395 = vld [vmem:[%s1253 + $0x430] sm:$0xff]
                  %1396 = vst [vmem:[%s1254 + $0x230] sm:$0xff] %v1395
                  %v1397 = vld [vmem:[%s1253 + $0x438] sm:$0xff]
                  %1398 = vst [vmem:[%s1254 + $0x238] sm:$0xff] %v1397
                  %v1399 = vld [vmem:[%s1253 + $0x440] sm:$0xff]
                  %1400 = vst [vmem:[%s1254 + $0x240] sm:$0xff] %v1399
                  %v1401 = vld [vmem:[%s1253 + $0x448] sm:$0xff]
                  %1402 = vst [vmem:[%s1254 + $0x248] sm:$0xff] %v1401
                  %v1403 = vld [vmem:[%s1253 + $0x450] sm:$0xff]
                  %1404 = vst [vmem:[%s1254 + $0x250] sm:$0xff] %v1403
                  %v1405 = vld [vmem:[%s1253 + $0x458] sm:$0xff]
                  %1406 = vst [vmem:[%s1254 + $0x258] sm:$0xff] %v1405
                  %v1407 = vld [vmem:[%s1253 + $0x460] sm:$0xff]
                  %1408 = vst [vmem:[%s1254 + $0x260] sm:$0xff] %v1407
                  %v1409 = vld [vmem:[%s1253 + $0x468] sm:$0xff]
                  %1410 = vst [vmem:[%s1254 + $0x268] sm:$0xff] %v1409
                  %v1411 = vld [vmem:[%s1253 + $0x470] sm:$0xff]
                  %1412 = vst [vmem:[%s1254 + $0x270] sm:$0xff] %v1411
                  %v1413 = vld [vmem:[%s1253 + $0x478] sm:$0xff]
                  %1414 = vst [vmem:[%s1254 + $0x278] sm:$0xff] %v1413
                  %v1415 = vld [vmem:[%s1253 + $0x480] sm:$0xff]
                  %1416 = vst [vmem:[%s1254 + $0x280] sm:$0xff] %v1415
                  %v1417 = vld [vmem:[%s1253 + $0x488] sm:$0xff]
                  %1418 = vst [vmem:[%s1254 + $0x288] sm:$0xff] %v1417
                  %v1419 = vld [vmem:[%s1253 + $0x490] sm:$0xff]
                  %1420 = vst [vmem:[%s1254 + $0x290] sm:$0xff] %v1419
                  %v1421 = vld [vmem:[%s1253 + $0x498] sm:$0xff]
                  %1422 = vst [vmem:[%s1254 + $0x298] sm:$0xff] %v1421
                  %v1423 = vld [vmem:[%s1253 + $0x4a0] sm:$0xff]
                  %1424 = vst [vmem:[%s1254 + $0x2a0] sm:$0xff] %v1423
                  %v1425 = vld [vmem:[%s1253 + $0x4a8] sm:$0xff]
                  %1426 = vst [vmem:[%s1254 + $0x2a8] sm:$0xff] %v1425
                  %v1427 = vld [vmem:[%s1253 + $0x4b0] sm:$0xff]
                  %1428 = vst [vmem:[%s1254 + $0x2b0] sm:$0xff] %v1427
                  %v1429 = vld [vmem:[%s1253 + $0x4b8] sm:$0xff]
                  %1430 = vst [vmem:[%s1254 + $0x2b8] sm:$0xff] %v1429
                  %v1431 = vld [vmem:[%s1253 + $0x4c0] sm:$0xff]
                  %1432 = vst [vmem:[%s1254 + $0x2c0] sm:$0xff] %v1431
                  %v1433 = vld [vmem:[%s1253 + $0x4c8] sm:$0xff]
                  %1434 = vst [vmem:[%s1254 + $0x2c8] sm:$0xff] %v1433
                  %v1435 = vld [vmem:[%s1253 + $0x4d0] sm:$0xff]
                  %1436 = vst [vmem:[%s1254 + $0x2d0] sm:$0xff] %v1435
                  %v1437 = vld [vmem:[%s1253 + $0x4d8] sm:$0xff]
                  %1438 = vst [vmem:[%s1254 + $0x2d8] sm:$0xff] %v1437
                  %v1439 = vld [vmem:[%s1253 + $0x4e0] sm:$0xff]
                  %1440 = vst [vmem:[%s1254 + $0x2e0] sm:$0xff] %v1439
                  %v1441 = vld [vmem:[%s1253 + $0x4e8] sm:$0xff]
                  %1442 = vst [vmem:[%s1254 + $0x2e8] sm:$0xff] %v1441
                  %v1443 = vld [vmem:[%s1253 + $0x4f0] sm:$0xff]
                  %1444 = vst [vmem:[%s1254 + $0x2f0] sm:$0xff] %v1443
                  %v1445 = vld [vmem:[%s1253 + $0x4f8] sm:$0xff]
                  %1446 = vst [vmem:[%s1254 + $0x2f8] sm:$0xff] %v1445
                  %v1447 = vld [vmem:[%s1253 + $0x500] sm:$0xff]
                  %1448 = vst [vmem:[%s1254 + $0x300] sm:$0xff] %v1447
                  %v1449 = vld [vmem:[%s1253 + $0x508] sm:$0xff]
                  %1450 = vst [vmem:[%s1254 + $0x308] sm:$0xff] %v1449
                  %v1451 = vld [vmem:[%s1253 + $0x510] sm:$0xff]
                  %1452 = vst [vmem:[%s1254 + $0x310] sm:$0xff] %v1451
                  %v1453 = vld [vmem:[%s1253 + $0x518] sm:$0xff]
                  %1454 = vst [vmem:[%s1254 + $0x318] sm:$0xff] %v1453
                  %v1455 = vld [vmem:[%s1253 + $0x520] sm:$0xff]
                  %1456 = vst [vmem:[%s1254 + $0x320] sm:$0xff] %v1455
                  %v1457 = vld [vmem:[%s1253 + $0x528] sm:$0xff]
                  %1458 = vst [vmem:[%s1254 + $0x328] sm:$0xff] %v1457
                  %v1459 = vld [vmem:[%s1253 + $0x530] sm:$0xff]
                  %1460 = vst [vmem:[%s1254 + $0x330] sm:$0xff] %v1459
                  %v1461 = vld [vmem:[%s1253 + $0x538] sm:$0xff]
                  %1462 = vst [vmem:[%s1254 + $0x338] sm:$0xff] %v1461
                  %v1463 = vld [vmem:[%s1253 + $0x540] sm:$0xff]
                  %1464 = vst [vmem:[%s1254 + $0x340] sm:$0xff] %v1463
                  %v1465 = vld [vmem:[%s1253 + $0x548] sm:$0xff]
                  %1466 = vst [vmem:[%s1254 + $0x348] sm:$0xff] %v1465
                  %v1467 = vld [vmem:[%s1253 + $0x550] sm:$0xff]
                  %1468 = vst [vmem:[%s1254 + $0x350] sm:$0xff] %v1467
                  %v1469 = vld [vmem:[%s1253 + $0x558] sm:$0xff]
                  %1470 = vst [vmem:[%s1254 + $0x358] sm:$0xff] %v1469
                  %v1471 = vld [vmem:[%s1253 + $0x560] sm:$0xff]
                  %1472 = vst [vmem:[%s1254 + $0x360] sm:$0xff] %v1471
                  %v1473 = vld [vmem:[%s1253 + $0x568] sm:$0xff]
                  %1474 = vst [vmem:[%s1254 + $0x368] sm:$0xff] %v1473
                  %v1475 = vld [vmem:[%s1253 + $0x570] sm:$0xff]
                  %1476 = vst [vmem:[%s1254 + $0x370] sm:$0xff] %v1475
                  %v1477 = vld [vmem:[%s1253 + $0x578] sm:$0xff]
                  %1478 = vst [vmem:[%s1254 + $0x378] sm:$0xff] %v1477
                  %v1479 = vld [vmem:[%s1253 + $0x580] sm:$0xff]
                  %1480 = vst [vmem:[%s1254 + $0x380] sm:$0xff] %v1479
                  %v1481 = vld [vmem:[%s1253 + $0x588] sm:$0xff]
                  %1482 = vst [vmem:[%s1254 + $0x388] sm:$0xff] %v1481
                  %v1483 = vld [vmem:[%s1253 + $0x590] sm:$0xff]
                  %1484 = vst [vmem:[%s1254 + $0x390] sm:$0xff] %v1483
                  %v1485 = vld [vmem:[%s1253 + $0x598] sm:$0xff]
                  %1486 = vst [vmem:[%s1254 + $0x398] sm:$0xff] %v1485
                  %v1487 = vld [vmem:[%s1253 + $0x5a0] sm:$0xff]
                  %1488 = vst [vmem:[%s1254 + $0x3a0] sm:$0xff] %v1487
                  %v1489 = vld [vmem:[%s1253 + $0x5a8] sm:$0xff]
                  %1490 = vst [vmem:[%s1254 + $0x3a8] sm:$0xff] %v1489
                  %v1491 = vld [vmem:[%s1253 + $0x5b0] sm:$0xff]
                  %1492 = vst [vmem:[%s1254 + $0x3b0] sm:$0xff] %v1491
                  %v1493 = vld [vmem:[%s1253 + $0x5b8] sm:$0xff]
                  %1494 = vst [vmem:[%s1254 + $0x3b8] sm:$0xff] %v1493
                  %v1495 = vld [vmem:[%s1253 + $0x5c0] sm:$0xff]
                  %1496 = vst [vmem:[%s1254 + $0x3c0] sm:$0xff] %v1495
                  %v1497 = vld [vmem:[%s1253 + $0x5c8] sm:$0xff]
                  %1498 = vst [vmem:[%s1254 + $0x3c8] sm:$0xff] %v1497
                  %v1499 = vld [vmem:[%s1253 + $0x5d0] sm:$0xff]
                  %1500 = vst [vmem:[%s1254 + $0x3d0] sm:$0xff] %v1499
                  %v1501 = vld [vmem:[%s1253 + $0x5d8] sm:$0xff]
                  %1502 = vst [vmem:[%s1254 + $0x3d8] sm:$0xff] %v1501
                  %v1503 = vld [vmem:[%s1253 + $0x5e0] sm:$0xff]
                  %1504 = vst [vmem:[%s1254 + $0x3e0] sm:$0xff] %v1503
                  %v1505 = vld [vmem:[%s1253 + $0x5e8] sm:$0xff]
                  %1506 = vst [vmem:[%s1254 + $0x3e8] sm:$0xff] %v1505
                  %v1507 = vld [vmem:[%s1253 + $0x5f0] sm:$0xff]
                  %1508 = vst [vmem:[%s1254 + $0x3f0] sm:$0xff] %v1507
                  %v1509 = vld [vmem:[%s1253 + $0x5f8] sm:$0xff]
                  %1510 = vst [vmem:[%s1254 + $0x3f8] sm:$0xff] %v1509
                  %v1511 = vld [vmem:[%s1253 + $0x800] sm:$0xff]
                  %1512 = vst [vmem:[%s1254 + $0x400] sm:$0xff] %v1511
                  %v1513 = vld [vmem:[%s1253 + $0x808] sm:$0xff]
                  %1514 = vst [vmem:[%s1254 + $0x408] sm:$0xff] %v1513
                  %v1515 = vld [vmem:[%s1253 + $0x810] sm:$0xff]
                  %1516 = vst [vmem:[%s1254 + $0x410] sm:$0xff] %v1515
                  %v1517 = vld [vmem:[%s1253 + $0x818] sm:$0xff]
                  %1518 = vst [vmem:[%s1254 + $0x418] sm:$0xff] %v1517
                  %v1519 = vld [vmem:[%s1253 + $0x820] sm:$0xff]
                  %1520 = vst [vmem:[%s1254 + $0x420] sm:$0xff] %v1519
                  %v1521 = vld [vmem:[%s1253 + $0x828] sm:$0xff]
                  %1522 = vst [vmem:[%s1254 + $0x428] sm:$0xff] %v1521
                  %v1523 = vld [vmem:[%s1253 + $0x830] sm:$0xff]
                  %1524 = vst [vmem:[%s1254 + $0x430] sm:$0xff] %v1523
                  %v1525 = vld [vmem:[%s1253 + $0x838] sm:$0xff]
                  %1526 = vst [vmem:[%s1254 + $0x438] sm:$0xff] %v1525
                  %v1527 = vld [vmem:[%s1253 + $0x840] sm:$0xff]
                  %1528 = vst [vmem:[%s1254 + $0x440] sm:$0xff] %v1527
                  %v1529 = vld [vmem:[%s1253 + $0x848] sm:$0xff]
                  %1530 = vst [vmem:[%s1254 + $0x448] sm:$0xff] %v1529
                  %v1531 = vld [vmem:[%s1253 + $0x850] sm:$0xff]
                  %1532 = vst [vmem:[%s1254 + $0x450] sm:$0xff] %v1531
                  %v1533 = vld [vmem:[%s1253 + $0x858] sm:$0xff]
                  %1534 = vst [vmem:[%s1254 + $0x458] sm:$0xff] %v1533
                  %v1535 = vld [vmem:[%s1253 + $0x860] sm:$0xff]
                  %1536 = vst [vmem:[%s1254 + $0x460] sm:$0xff] %v1535
                  %v1537 = vld [vmem:[%s1253 + $0x868] sm:$0xff]
                  %1538 = vst [vmem:[%s1254 + $0x468] sm:$0xff] %v1537
                  %v1539 = vld [vmem:[%s1253 + $0x870] sm:$0xff]
                  %1540 = vst [vmem:[%s1254 + $0x470] sm:$0xff] %v1539
                  %v1541 = vld [vmem:[%s1253 + $0x878] sm:$0xff]
                  %1542 = vst [vmem:[%s1254 + $0x478] sm:$0xff] %v1541
                  %v1543 = vld [vmem:[%s1253 + $0x880] sm:$0xff]
                  %1544 = vst [vmem:[%s1254 + $0x480] sm:$0xff] %v1543
                  %v1545 = vld [vmem:[%s1253 + $0x888] sm:$0xff]
                  %1546 = vst [vmem:[%s1254 + $0x488] sm:$0xff] %v1545
                  %v1547 = vld [vmem:[%s1253 + $0x890] sm:$0xff]
                  %1548 = vst [vmem:[%s1254 + $0x490] sm:$0xff] %v1547
                  %v1549 = vld [vmem:[%s1253 + $0x898] sm:$0xff]
                  %1550 = vst [vmem:[%s1254 + $0x498] sm:$0xff] %v1549
                  %v1551 = vld [vmem:[%s1253 + $0x8a0] sm:$0xff]
                  %1552 = vst [vmem:[%s1254 + $0x4a0] sm:$0xff] %v1551
                  %v1553 = vld [vmem:[%s1253 + $0x8a8] sm:$0xff]
                  %1554 = vst [vmem:[%s1254 + $0x4a8] sm:$0xff] %v1553
                  %v1555 = vld [vmem:[%s1253 + $0x8b0] sm:$0xff]
                  %1556 = vst [vmem:[%s1254 + $0x4b0] sm:$0xff] %v1555
                  %v1557 = vld [vmem:[%s1253 + $0x8b8] sm:$0xff]
                  %1558 = vst [vmem:[%s1254 + $0x4b8] sm:$0xff] %v1557
                  %v1559 = vld [vmem:[%s1253 + $0x8c0] sm:$0xff]
                  %1560 = vst [vmem:[%s1254 + $0x4c0] sm:$0xff] %v1559
                  %v1561 = vld [vmem:[%s1253 + $0x8c8] sm:$0xff]
                  %1562 = vst [vmem:[%s1254 + $0x4c8] sm:$0xff] %v1561
                  %v1563 = vld [vmem:[%s1253 + $0x8d0] sm:$0xff]
                  %1564 = vst [vmem:[%s1254 + $0x4d0] sm:$0xff] %v1563
                  %v1565 = vld [vmem:[%s1253 + $0x8d8] sm:$0xff]
                  %1566 = vst [vmem:[%s1254 + $0x4d8] sm:$0xff] %v1565
                  %v1567 = vld [vmem:[%s1253 + $0x8e0] sm:$0xff]
                  %1568 = vst [vmem:[%s1254 + $0x4e0] sm:$0xff] %v1567
                  %v1569 = vld [vmem:[%s1253 + $0x8e8] sm:$0xff]
                  %1570 = vst [vmem:[%s1254 + $0x4e8] sm:$0xff] %v1569
                  %v1571 = vld [vmem:[%s1253 + $0x8f0] sm:$0xff]
                  %1572 = vst [vmem:[%s1254 + $0x4f0] sm:$0xff] %v1571
                  %v1573 = vld [vmem:[%s1253 + $0x8f8] sm:$0xff]
                  %1574 = vst [vmem:[%s1254 + $0x4f8] sm:$0xff] %v1573
                  %v1575 = vld [vmem:[%s1253 + $0x900] sm:$0xff]
                  %1576 = vst [vmem:[%s1254 + $0x500] sm:$0xff] %v1575
                  %v1577 = vld [vmem:[%s1253 + $0x908] sm:$0xff]
                  %1578 = vst [vmem:[%s1254 + $0x508] sm:$0xff] %v1577
                  %v1579 = vld [vmem:[%s1253 + $0x910] sm:$0xff]
                  %1580 = vst [vmem:[%s1254 + $0x510] sm:$0xff] %v1579
                  %v1581 = vld [vmem:[%s1253 + $0x918] sm:$0xff]
                  %1582 = vst [vmem:[%s1254 + $0x518] sm:$0xff] %v1581
                  %v1583 = vld [vmem:[%s1253 + $0x920] sm:$0xff]
                  %1584 = vst [vmem:[%s1254 + $0x520] sm:$0xff] %v1583
                  %v1585 = vld [vmem:[%s1253 + $0x928] sm:$0xff]
                  %1586 = vst [vmem:[%s1254 + $0x528] sm:$0xff] %v1585
                  %v1587 = vld [vmem:[%s1253 + $0x930] sm:$0xff]
                  %1588 = vst [vmem:[%s1254 + $0x530] sm:$0xff] %v1587
                  %v1589 = vld [vmem:[%s1253 + $0x938] sm:$0xff]
                  %1590 = vst [vmem:[%s1254 + $0x538] sm:$0xff] %v1589
                  %v1591 = vld [vmem:[%s1253 + $0x940] sm:$0xff]
                  %1592 = vst [vmem:[%s1254 + $0x540] sm:$0xff] %v1591
                  %v1593 = vld [vmem:[%s1253 + $0x948] sm:$0xff]
                  %1594 = vst [vmem:[%s1254 + $0x548] sm:$0xff] %v1593
                  %v1595 = vld [vmem:[%s1253 + $0x950] sm:$0xff]
                  %1596 = vst [vmem:[%s1254 + $0x550] sm:$0xff] %v1595
                  %v1597 = vld [vmem:[%s1253 + $0x958] sm:$0xff]
                  %1598 = vst [vmem:[%s1254 + $0x558] sm:$0xff] %v1597
                  %v1599 = vld [vmem:[%s1253 + $0x960] sm:$0xff]
                  %1600 = vst [vmem:[%s1254 + $0x560] sm:$0xff] %v1599
                  %v1601 = vld [vmem:[%s1253 + $0x968] sm:$0xff]
                  %1602 = vst [vmem:[%s1254 + $0x568] sm:$0xff] %v1601
                  %v1603 = vld [vmem:[%s1253 + $0x970] sm:$0xff]
                  %1604 = vst [vmem:[%s1254 + $0x570] sm:$0xff] %v1603
                  %v1605 = vld [vmem:[%s1253 + $0x978] sm:$0xff]
                  %1606 = vst [vmem:[%s1254 + $0x578] sm:$0xff] %v1605
                  %v1607 = vld [vmem:[%s1253 + $0x980] sm:$0xff]
                  %1608 = vst [vmem:[%s1254 + $0x580] sm:$0xff] %v1607
                  %v1609 = vld [vmem:[%s1253 + $0x988] sm:$0xff]
                  %1610 = vst [vmem:[%s1254 + $0x588] sm:$0xff] %v1609
                  %v1611 = vld [vmem:[%s1253 + $0x990] sm:$0xff]
                  %1612 = vst [vmem:[%s1254 + $0x590] sm:$0xff] %v1611
                  %v1613 = vld [vmem:[%s1253 + $0x998] sm:$0xff]
                  %1614 = vst [vmem:[%s1254 + $0x598] sm:$0xff] %v1613
                  %v1615 = vld [vmem:[%s1253 + $0x9a0] sm:$0xff]
                  %1616 = vst [vmem:[%s1254 + $0x5a0] sm:$0xff] %v1615
                  %v1617 = vld [vmem:[%s1253 + $0x9a8] sm:$0xff]
                  %1618 = vst [vmem:[%s1254 + $0x5a8] sm:$0xff] %v1617
                  %v1619 = vld [vmem:[%s1253 + $0x9b0] sm:$0xff]
                  %1620 = vst [vmem:[%s1254 + $0x5b0] sm:$0xff] %v1619
                  %v1621 = vld [vmem:[%s1253 + $0x9b8] sm:$0xff]
                  %1622 = vst [vmem:[%s1254 + $0x5b8] sm:$0xff] %v1621
                  %v1623 = vld [vmem:[%s1253 + $0x9c0] sm:$0xff]
                  %1624 = vst [vmem:[%s1254 + $0x5c0] sm:$0xff] %v1623
                  %v1625 = vld [vmem:[%s1253 + $0x9c8] sm:$0xff]
                  %1626 = vst [vmem:[%s1254 + $0x5c8] sm:$0xff] %v1625
                  %v1627 = vld [vmem:[%s1253 + $0x9d0] sm:$0xff]
                  %1628 = vst [vmem:[%s1254 + $0x5d0] sm:$0xff] %v1627
                  %v1629 = vld [vmem:[%s1253 + $0x9d8] sm:$0xff]
                  %1630 = vst [vmem:[%s1254 + $0x5d8] sm:$0xff] %v1629
                  %v1631 = vld [vmem:[%s1253 + $0x9e0] sm:$0xff]
                  %1632 = vst [vmem:[%s1254 + $0x5e0] sm:$0xff] %v1631
                  %v1633 = vld [vmem:[%s1253 + $0x9e8] sm:$0xff]
                  %1634 = vst [vmem:[%s1254 + $0x5e8] sm:$0xff] %v1633
                  %v1635 = vld [vmem:[%s1253 + $0x9f0] sm:$0xff]
                  %1636 = vst [vmem:[%s1254 + $0x5f0] sm:$0xff] %v1635
                  %v1637 = vld [vmem:[%s1253 + $0x9f8] sm:$0xff]
                  %1638 = vst [vmem:[%s1254 + $0x5f8] sm:$0xff] %v1637
                  %v1639 = vld [vmem:[%s1253 + $0xc00] sm:$0xff]
                  %1640 = vst [vmem:[%s1254 + $0x600] sm:$0xff] %v1639
                  %v1641 = vld [vmem:[%s1253 + $0xc08] sm:$0xff]
                  %1642 = vst [vmem:[%s1254 + $0x608] sm:$0xff] %v1641
                  %v1643 = vld [vmem:[%s1253 + $0xc10] sm:$0xff]
                  %1644 = vst [vmem:[%s1254 + $0x610] sm:$0xff] %v1643
                  %v1645 = vld [vmem:[%s1253 + $0xc18] sm:$0xff]
                  %1646 = vst [vmem:[%s1254 + $0x618] sm:$0xff] %v1645
                  %v1647 = vld [vmem:[%s1253 + $0xc20] sm:$0xff]
                  %1648 = vst [vmem:[%s1254 + $0x620] sm:$0xff] %v1647
                  %v1649 = vld [vmem:[%s1253 + $0xc28] sm:$0xff]
                  %1650 = vst [vmem:[%s1254 + $0x628] sm:$0xff] %v1649
                  %v1651 = vld [vmem:[%s1253 + $0xc30] sm:$0xff]
                  %1652 = vst [vmem:[%s1254 + $0x630] sm:$0xff] %v1651
                  %v1653 = vld [vmem:[%s1253 + $0xc38] sm:$0xff]
                  %1654 = vst [vmem:[%s1254 + $0x638] sm:$0xff] %v1653
                  %v1655 = vld [vmem:[%s1253 + $0xc40] sm:$0xff]
                  %1656 = vst [vmem:[%s1254 + $0x640] sm:$0xff] %v1655
                  %v1657 = vld [vmem:[%s1253 + $0xc48] sm:$0xff]
                  %1658 = vst [vmem:[%s1254 + $0x648] sm:$0xff] %v1657
                  %v1659 = vld [vmem:[%s1253 + $0xc50] sm:$0xff]
                  %1660 = vst [vmem:[%s1254 + $0x650] sm:$0xff] %v1659
                  %v1661 = vld [vmem:[%s1253 + $0xc58] sm:$0xff]
                  %1662 = vst [vmem:[%s1254 + $0x658] sm:$0xff] %v1661
                  %v1663 = vld [vmem:[%s1253 + $0xc60] sm:$0xff]
                  %1664 = vst [vmem:[%s1254 + $0x660] sm:$0xff] %v1663
                  %v1665 = vld [vmem:[%s1253 + $0xc68] sm:$0xff]
                  %1666 = vst [vmem:[%s1254 + $0x668] sm:$0xff] %v1665
                  %v1667 = vld [vmem:[%s1253 + $0xc70] sm:$0xff]
                  %1668 = vst [vmem:[%s1254 + $0x670] sm:$0xff] %v1667
                  %v1669 = vld [vmem:[%s1253 + $0xc78] sm:$0xff]
                  %1670 = vst [vmem:[%s1254 + $0x678] sm:$0xff] %v1669
                  %v1671 = vld [vmem:[%s1253 + $0xc80] sm:$0xff]
                  %1672 = vst [vmem:[%s1254 + $0x680] sm:$0xff] %v1671
                  %v1673 = vld [vmem:[%s1253 + $0xc88] sm:$0xff]
                  %1674 = vst [vmem:[%s1254 + $0x688] sm:$0xff] %v1673
                  %v1675 = vld [vmem:[%s1253 + $0xc90] sm:$0xff]
                  %1676 = vst [vmem:[%s1254 + $0x690] sm:$0xff] %v1675
                  %v1677 = vld [vmem:[%s1253 + $0xc98] sm:$0xff]
                  %1678 = vst [vmem:[%s1254 + $0x698] sm:$0xff] %v1677
                  %v1679 = vld [vmem:[%s1253 + $0xca0] sm:$0xff]
                  %1680 = vst [vmem:[%s1254 + $0x6a0] sm:$0xff] %v1679
                  %v1681 = vld [vmem:[%s1253 + $0xca8] sm:$0xff]
                  %1682 = vst [vmem:[%s1254 + $0x6a8] sm:$0xff] %v1681
                  %v1683 = vld [vmem:[%s1253 + $0xcb0] sm:$0xff]
                  %1684 = vst [vmem:[%s1254 + $0x6b0] sm:$0xff] %v1683
                  %v1685 = vld [vmem:[%s1253 + $0xcb8] sm:$0xff]
                  %1686 = vst [vmem:[%s1254 + $0x6b8] sm:$0xff] %v1685
                  %v1687 = vld [vmem:[%s1253 + $0xcc0] sm:$0xff]
                  %1688 = vst [vmem:[%s1254 + $0x6c0] sm:$0xff] %v1687
                  %v1689 = vld [vmem:[%s1253 + $0xcc8] sm:$0xff]
                  %1690 = vst [vmem:[%s1254 + $0x6c8] sm:$0xff] %v1689
                  %v1691 = vld [vmem:[%s1253 + $0xcd0] sm:$0xff]
                  %1692 = vst [vmem:[%s1254 + $0x6d0] sm:$0xff] %v1691
                  %v1693 = vld [vmem:[%s1253 + $0xcd8] sm:$0xff]
                  %1694 = vst [vmem:[%s1254 + $0x6d8] sm:$0xff] %v1693
                  %v1695 = vld [vmem:[%s1253 + $0xce0] sm:$0xff]
                  %1696 = vst [vmem:[%s1254 + $0x6e0] sm:$0xff] %v1695
                  %v1697 = vld [vmem:[%s1253 + $0xce8] sm:$0xff]
                  %1698 = vst [vmem:[%s1254 + $0x6e8] sm:$0xff] %v1697
                  %v1699 = vld [vmem:[%s1253 + $0xcf0] sm:$0xff]
                  %1700 = vst [vmem:[%s1254 + $0x6f0] sm:$0xff] %v1699
                  %v1701 = vld [vmem:[%s1253 + $0xcf8] sm:$0xff]
                  %1702 = vst [vmem:[%s1254 + $0x6f8] sm:$0xff] %v1701
                  %v1703 = vld [vmem:[%s1253 + $0xd00] sm:$0xff]
                  %1704 = vst [vmem:[%s1254 + $0x700] sm:$0xff] %v1703
                  %v1705 = vld [vmem:[%s1253 + $0xd08] sm:$0xff]
                  %1706 = vst [vmem:[%s1254 + $0x708] sm:$0xff] %v1705
                  %v1707 = vld [vmem:[%s1253 + $0xd10] sm:$0xff]
                  %1708 = vst [vmem:[%s1254 + $0x710] sm:$0xff] %v1707
                  %v1709 = vld [vmem:[%s1253 + $0xd18] sm:$0xff]
                  %1710 = vst [vmem:[%s1254 + $0x718] sm:$0xff] %v1709
                  %v1711 = vld [vmem:[%s1253 + $0xd20] sm:$0xff]
                  %1712 = vst [vmem:[%s1254 + $0x720] sm:$0xff] %v1711
                  %v1713 = vld [vmem:[%s1253 + $0xd28] sm:$0xff]
                  %1714 = vst [vmem:[%s1254 + $0x728] sm:$0xff] %v1713
                  %v1715 = vld [vmem:[%s1253 + $0xd30] sm:$0xff]
                  %1716 = vst [vmem:[%s1254 + $0x730] sm:$0xff] %v1715
                  %v1717 = vld [vmem:[%s1253 + $0xd38] sm:$0xff]
                  %1718 = vst [vmem:[%s1254 + $0x738] sm:$0xff] %v1717
                  %v1719 = vld [vmem:[%s1253 + $0xd40] sm:$0xff]
                  %1720 = vst [vmem:[%s1254 + $0x740] sm:$0xff] %v1719
                  %v1721 = vld [vmem:[%s1253 + $0xd48] sm:$0xff]
                  %1722 = vst [vmem:[%s1254 + $0x748] sm:$0xff] %v1721
                  %v1723 = vld [vmem:[%s1253 + $0xd50] sm:$0xff]
                  %1724 = vst [vmem:[%s1254 + $0x750] sm:$0xff] %v1723
                  %v1725 = vld [vmem:[%s1253 + $0xd58] sm:$0xff]
                  %1726 = vst [vmem:[%s1254 + $0x758] sm:$0xff] %v1725
                  %v1727 = vld [vmem:[%s1253 + $0xd60] sm:$0xff]
                  %1728 = vst [vmem:[%s1254 + $0x760] sm:$0xff] %v1727
                  %v1729 = vld [vmem:[%s1253 + $0xd68] sm:$0xff]
                  %1730 = vst [vmem:[%s1254 + $0x768] sm:$0xff] %v1729
                  %v1731 = vld [vmem:[%s1253 + $0xd70] sm:$0xff]
                  %1732 = vst [vmem:[%s1254 + $0x770] sm:$0xff] %v1731
                  %v1733 = vld [vmem:[%s1253 + $0xd78] sm:$0xff]
                  %1734 = vst [vmem:[%s1254 + $0x778] sm:$0xff] %v1733
                  %v1735 = vld [vmem:[%s1253 + $0xd80] sm:$0xff]
                  %1736 = vst [vmem:[%s1254 + $0x780] sm:$0xff] %v1735
                  %v1737 = vld [vmem:[%s1253 + $0xd88] sm:$0xff]
                  %1738 = vst [vmem:[%s1254 + $0x788] sm:$0xff] %v1737
                  %v1739 = vld [vmem:[%s1253 + $0xd90] sm:$0xff]
                  %1740 = vst [vmem:[%s1254 + $0x790] sm:$0xff] %v1739
                  %v1741 = vld [vmem:[%s1253 + $0xd98] sm:$0xff]
                  %1742 = vst [vmem:[%s1254 + $0x798] sm:$0xff] %v1741
                  %v1743 = vld [vmem:[%s1253 + $0xda0] sm:$0xff]
                  %1744 = vst [vmem:[%s1254 + $0x7a0] sm:$0xff] %v1743
                  %v1745 = vld [vmem:[%s1253 + $0xda8] sm:$0xff]
                  %1746 = vst [vmem:[%s1254 + $0x7a8] sm:$0xff] %v1745
                  %v1747 = vld [vmem:[%s1253 + $0xdb0] sm:$0xff]
                  %1748 = vst [vmem:[%s1254 + $0x7b0] sm:$0xff] %v1747
                  %v1749 = vld [vmem:[%s1253 + $0xdb8] sm:$0xff]
                  %1750 = vst [vmem:[%s1254 + $0x7b8] sm:$0xff] %v1749
                  %v1751 = vld [vmem:[%s1253 + $0xdc0] sm:$0xff]
                  %1752 = vst [vmem:[%s1254 + $0x7c0] sm:$0xff] %v1751
                  %v1753 = vld [vmem:[%s1253 + $0xdc8] sm:$0xff]
                  %1754 = vst [vmem:[%s1254 + $0x7c8] sm:$0xff] %v1753
                  %v1755 = vld [vmem:[%s1253 + $0xdd0] sm:$0xff]
                  %1756 = vst [vmem:[%s1254 + $0x7d0] sm:$0xff] %v1755
                  %v1757 = vld [vmem:[%s1253 + $0xdd8] sm:$0xff]
                  %1758 = vst [vmem:[%s1254 + $0x7d8] sm:$0xff] %v1757
                  %v1759 = vld [vmem:[%s1253 + $0xde0] sm:$0xff]
                  %1760 = vst [vmem:[%s1254 + $0x7e0] sm:$0xff] %v1759
                  %v1761 = vld [vmem:[%s1253 + $0xde8] sm:$0xff]
                  %1762 = vst [vmem:[%s1254 + $0x7e8] sm:$0xff] %v1761
                  %v1763 = vld [vmem:[%s1253 + $0xdf0] sm:$0xff]
                  %1764 = vst [vmem:[%s1254 + $0x7f0] sm:$0xff] %v1763
                  %v1765 = vld [vmem:[%s1253 + $0xdf8] sm:$0xff]
                  %1766 = vst [vmem:[%s1254 + $0x7f8] sm:$0xff] %v1765
                  %s1767 = sadd.s32 1, %s1252
                  %p1768 = scmp.ge.s32.totalorder %s1767, 1
                  %s1769 = scalar_select %p1768, 0, %s1767
                  %s1770 = smul.u32 %s1769, 8
                  %s1771 = smul.u32 %s1769, 8
                  %s1772 = scalar_lea.vmem %s183, %s1770
                  %s1773 = scalar_lea.vmem %s180, %s1771 [#allocation4]
                $region75: #{channel_attention_forward.1} parent=69 // loop_footer
                  %s1251 = sadd.s32 1, %s1247
                $region76: #{channel_attention_forward.1} parent=69 // loop_footer_branch
                  %1246 = sbr.rel target = $region72
                $region77: #{channel_attention_forward.1} parent=69 // loop_exit
                  _
                %s1775 = ssub.s32 1, 1
                loop: start=0, step=1, limit=1
                $region78: #{channel_attention_forward.1} parent=69 // loop_pre_header
                  _
                $region79: #{channel_attention_forward.1} parent=69 // loop_header
                  %s1777 = sphi 0, %s1781
                  %p1778 = scmp.ge.s32.totalorder %s1777, 1
                  %s1782 = sphi %s1244, %s1244
                  %s1783 = sphi %s1245, %s1245
                $region80: #{channel_attention_forward.1} parent=69 // loop_header_branch
                  %1780 = sbr.rel (%p1778) target = $region84
                $region81: #{channel_attention_forward.1} parent=69 // loop_body
                  %v1784 = vld [vmem:[%s1782] sm:%s1775]
                  %1785 = vst [vmem:[%s1783] sm:%s1775] %v1784
                  %v1786 = vld [vmem:[%s1782 + $0x8] sm:%s1775]
                  %1787 = vst [vmem:[%s1783 + $0x8] sm:%s1775] %v1786
                  %v1788 = vld [vmem:[%s1782 + $0x10] sm:%s1775]
                  %1789 = vst [vmem:[%s1783 + $0x10] sm:%s1775] %v1788
                  %v1790 = vld [vmem:[%s1782 + $0x18] sm:%s1775]
                  %1791 = vst [vmem:[%s1783 + $0x18] sm:%s1775] %v1790
                  %v1792 = vld [vmem:[%s1782 + $0x20] sm:%s1775]
                  %1793 = vst [vmem:[%s1783 + $0x20] sm:%s1775] %v1792
                  %v1794 = vld [vmem:[%s1782 + $0x28] sm:%s1775]
                  %1795 = vst [vmem:[%s1783 + $0x28] sm:%s1775] %v1794
                  %v1796 = vld [vmem:[%s1782 + $0x30] sm:%s1775]
                  %1797 = vst [vmem:[%s1783 + $0x30] sm:%s1775] %v1796
                  %v1798 = vld [vmem:[%s1782 + $0x38] sm:%s1775]
                  %1799 = vst [vmem:[%s1783 + $0x38] sm:%s1775] %v1798
                  %v1800 = vld [vmem:[%s1782 + $0x40] sm:%s1775]
                  %1801 = vst [vmem:[%s1783 + $0x40] sm:%s1775] %v1800
                  %v1802 = vld [vmem:[%s1782 + $0x48] sm:%s1775]
                  %1803 = vst [vmem:[%s1783 + $0x48] sm:%s1775] %v1802
                  %v1804 = vld [vmem:[%s1782 + $0x50] sm:%s1775]
                  %1805 = vst [vmem:[%s1783 + $0x50] sm:%s1775] %v1804
                  %v1806 = vld [vmem:[%s1782 + $0x58] sm:%s1775]
                  %1807 = vst [vmem:[%s1783 + $0x58] sm:%s1775] %v1806
                  %v1808 = vld [vmem:[%s1782 + $0x60] sm:%s1775]
                  %1809 = vst [vmem:[%s1783 + $0x60] sm:%s1775] %v1808
                  %v1810 = vld [vmem:[%s1782 + $0x68] sm:%s1775]
                  %1811 = vst [vmem:[%s1783 + $0x68] sm:%s1775] %v1810
                  %v1812 = vld [vmem:[%s1782 + $0x70] sm:%s1775]
                  %1813 = vst [vmem:[%s1783 + $0x70] sm:%s1775] %v1812
                  %v1814 = vld [vmem:[%s1782 + $0x78] sm:%s1775]
                  %1815 = vst [vmem:[%s1783 + $0x78] sm:%s1775] %v1814
                  %v1816 = vld [vmem:[%s1782 + $0x80] sm:%s1775]
                  %1817 = vst [vmem:[%s1783 + $0x80] sm:%s1775] %v1816
                  %v1818 = vld [vmem:[%s1782 + $0x88] sm:%s1775]
                  %1819 = vst [vmem:[%s1783 + $0x88] sm:%s1775] %v1818
                  %v1820 = vld [vmem:[%s1782 + $0x90] sm:%s1775]
                  %1821 = vst [vmem:[%s1783 + $0x90] sm:%s1775] %v1820
                  %v1822 = vld [vmem:[%s1782 + $0x98] sm:%s1775]
                  %1823 = vst [vmem:[%s1783 + $0x98] sm:%s1775] %v1822
                  %v1824 = vld [vmem:[%s1782 + $0xa0] sm:%s1775]
                  %1825 = vst [vmem:[%s1783 + $0xa0] sm:%s1775] %v1824
                  %v1826 = vld [vmem:[%s1782 + $0xa8] sm:%s1775]
                  %1827 = vst [vmem:[%s1783 + $0xa8] sm:%s1775] %v1826
                  %v1828 = vld [vmem:[%s1782 + $0xb0] sm:%s1775]
                  %1829 = vst [vmem:[%s1783 + $0xb0] sm:%s1775] %v1828
                  %v1830 = vld [vmem:[%s1782 + $0xb8] sm:%s1775]
                  %1831 = vst [vmem:[%s1783 + $0xb8] sm:%s1775] %v1830
                  %v1832 = vld [vmem:[%s1782 + $0xc0] sm:%s1775]
                  %1833 = vst [vmem:[%s1783 + $0xc0] sm:%s1775] %v1832
                  %v1834 = vld [vmem:[%s1782 + $0xc8] sm:%s1775]
                  %1835 = vst [vmem:[%s1783 + $0xc8] sm:%s1775] %v1834
                  %v1836 = vld [vmem:[%s1782 + $0xd0] sm:%s1775]
                  %1837 = vst [vmem:[%s1783 + $0xd0] sm:%s1775] %v1836
                  %v1838 = vld [vmem:[%s1782 + $0xd8] sm:%s1775]
                  %1839 = vst [vmem:[%s1783 + $0xd8] sm:%s1775] %v1838
                  %v1840 = vld [vmem:[%s1782 + $0xe0] sm:%s1775]
                  %1841 = vst [vmem:[%s1783 + $0xe0] sm:%s1775] %v1840
                  %v1842 = vld [vmem:[%s1782 + $0xe8] sm:%s1775]
                  %1843 = vst [vmem:[%s1783 + $0xe8] sm:%s1775] %v1842
                  %v1844 = vld [vmem:[%s1782 + $0xf0] sm:%s1775]
                  %1845 = vst [vmem:[%s1783 + $0xf0] sm:%s1775] %v1844
                  %v1846 = vld [vmem:[%s1782 + $0xf8] sm:%s1775]
                  %1847 = vst [vmem:[%s1783 + $0xf8] sm:%s1775] %v1846
                  %v1848 = vld [vmem:[%s1782 + $0x100] sm:%s1775]
                  %1849 = vst [vmem:[%s1783 + $0x100] sm:%s1775] %v1848
                  %v1850 = vld [vmem:[%s1782 + $0x108] sm:%s1775]
                  %1851 = vst [vmem:[%s1783 + $0x108] sm:%s1775] %v1850
                  %v1852 = vld [vmem:[%s1782 + $0x110] sm:%s1775]
                  %1853 = vst [vmem:[%s1783 + $0x110] sm:%s1775] %v1852
                  %v1854 = vld [vmem:[%s1782 + $0x118] sm:%s1775]
                  %1855 = vst [vmem:[%s1783 + $0x118] sm:%s1775] %v1854
                  %v1856 = vld [vmem:[%s1782 + $0x120] sm:%s1775]
                  %1857 = vst [vmem:[%s1783 + $0x120] sm:%s1775] %v1856
                  %v1858 = vld [vmem:[%s1782 + $0x128] sm:%s1775]
                  %1859 = vst [vmem:[%s1783 + $0x128] sm:%s1775] %v1858
                  %v1860 = vld [vmem:[%s1782 + $0x130] sm:%s1775]
                  %1861 = vst [vmem:[%s1783 + $0x130] sm:%s1775] %v1860
                  %v1862 = vld [vmem:[%s1782 + $0x138] sm:%s1775]
                  %1863 = vst [vmem:[%s1783 + $0x138] sm:%s1775] %v1862
                  %v1864 = vld [vmem:[%s1782 + $0x140] sm:%s1775]
                  %1865 = vst [vmem:[%s1783 + $0x140] sm:%s1775] %v1864
                  %v1866 = vld [vmem:[%s1782 + $0x148] sm:%s1775]
                  %1867 = vst [vmem:[%s1783 + $0x148] sm:%s1775] %v1866
                  %v1868 = vld [vmem:[%s1782 + $0x150] sm:%s1775]
                  %1869 = vst [vmem:[%s1783 + $0x150] sm:%s1775] %v1868
                  %v1870 = vld [vmem:[%s1782 + $0x158] sm:%s1775]
                  %1871 = vst [vmem:[%s1783 + $0x158] sm:%s1775] %v1870
                  %v1872 = vld [vmem:[%s1782 + $0x160] sm:%s1775]
                  %1873 = vst [vmem:[%s1783 + $0x160] sm:%s1775] %v1872
                  %v1874 = vld [vmem:[%s1782 + $0x168] sm:%s1775]
                  %1875 = vst [vmem:[%s1783 + $0x168] sm:%s1775] %v1874
                  %v1876 = vld [vmem:[%s1782 + $0x170] sm:%s1775]
                  %1877 = vst [vmem:[%s1783 + $0x170] sm:%s1775] %v1876
                  %v1878 = vld [vmem:[%s1782 + $0x178] sm:%s1775]
                  %1879 = vst [vmem:[%s1783 + $0x178] sm:%s1775] %v1878
                  %v1880 = vld [vmem:[%s1782 + $0x180] sm:%s1775]
                  %1881 = vst [vmem:[%s1783 + $0x180] sm:%s1775] %v1880
                  %v1882 = vld [vmem:[%s1782 + $0x188] sm:%s1775]
                  %1883 = vst [vmem:[%s1783 + $0x188] sm:%s1775] %v1882
                  %v1884 = vld [vmem:[%s1782 + $0x190] sm:%s1775]
                  %1885 = vst [vmem:[%s1783 + $0x190] sm:%s1775] %v1884
                  %v1886 = vld [vmem:[%s1782 + $0x198] sm:%s1775]
                  %1887 = vst [vmem:[%s1783 + $0x198] sm:%s1775] %v1886
                  %v1888 = vld [vmem:[%s1782 + $0x1a0] sm:%s1775]
                  %1889 = vst [vmem:[%s1783 + $0x1a0] sm:%s1775] %v1888
                  %v1890 = vld [vmem:[%s1782 + $0x1a8] sm:%s1775]
                  %1891 = vst [vmem:[%s1783 + $0x1a8] sm:%s1775] %v1890
                  %v1892 = vld [vmem:[%s1782 + $0x1b0] sm:%s1775]
                  %1893 = vst [vmem:[%s1783 + $0x1b0] sm:%s1775] %v1892
                  %v1894 = vld [vmem:[%s1782 + $0x1b8] sm:%s1775]
                  %1895 = vst [vmem:[%s1783 + $0x1b8] sm:%s1775] %v1894
                  %v1896 = vld [vmem:[%s1782 + $0x1c0] sm:%s1775]
                  %1897 = vst [vmem:[%s1783 + $0x1c0] sm:%s1775] %v1896
                  %v1898 = vld [vmem:[%s1782 + $0x1c8] sm:%s1775]
                  %1899 = vst [vmem:[%s1783 + $0x1c8] sm:%s1775] %v1898
                  %v1900 = vld [vmem:[%s1782 + $0x1d0] sm:%s1775]
                  %1901 = vst [vmem:[%s1783 + $0x1d0] sm:%s1775] %v1900
                  %v1902 = vld [vmem:[%s1782 + $0x1d8] sm:%s1775]
                  %1903 = vst [vmem:[%s1783 + $0x1d8] sm:%s1775] %v1902
                  %v1904 = vld [vmem:[%s1782 + $0x1e0] sm:%s1775]
                  %1905 = vst [vmem:[%s1783 + $0x1e0] sm:%s1775] %v1904
                  %v1906 = vld [vmem:[%s1782 + $0x1e8] sm:%s1775]
                  %1907 = vst [vmem:[%s1783 + $0x1e8] sm:%s1775] %v1906
                  %v1908 = vld [vmem:[%s1782 + $0x1f0] sm:%s1775]
                  %1909 = vst [vmem:[%s1783 + $0x1f0] sm:%s1775] %v1908
                  %v1910 = vld [vmem:[%s1782 + $0x1f8] sm:%s1775]
                  %1911 = vst [vmem:[%s1783 + $0x1f8] sm:%s1775] %v1910
                  %v1912 = vld [vmem:[%s1782 + $0x400] sm:%s1775]
                  %1913 = vst [vmem:[%s1783 + $0x200] sm:%s1775] %v1912
                  %v1914 = vld [vmem:[%s1782 + $0x408] sm:%s1775]
                  %1915 = vst [vmem:[%s1783 + $0x208] sm:%s1775] %v1914
                  %v1916 = vld [vmem:[%s1782 + $0x410] sm:%s1775]
                  %1917 = vst [vmem:[%s1783 + $0x210] sm:%s1775] %v1916
                  %v1918 = vld [vmem:[%s1782 + $0x418] sm:%s1775]
                  %1919 = vst [vmem:[%s1783 + $0x218] sm:%s1775] %v1918
                  %v1920 = vld [vmem:[%s1782 + $0x420] sm:%s1775]
                  %1921 = vst [vmem:[%s1783 + $0x220] sm:%s1775] %v1920
                  %v1922 = vld [vmem:[%s1782 + $0x428] sm:%s1775]
                  %1923 = vst [vmem:[%s1783 + $0x228] sm:%s1775] %v1922
                  %v1924 = vld [vmem:[%s1782 + $0x430] sm:%s1775]
                  %1925 = vst [vmem:[%s1783 + $0x230] sm:%s1775] %v1924
                  %v1926 = vld [vmem:[%s1782 + $0x438] sm:%s1775]
                  %1927 = vst [vmem:[%s1783 + $0x238] sm:%s1775] %v1926
                  %v1928 = vld [vmem:[%s1782 + $0x440] sm:%s1775]
                  %1929 = vst [vmem:[%s1783 + $0x240] sm:%s1775] %v1928
                  %v1930 = vld [vmem:[%s1782 + $0x448] sm:%s1775]
                  %1931 = vst [vmem:[%s1783 + $0x248] sm:%s1775] %v1930
                  %v1932 = vld [vmem:[%s1782 + $0x450] sm:%s1775]
                  %1933 = vst [vmem:[%s1783 + $0x250] sm:%s1775] %v1932
                  %v1934 = vld [vmem:[%s1782 + $0x458] sm:%s1775]
                  %1935 = vst [vmem:[%s1783 + $0x258] sm:%s1775] %v1934
                  %v1936 = vld [vmem:[%s1782 + $0x460] sm:%s1775]
                  %1937 = vst [vmem:[%s1783 + $0x260] sm:%s1775] %v1936
                  %v1938 = vld [vmem:[%s1782 + $0x468] sm:%s1775]
                  %1939 = vst [vmem:[%s1783 + $0x268] sm:%s1775] %v1938
                  %v1940 = vld [vmem:[%s1782 + $0x470] sm:%s1775]
                  %1941 = vst [vmem:[%s1783 + $0x270] sm:%s1775] %v1940
                  %v1942 = vld [vmem:[%s1782 + $0x478] sm:%s1775]
                  %1943 = vst [vmem:[%s1783 + $0x278] sm:%s1775] %v1942
                  %v1944 = vld [vmem:[%s1782 + $0x480] sm:%s1775]
                  %1945 = vst [vmem:[%s1783 + $0x280] sm:%s1775] %v1944
                  %v1946 = vld [vmem:[%s1782 + $0x488] sm:%s1775]
                  %1947 = vst [vmem:[%s1783 + $0x288] sm:%s1775] %v1946
                  %v1948 = vld [vmem:[%s1782 + $0x490] sm:%s1775]
                  %1949 = vst [vmem:[%s1783 + $0x290] sm:%s1775] %v1948
                  %v1950 = vld [vmem:[%s1782 + $0x498] sm:%s1775]
                  %1951 = vst [vmem:[%s1783 + $0x298] sm:%s1775] %v1950
                  %v1952 = vld [vmem:[%s1782 + $0x4a0] sm:%s1775]
                  %1953 = vst [vmem:[%s1783 + $0x2a0] sm:%s1775] %v1952
                  %v1954 = vld [vmem:[%s1782 + $0x4a8] sm:%s1775]
                  %1955 = vst [vmem:[%s1783 + $0x2a8] sm:%s1775] %v1954
                  %v1956 = vld [vmem:[%s1782 + $0x4b0] sm:%s1775]
                  %1957 = vst [vmem:[%s1783 + $0x2b0] sm:%s1775] %v1956
                  %v1958 = vld [vmem:[%s1782 + $0x4b8] sm:%s1775]
                  %1959 = vst [vmem:[%s1783 + $0x2b8] sm:%s1775] %v1958
                  %v1960 = vld [vmem:[%s1782 + $0x4c0] sm:%s1775]
                  %1961 = vst [vmem:[%s1783 + $0x2c0] sm:%s1775] %v1960
                  %v1962 = vld [vmem:[%s1782 + $0x4c8] sm:%s1775]
                  %1963 = vst [vmem:[%s1783 + $0x2c8] sm:%s1775] %v1962
                  %v1964 = vld [vmem:[%s1782 + $0x4d0] sm:%s1775]
                  %1965 = vst [vmem:[%s1783 + $0x2d0] sm:%s1775] %v1964
                  %v1966 = vld [vmem:[%s1782 + $0x4d8] sm:%s1775]
                  %1967 = vst [vmem:[%s1783 + $0x2d8] sm:%s1775] %v1966
                  %v1968 = vld [vmem:[%s1782 + $0x4e0] sm:%s1775]
                  %1969 = vst [vmem:[%s1783 + $0x2e0] sm:%s1775] %v1968
                  %v1970 = vld [vmem:[%s1782 + $0x4e8] sm:%s1775]
                  %1971 = vst [vmem:[%s1783 + $0x2e8] sm:%s1775] %v1970
                  %v1972 = vld [vmem:[%s1782 + $0x4f0] sm:%s1775]
                  %1973 = vst [vmem:[%s1783 + $0x2f0] sm:%s1775] %v1972
                  %v1974 = vld [vmem:[%s1782 + $0x4f8] sm:%s1775]
                  %1975 = vst [vmem:[%s1783 + $0x2f8] sm:%s1775] %v1974
                  %v1976 = vld [vmem:[%s1782 + $0x500] sm:%s1775]
                  %1977 = vst [vmem:[%s1783 + $0x300] sm:%s1775] %v1976
                  %v1978 = vld [vmem:[%s1782 + $0x508] sm:%s1775]
                  %1979 = vst [vmem:[%s1783 + $0x308] sm:%s1775] %v1978
                  %v1980 = vld [vmem:[%s1782 + $0x510] sm:%s1775]
                  %1981 = vst [vmem:[%s1783 + $0x310] sm:%s1775] %v1980
                  %v1982 = vld [vmem:[%s1782 + $0x518] sm:%s1775]
                  %1983 = vst [vmem:[%s1783 + $0x318] sm:%s1775] %v1982
                  %v1984 = vld [vmem:[%s1782 + $0x520] sm:%s1775]
                  %1985 = vst [vmem:[%s1783 + $0x320] sm:%s1775] %v1984
                  %v1986 = vld [vmem:[%s1782 + $0x528] sm:%s1775]
                  %1987 = vst [vmem:[%s1783 + $0x328] sm:%s1775] %v1986
                  %v1988 = vld [vmem:[%s1782 + $0x530] sm:%s1775]
                  %1989 = vst [vmem:[%s1783 + $0x330] sm:%s1775] %v1988
                  %v1990 = vld [vmem:[%s1782 + $0x538] sm:%s1775]
                  %1991 = vst [vmem:[%s1783 + $0x338] sm:%s1775] %v1990
                  %v1992 = vld [vmem:[%s1782 + $0x540] sm:%s1775]
                  %1993 = vst [vmem:[%s1783 + $0x340] sm:%s1775] %v1992
                  %v1994 = vld [vmem:[%s1782 + $0x548] sm:%s1775]
                  %1995 = vst [vmem:[%s1783 + $0x348] sm:%s1775] %v1994
                  %v1996 = vld [vmem:[%s1782 + $0x550] sm:%s1775]
                  %1997 = vst [vmem:[%s1783 + $0x350] sm:%s1775] %v1996
                  %v1998 = vld [vmem:[%s1782 + $0x558] sm:%s1775]
                  %1999 = vst [vmem:[%s1783 + $0x358] sm:%s1775] %v1998
                  %v2000 = vld [vmem:[%s1782 + $0x560] sm:%s1775]
                  %2001 = vst [vmem:[%s1783 + $0x360] sm:%s1775] %v2000
                  %v2002 = vld [vmem:[%s1782 + $0x568] sm:%s1775]
                  %2003 = vst [vmem:[%s1783 + $0x368] sm:%s1775] %v2002
                  %v2004 = vld [vmem:[%s1782 + $0x570] sm:%s1775]
                  %2005 = vst [vmem:[%s1783 + $0x370] sm:%s1775] %v2004
                  %v2006 = vld [vmem:[%s1782 + $0x578] sm:%s1775]
                  %2007 = vst [vmem:[%s1783 + $0x378] sm:%s1775] %v2006
                  %v2008 = vld [vmem:[%s1782 + $0x580] sm:%s1775]
                  %2009 = vst [vmem:[%s1783 + $0x380] sm:%s1775] %v2008
                  %v2010 = vld [vmem:[%s1782 + $0x588] sm:%s1775]
                  %2011 = vst [vmem:[%s1783 + $0x388] sm:%s1775] %v2010
                  %v2012 = vld [vmem:[%s1782 + $0x590] sm:%s1775]
                  %2013 = vst [vmem:[%s1783 + $0x390] sm:%s1775] %v2012
                  %v2014 = vld [vmem:[%s1782 + $0x598] sm:%s1775]
                  %2015 = vst [vmem:[%s1783 + $0x398] sm:%s1775] %v2014
                  %v2016 = vld [vmem:[%s1782 + $0x5a0] sm:%s1775]
                  %2017 = vst [vmem:[%s1783 + $0x3a0] sm:%s1775] %v2016
                  %v2018 = vld [vmem:[%s1782 + $0x5a8] sm:%s1775]
                  %2019 = vst [vmem:[%s1783 + $0x3a8] sm:%s1775] %v2018
                  %v2020 = vld [vmem:[%s1782 + $0x5b0] sm:%s1775]
                  %2021 = vst [vmem:[%s1783 + $0x3b0] sm:%s1775] %v2020
                  %v2022 = vld [vmem:[%s1782 + $0x5b8] sm:%s1775]
                  %2023 = vst [vmem:[%s1783 + $0x3b8] sm:%s1775] %v2022
                  %v2024 = vld [vmem:[%s1782 + $0x5c0] sm:%s1775]
                  %2025 = vst [vmem:[%s1783 + $0x3c0] sm:%s1775] %v2024
                  %v2026 = vld [vmem:[%s1782 + $0x5c8] sm:%s1775]
                  %2027 = vst [vmem:[%s1783 + $0x3c8] sm:%s1775] %v2026
                  %v2028 = vld [vmem:[%s1782 + $0x5d0] sm:%s1775]
                  %2029 = vst [vmem:[%s1783 + $0x3d0] sm:%s1775] %v2028
                  %v2030 = vld [vmem:[%s1782 + $0x5d8] sm:%s1775]
                  %2031 = vst [vmem:[%s1783 + $0x3d8] sm:%s1775] %v2030
                  %v2032 = vld [vmem:[%s1782 + $0x5e0] sm:%s1775]
                  %2033 = vst [vmem:[%s1783 + $0x3e0] sm:%s1775] %v2032
                  %v2034 = vld [vmem:[%s1782 + $0x5e8] sm:%s1775]
                  %2035 = vst [vmem:[%s1783 + $0x3e8] sm:%s1775] %v2034
                  %v2036 = vld [vmem:[%s1782 + $0x5f0] sm:%s1775]
                  %2037 = vst [vmem:[%s1783 + $0x3f0] sm:%s1775] %v2036
                  %v2038 = vld [vmem:[%s1782 + $0x5f8] sm:%s1775]
                  %2039 = vst [vmem:[%s1783 + $0x3f8] sm:%s1775] %v2038
                  %v2040 = vld [vmem:[%s1782 + $0x800] sm:%s1775]
                  %2041 = vst [vmem:[%s1783 + $0x400] sm:%s1775] %v2040
                  %v2042 = vld [vmem:[%s1782 + $0x808] sm:%s1775]
                  %2043 = vst [vmem:[%s1783 + $0x408] sm:%s1775] %v2042
                  %v2044 = vld [vmem:[%s1782 + $0x810] sm:%s1775]
                  %2045 = vst [vmem:[%s1783 + $0x410] sm:%s1775] %v2044
                  %v2046 = vld [vmem:[%s1782 + $0x818] sm:%s1775]
                  %2047 = vst [vmem:[%s1783 + $0x418] sm:%s1775] %v2046
                  %v2048 = vld [vmem:[%s1782 + $0x820] sm:%s1775]
                  %2049 = vst [vmem:[%s1783 + $0x420] sm:%s1775] %v2048
                  %v2050 = vld [vmem:[%s1782 + $0x828] sm:%s1775]
                  %2051 = vst [vmem:[%s1783 + $0x428] sm:%s1775] %v2050
                  %v2052 = vld [vmem:[%s1782 + $0x830] sm:%s1775]
                  %2053 = vst [vmem:[%s1783 + $0x430] sm:%s1775] %v2052
                  %v2054 = vld [vmem:[%s1782 + $0x838] sm:%s1775]
                  %2055 = vst [vmem:[%s1783 + $0x438] sm:%s1775] %v2054
                  %v2056 = vld [vmem:[%s1782 + $0x840] sm:%s1775]
                  %2057 = vst [vmem:[%s1783 + $0x440] sm:%s1775] %v2056
                  %v2058 = vld [vmem:[%s1782 + $0x848] sm:%s1775]
                  %2059 = vst [vmem:[%s1783 + $0x448] sm:%s1775] %v2058
                  %v2060 = vld [vmem:[%s1782 + $0x850] sm:%s1775]
                  %2061 = vst [vmem:[%s1783 + $0x450] sm:%s1775] %v2060
                  %v2062 = vld [vmem:[%s1782 + $0x858] sm:%s1775]
                  %2063 = vst [vmem:[%s1783 + $0x458] sm:%s1775] %v2062
                  %v2064 = vld [vmem:[%s1782 + $0x860] sm:%s1775]
                  %2065 = vst [vmem:[%s1783 + $0x460] sm:%s1775] %v2064
                  %v2066 = vld [vmem:[%s1782 + $0x868] sm:%s1775]
                  %2067 = vst [vmem:[%s1783 + $0x468] sm:%s1775] %v2066
                  %v2068 = vld [vmem:[%s1782 + $0x870] sm:%s1775]
                  %2069 = vst [vmem:[%s1783 + $0x470] sm:%s1775] %v2068
                  %v2070 = vld [vmem:[%s1782 + $0x878] sm:%s1775]
                  %2071 = vst [vmem:[%s1783 + $0x478] sm:%s1775] %v2070
                  %v2072 = vld [vmem:[%s1782 + $0x880] sm:%s1775]
                  %2073 = vst [vmem:[%s1783 + $0x480] sm:%s1775] %v2072
                  %v2074 = vld [vmem:[%s1782 + $0x888] sm:%s1775]
                  %2075 = vst [vmem:[%s1783 + $0x488] sm:%s1775] %v2074
                  %v2076 = vld [vmem:[%s1782 + $0x890] sm:%s1775]
                  %2077 = vst [vmem:[%s1783 + $0x490] sm:%s1775] %v2076
                  %v2078 = vld [vmem:[%s1782 + $0x898] sm:%s1775]
                  %2079 = vst [vmem:[%s1783 + $0x498] sm:%s1775] %v2078
                  %v2080 = vld [vmem:[%s1782 + $0x8a0] sm:%s1775]
                  %2081 = vst [vmem:[%s1783 + $0x4a0] sm:%s1775] %v2080
                  %v2082 = vld [vmem:[%s1782 + $0x8a8] sm:%s1775]
                  %2083 = vst [vmem:[%s1783 + $0x4a8] sm:%s1775] %v2082
                  %v2084 = vld [vmem:[%s1782 + $0x8b0] sm:%s1775]
                  %2085 = vst [vmem:[%s1783 + $0x4b0] sm:%s1775] %v2084
                  %v2086 = vld [vmem:[%s1782 + $0x8b8] sm:%s1775]
                  %2087 = vst [vmem:[%s1783 + $0x4b8] sm:%s1775] %v2086
                  %v2088 = vld [vmem:[%s1782 + $0x8c0] sm:%s1775]
                  %2089 = vst [vmem:[%s1783 + $0x4c0] sm:%s1775] %v2088
                  %v2090 = vld [vmem:[%s1782 + $0x8c8] sm:%s1775]
                  %2091 = vst [vmem:[%s1783 + $0x4c8] sm:%s1775] %v2090
                  %v2092 = vld [vmem:[%s1782 + $0x8d0] sm:%s1775]
                  %2093 = vst [vmem:[%s1783 + $0x4d0] sm:%s1775] %v2092
                  %v2094 = vld [vmem:[%s1782 + $0x8d8] sm:%s1775]
                  %2095 = vst [vmem:[%s1783 + $0x4d8] sm:%s1775] %v2094
                  %v2096 = vld [vmem:[%s1782 + $0x8e0] sm:%s1775]
                  %2097 = vst [vmem:[%s1783 + $0x4e0] sm:%s1775] %v2096
                  %v2098 = vld [vmem:[%s1782 + $0x8e8] sm:%s1775]
                  %2099 = vst [vmem:[%s1783 + $0x4e8] sm:%s1775] %v2098
                  %v2100 = vld [vmem:[%s1782 + $0x8f0] sm:%s1775]
                  %2101 = vst [vmem:[%s1783 + $0x4f0] sm:%s1775] %v2100
                  %v2102 = vld [vmem:[%s1782 + $0x8f8] sm:%s1775]
                  %2103 = vst [vmem:[%s1783 + $0x4f8] sm:%s1775] %v2102
                  %v2104 = vld [vmem:[%s1782 + $0x900] sm:%s1775]
                  %2105 = vst [vmem:[%s1783 + $0x500] sm:%s1775] %v2104
                  %v2106 = vld [vmem:[%s1782 + $0x908] sm:%s1775]
                  %2107 = vst [vmem:[%s1783 + $0x508] sm:%s1775] %v2106
                  %v2108 = vld [vmem:[%s1782 + $0x910] sm:%s1775]
                  %2109 = vst [vmem:[%s1783 + $0x510] sm:%s1775] %v2108
                  %v2110 = vld [vmem:[%s1782 + $0x918] sm:%s1775]
                  %2111 = vst [vmem:[%s1783 + $0x518] sm:%s1775] %v2110
                  %v2112 = vld [vmem:[%s1782 + $0x920] sm:%s1775]
                  %2113 = vst [vmem:[%s1783 + $0x520] sm:%s1775] %v2112
                  %v2114 = vld [vmem:[%s1782 + $0x928] sm:%s1775]
                  %2115 = vst [vmem:[%s1783 + $0x528] sm:%s1775] %v2114
                  %v2116 = vld [vmem:[%s1782 + $0x930] sm:%s1775]
                  %2117 = vst [vmem:[%s1783 + $0x530] sm:%s1775] %v2116
                  %v2118 = vld [vmem:[%s1782 + $0x938] sm:%s1775]
                  %2119 = vst [vmem:[%s1783 + $0x538] sm:%s1775] %v2118
                  %v2120 = vld [vmem:[%s1782 + $0x940] sm:%s1775]
                  %2121 = vst [vmem:[%s1783 + $0x540] sm:%s1775] %v2120
                  %v2122 = vld [vmem:[%s1782 + $0x948] sm:%s1775]
                  %2123 = vst [vmem:[%s1783 + $0x548] sm:%s1775] %v2122
                  %v2124 = vld [vmem:[%s1782 + $0x950] sm:%s1775]
                  %2125 = vst [vmem:[%s1783 + $0x550] sm:%s1775] %v2124
                  %v2126 = vld [vmem:[%s1782 + $0x958] sm:%s1775]
                  %2127 = vst [vmem:[%s1783 + $0x558] sm:%s1775] %v2126
                  %v2128 = vld [vmem:[%s1782 + $0x960] sm:%s1775]
                  %2129 = vst [vmem:[%s1783 + $0x560] sm:%s1775] %v2128
                  %v2130 = vld [vmem:[%s1782 + $0x968] sm:%s1775]
                  %2131 = vst [vmem:[%s1783 + $0x568] sm:%s1775] %v2130
                  %v2132 = vld [vmem:[%s1782 + $0x970] sm:%s1775]
                  %2133 = vst [vmem:[%s1783 + $0x570] sm:%s1775] %v2132
                  %v2134 = vld [vmem:[%s1782 + $0x978] sm:%s1775]
                  %2135 = vst [vmem:[%s1783 + $0x578] sm:%s1775] %v2134
                  %v2136 = vld [vmem:[%s1782 + $0x980] sm:%s1775]
                  %2137 = vst [vmem:[%s1783 + $0x580] sm:%s1775] %v2136
                  %v2138 = vld [vmem:[%s1782 + $0x988] sm:%s1775]
                  %2139 = vst [vmem:[%s1783 + $0x588] sm:%s1775] %v2138
                  %v2140 = vld [vmem:[%s1782 + $0x990] sm:%s1775]
                  %2141 = vst [vmem:[%s1783 + $0x590] sm:%s1775] %v2140
                  %v2142 = vld [vmem:[%s1782 + $0x998] sm:%s1775]
                  %2143 = vst [vmem:[%s1783 + $0x598] sm:%s1775] %v2142
                  %v2144 = vld [vmem:[%s1782 + $0x9a0] sm:%s1775]
                  %2145 = vst [vmem:[%s1783 + $0x5a0] sm:%s1775] %v2144
                  %v2146 = vld [vmem:[%s1782 + $0x9a8] sm:%s1775]
                  %2147 = vst [vmem:[%s1783 + $0x5a8] sm:%s1775] %v2146
                  %v2148 = vld [vmem:[%s1782 + $0x9b0] sm:%s1775]
                  %2149 = vst [vmem:[%s1783 + $0x5b0] sm:%s1775] %v2148
                  %v2150 = vld [vmem:[%s1782 + $0x9b8] sm:%s1775]
                  %2151 = vst [vmem:[%s1783 + $0x5b8] sm:%s1775] %v2150
                  %v2152 = vld [vmem:[%s1782 + $0x9c0] sm:%s1775]
                  %2153 = vst [vmem:[%s1783 + $0x5c0] sm:%s1775] %v2152
                  %v2154 = vld [vmem:[%s1782 + $0x9c8] sm:%s1775]
                  %2155 = vst [vmem:[%s1783 + $0x5c8] sm:%s1775] %v2154
                  %v2156 = vld [vmem:[%s1782 + $0x9d0] sm:%s1775]
                  %2157 = vst [vmem:[%s1783 + $0x5d0] sm:%s1775] %v2156
                  %v2158 = vld [vmem:[%s1782 + $0x9d8] sm:%s1775]
                  %2159 = vst [vmem:[%s1783 + $0x5d8] sm:%s1775] %v2158
                  %v2160 = vld [vmem:[%s1782 + $0x9e0] sm:%s1775]
                  %2161 = vst [vmem:[%s1783 + $0x5e0] sm:%s1775] %v2160
                  %v2162 = vld [vmem:[%s1782 + $0x9e8] sm:%s1775]
                  %2163 = vst [vmem:[%s1783 + $0x5e8] sm:%s1775] %v2162
                  %v2164 = vld [vmem:[%s1782 + $0x9f0] sm:%s1775]
                  %2165 = vst [vmem:[%s1783 + $0x5f0] sm:%s1775] %v2164
                  %v2166 = vld [vmem:[%s1782 + $0x9f8] sm:%s1775]
                  %2167 = vst [vmem:[%s1783 + $0x5f8] sm:%s1775] %v2166
                  %v2168 = vld [vmem:[%s1782 + $0xc00] sm:%s1775]
                  %2169 = vst [vmem:[%s1783 + $0x600] sm:%s1775] %v2168
                  %v2170 = vld [vmem:[%s1782 + $0xc08] sm:%s1775]
                  %2171 = vst [vmem:[%s1783 + $0x608] sm:%s1775] %v2170
                  %v2172 = vld [vmem:[%s1782 + $0xc10] sm:%s1775]
                  %2173 = vst [vmem:[%s1783 + $0x610] sm:%s1775] %v2172
                  %v2174 = vld [vmem:[%s1782 + $0xc18] sm:%s1775]
                  %2175 = vst [vmem:[%s1783 + $0x618] sm:%s1775] %v2174
                  %v2176 = vld [vmem:[%s1782 + $0xc20] sm:%s1775]
                  %2177 = vst [vmem:[%s1783 + $0x620] sm:%s1775] %v2176
                  %v2178 = vld [vmem:[%s1782 + $0xc28] sm:%s1775]
                  %2179 = vst [vmem:[%s1783 + $0x628] sm:%s1775] %v2178
                  %v2180 = vld [vmem:[%s1782 + $0xc30] sm:%s1775]
                  %2181 = vst [vmem:[%s1783 + $0x630] sm:%s1775] %v2180
                  %v2182 = vld [vmem:[%s1782 + $0xc38] sm:%s1775]
                  %2183 = vst [vmem:[%s1783 + $0x638] sm:%s1775] %v2182
                  %v2184 = vld [vmem:[%s1782 + $0xc40] sm:%s1775]
                  %2185 = vst [vmem:[%s1783 + $0x640] sm:%s1775] %v2184
                  %v2186 = vld [vmem:[%s1782 + $0xc48] sm:%s1775]
                  %2187 = vst [vmem:[%s1783 + $0x648] sm:%s1775] %v2186
                  %v2188 = vld [vmem:[%s1782 + $0xc50] sm:%s1775]
                  %2189 = vst [vmem:[%s1783 + $0x650] sm:%s1775] %v2188
                  %v2190 = vld [vmem:[%s1782 + $0xc58] sm:%s1775]
                  %2191 = vst [vmem:[%s1783 + $0x658] sm:%s1775] %v2190
                  %v2192 = vld [vmem:[%s1782 + $0xc60] sm:%s1775]
                  %2193 = vst [vmem:[%s1783 + $0x660] sm:%s1775] %v2192
                  %v2194 = vld [vmem:[%s1782 + $0xc68] sm:%s1775]
                  %2195 = vst [vmem:[%s1783 + $0x668] sm:%s1775] %v2194
                  %v2196 = vld [vmem:[%s1782 + $0xc70] sm:%s1775]
                  %2197 = vst [vmem:[%s1783 + $0x670] sm:%s1775] %v2196
                  %v2198 = vld [vmem:[%s1782 + $0xc78] sm:%s1775]
                  %2199 = vst [vmem:[%s1783 + $0x678] sm:%s1775] %v2198
                  %v2200 = vld [vmem:[%s1782 + $0xc80] sm:%s1775]
                  %2201 = vst [vmem:[%s1783 + $0x680] sm:%s1775] %v2200
                  %v2202 = vld [vmem:[%s1782 + $0xc88] sm:%s1775]
                  %2203 = vst [vmem:[%s1783 + $0x688] sm:%s1775] %v2202
                  %v2204 = vld [vmem:[%s1782 + $0xc90] sm:%s1775]
                  %2205 = vst [vmem:[%s1783 + $0x690] sm:%s1775] %v2204
                  %v2206 = vld [vmem:[%s1782 + $0xc98] sm:%s1775]
                  %2207 = vst [vmem:[%s1783 + $0x698] sm:%s1775] %v2206
                  %v2208 = vld [vmem:[%s1782 + $0xca0] sm:%s1775]
                  %2209 = vst [vmem:[%s1783 + $0x6a0] sm:%s1775] %v2208
                  %v2210 = vld [vmem:[%s1782 + $0xca8] sm:%s1775]
                  %2211 = vst [vmem:[%s1783 + $0x6a8] sm:%s1775] %v2210
                  %v2212 = vld [vmem:[%s1782 + $0xcb0] sm:%s1775]
                  %2213 = vst [vmem:[%s1783 + $0x6b0] sm:%s1775] %v2212
                  %v2214 = vld [vmem:[%s1782 + $0xcb8] sm:%s1775]
                  %2215 = vst [vmem:[%s1783 + $0x6b8] sm:%s1775] %v2214
                  %v2216 = vld [vmem:[%s1782 + $0xcc0] sm:%s1775]
                  %2217 = vst [vmem:[%s1783 + $0x6c0] sm:%s1775] %v2216
                  %v2218 = vld [vmem:[%s1782 + $0xcc8] sm:%s1775]
                  %2219 = vst [vmem:[%s1783 + $0x6c8] sm:%s1775] %v2218
                  %v2220 = vld [vmem:[%s1782 + $0xcd0] sm:%s1775]
                  %2221 = vst [vmem:[%s1783 + $0x6d0] sm:%s1775] %v2220
                  %v2222 = vld [vmem:[%s1782 + $0xcd8] sm:%s1775]
                  %2223 = vst [vmem:[%s1783 + $0x6d8] sm:%s1775] %v2222
                  %v2224 = vld [vmem:[%s1782 + $0xce0] sm:%s1775]
                  %2225 = vst [vmem:[%s1783 + $0x6e0] sm:%s1775] %v2224
                  %v2226 = vld [vmem:[%s1782 + $0xce8] sm:%s1775]
                  %2227 = vst [vmem:[%s1783 + $0x6e8] sm:%s1775] %v2226
                  %v2228 = vld [vmem:[%s1782 + $0xcf0] sm:%s1775]
                  %2229 = vst [vmem:[%s1783 + $0x6f0] sm:%s1775] %v2228
                  %v2230 = vld [vmem:[%s1782 + $0xcf8] sm:%s1775]
                  %2231 = vst [vmem:[%s1783 + $0x6f8] sm:%s1775] %v2230
                  %v2232 = vld [vmem:[%s1782 + $0xd00] sm:%s1775]
                  %2233 = vst [vmem:[%s1783 + $0x700] sm:%s1775] %v2232
                  %v2234 = vld [vmem:[%s1782 + $0xd08] sm:%s1775]
                  %2235 = vst [vmem:[%s1783 + $0x708] sm:%s1775] %v2234
                  %v2236 = vld [vmem:[%s1782 + $0xd10] sm:%s1775]
                  %2237 = vst [vmem:[%s1783 + $0x710] sm:%s1775] %v2236
                  %v2238 = vld [vmem:[%s1782 + $0xd18] sm:%s1775]
                  %2239 = vst [vmem:[%s1783 + $0x718] sm:%s1775] %v2238
                  %v2240 = vld [vmem:[%s1782 + $0xd20] sm:%s1775]
                  %2241 = vst [vmem:[%s1783 + $0x720] sm:%s1775] %v2240
                  %v2242 = vld [vmem:[%s1782 + $0xd28] sm:%s1775]
                  %2243 = vst [vmem:[%s1783 + $0x728] sm:%s1775] %v2242
                  %v2244 = vld [vmem:[%s1782 + $0xd30] sm:%s1775]
                  %2245 = vst [vmem:[%s1783 + $0x730] sm:%s1775] %v2244
                  %v2246 = vld [vmem:[%s1782 + $0xd38] sm:%s1775]
                  %2247 = vst [vmem:[%s1783 + $0x738] sm:%s1775] %v2246
                  %v2248 = vld [vmem:[%s1782 + $0xd40] sm:%s1775]
                  %2249 = vst [vmem:[%s1783 + $0x740] sm:%s1775] %v2248
                  %v2250 = vld [vmem:[%s1782 + $0xd48] sm:%s1775]
                  %2251 = vst [vmem:[%s1783 + $0x748] sm:%s1775] %v2250
                  %v2252 = vld [vmem:[%s1782 + $0xd50] sm:%s1775]
                  %2253 = vst [vmem:[%s1783 + $0x750] sm:%s1775] %v2252
                  %v2254 = vld [vmem:[%s1782 + $0xd58] sm:%s1775]
                  %2255 = vst [vmem:[%s1783 + $0x758] sm:%s1775] %v2254
                  %v2256 = vld [vmem:[%s1782 + $0xd60] sm:%s1775]
                  %2257 = vst [vmem:[%s1783 + $0x760] sm:%s1775] %v2256
                  %v2258 = vld [vmem:[%s1782 + $0xd68] sm:%s1775]
                  %2259 = vst [vmem:[%s1783 + $0x768] sm:%s1775] %v2258
                  %v2260 = vld [vmem:[%s1782 + $0xd70] sm:%s1775]
                  %2261 = vst [vmem:[%s1783 + $0x770] sm:%s1775] %v2260
                  %v2262 = vld [vmem:[%s1782 + $0xd78] sm:%s1775]
                  %2263 = vst [vmem:[%s1783 + $0x778] sm:%s1775] %v2262
                  %v2264 = vld [vmem:[%s1782 + $0xd80] sm:%s1775]
                  %2265 = vst [vmem:[%s1783 + $0x780] sm:%s1775] %v2264
                  %v2266 = vld [vmem:[%s1782 + $0xd88] sm:%s1775]
                  %2267 = vst [vmem:[%s1783 + $0x788] sm:%s1775] %v2266
                  %v2268 = vld [vmem:[%s1782 + $0xd90] sm:%s1775]
                  %2269 = vst [vmem:[%s1783 + $0x790] sm:%s1775] %v2268
                  %v2270 = vld [vmem:[%s1782 + $0xd98] sm:%s1775]
                  %2271 = vst [vmem:[%s1783 + $0x798] sm:%s1775] %v2270
                  %v2272 = vld [vmem:[%s1782 + $0xda0] sm:%s1775]
                  %2273 = vst [vmem:[%s1783 + $0x7a0] sm:%s1775] %v2272
                  %v2274 = vld [vmem:[%s1782 + $0xda8] sm:%s1775]
                  %2275 = vst [vmem:[%s1783 + $0x7a8] sm:%s1775] %v2274
                  %v2276 = vld [vmem:[%s1782 + $0xdb0] sm:%s1775]
                  %2277 = vst [vmem:[%s1783 + $0x7b0] sm:%s1775] %v2276
                  %v2278 = vld [vmem:[%s1782 + $0xdb8] sm:%s1775]
                  %2279 = vst [vmem:[%s1783 + $0x7b8] sm:%s1775] %v2278
                  %v2280 = vld [vmem:[%s1782 + $0xdc0] sm:%s1775]
                  %2281 = vst [vmem:[%s1783 + $0x7c0] sm:%s1775] %v2280
                  %v2282 = vld [vmem:[%s1782 + $0xdc8] sm:%s1775]
                  %2283 = vst [vmem:[%s1783 + $0x7c8] sm:%s1775] %v2282
                  %v2284 = vld [vmem:[%s1782 + $0xdd0] sm:%s1775]
                  %2285 = vst [vmem:[%s1783 + $0x7d0] sm:%s1775] %v2284
                  %v2286 = vld [vmem:[%s1782 + $0xdd8] sm:%s1775]
                  %2287 = vst [vmem:[%s1783 + $0x7d8] sm:%s1775] %v2286
                  %v2288 = vld [vmem:[%s1782 + $0xde0] sm:%s1775]
                  %2289 = vst [vmem:[%s1783 + $0x7e0] sm:%s1775] %v2288
                  %v2290 = vld [vmem:[%s1782 + $0xde8] sm:%s1775]
                  %2291 = vst [vmem:[%s1783 + $0x7e8] sm:%s1775] %v2290
                  %v2292 = vld [vmem:[%s1782 + $0xdf0] sm:%s1775]
                  %2293 = vst [vmem:[%s1783 + $0x7f0] sm:%s1775] %v2292
                  %v2294 = vld [vmem:[%s1782 + $0xdf8] sm:%s1775]
                  %2295 = vst [vmem:[%s1783 + $0x7f8] sm:%s1775] %v2294
                $region82: #{channel_attention_forward.1} parent=69 // loop_footer
                  %s1781 = sadd.s32 1, %s1777
                $region83: #{channel_attention_forward.1} parent=69 // loop_footer_branch
                  %1776 = sbr.rel target = $region79
                $region84: #{channel_attention_forward.1} parent=69 // loop_exit
                  _
              $region70: #{channel_attention_forward.1} parent=43 // pred_fallthru
                _
            $region44: #{channel_attention_forward.1} parent=39 // pred_fallthru
              _
            // Predicated region
            $region45: #{channel_attention_forward.1} parent=39 // pred_check
              _
            $region46: #{channel_attention_forward.1} parent=39 // pred_check_branch
              %189 = sbr.rel target = $region48
            $region47: #{channel_attention_forward.1} parent=39 // pred_region
              %s191 = ssub.s32 256, 1
              loop: start=0, step=1, limit=1
              $region49: #{channel_attention_forward.1} parent=47 // loop_pre_header
                _
              $region50: #{channel_attention_forward.1} parent=47 // loop_header
                %s193 = sphi 0, %s197
                %p194 = scmp.ge.s32.totalorder %s193, 1
                %s198 = sphi %s183, %s183
                %s199 = sphi %s180, %s180
              $region51: #{channel_attention_forward.1} parent=47 // loop_header_branch
                %196 = sbr.rel (%p194) target = $region55
              $region52: #{channel_attention_forward.1} parent=47 // loop_body
                %v200 = vld [vmem:[%s198] sm:%s191]
                %201 = vst [vmem:[%s199] sm:%s191] %v200
                %v202 = vld [vmem:[%s198 + $0x8] sm:%s191]
                %203 = vst [vmem:[%s199 + $0x8] sm:%s191] %v202
                %v204 = vld [vmem:[%s198 + $0x10] sm:%s191]
                %205 = vst [vmem:[%s199 + $0x10] sm:%s191] %v204
                %v206 = vld [vmem:[%s198 + $0x18] sm:%s191]
                %207 = vst [vmem:[%s199 + $0x18] sm:%s191] %v206
                %v208 = vld [vmem:[%s198 + $0x20] sm:%s191]
                %209 = vst [vmem:[%s199 + $0x20] sm:%s191] %v208
                %v210 = vld [vmem:[%s198 + $0x28] sm:%s191]
                %211 = vst [vmem:[%s199 + $0x28] sm:%s191] %v210
                %v212 = vld [vmem:[%s198 + $0x30] sm:%s191]
                %213 = vst [vmem:[%s199 + $0x30] sm:%s191] %v212
                %v214 = vld [vmem:[%s198 + $0x38] sm:%s191]
                %215 = vst [vmem:[%s199 + $0x38] sm:%s191] %v214
                %v216 = vld [vmem:[%s198 + $0x40] sm:%s191]
                %217 = vst [vmem:[%s199 + $0x40] sm:%s191] %v216
                %v218 = vld [vmem:[%s198 + $0x48] sm:%s191]
                %219 = vst [vmem:[%s199 + $0x48] sm:%s191] %v218
                %v220 = vld [vmem:[%s198 + $0x50] sm:%s191]
                %221 = vst [vmem:[%s199 + $0x50] sm:%s191] %v220
                %v222 = vld [vmem:[%s198 + $0x58] sm:%s191]
                %223 = vst [vmem:[%s199 + $0x58] sm:%s191] %v222
                %v224 = vld [vmem:[%s198 + $0x60] sm:%s191]
                %225 = vst [vmem:[%s199 + $0x60] sm:%s191] %v224
                %v226 = vld [vmem:[%s198 + $0x68] sm:%s191]
                %227 = vst [vmem:[%s199 + $0x68] sm:%s191] %v226
                %v228 = vld [vmem:[%s198 + $0x70] sm:%s191]
                %229 = vst [vmem:[%s199 + $0x70] sm:%s191] %v228
                %v230 = vld [vmem:[%s198 + $0x78] sm:%s191]
                %231 = vst [vmem:[%s199 + $0x78] sm:%s191] %v230
                %v232 = vld [vmem:[%s198 + $0x80] sm:%s191]
                %233 = vst [vmem:[%s199 + $0x80] sm:%s191] %v232
                %v234 = vld [vmem:[%s198 + $0x88] sm:%s191]
                %235 = vst [vmem:[%s199 + $0x88] sm:%s191] %v234
                %v236 = vld [vmem:[%s198 + $0x90] sm:%s191]
                %237 = vst [vmem:[%s199 + $0x90] sm:%s191] %v236
                %v238 = vld [vmem:[%s198 + $0x98] sm:%s191]
                %239 = vst [vmem:[%s199 + $0x98] sm:%s191] %v238
                %v240 = vld [vmem:[%s198 + $0xa0] sm:%s191]
                %241 = vst [vmem:[%s199 + $0xa0] sm:%s191] %v240
                %v242 = vld [vmem:[%s198 + $0xa8] sm:%s191]
                %243 = vst [vmem:[%s199 + $0xa8] sm:%s191] %v242
                %v244 = vld [vmem:[%s198 + $0xb0] sm:%s191]
                %245 = vst [vmem:[%s199 + $0xb0] sm:%s191] %v244
                %v246 = vld [vmem:[%s198 + $0xb8] sm:%s191]
                %247 = vst [vmem:[%s199 + $0xb8] sm:%s191] %v246
                %v248 = vld [vmem:[%s198 + $0xc0] sm:%s191]
                %249 = vst [vmem:[%s199 + $0xc0] sm:%s191] %v248
                %v250 = vld [vmem:[%s198 + $0xc8] sm:%s191]
                %251 = vst [vmem:[%s199 + $0xc8] sm:%s191] %v250
                %v252 = vld [vmem:[%s198 + $0xd0] sm:%s191]
                %253 = vst [vmem:[%s199 + $0xd0] sm:%s191] %v252
                %v254 = vld [vmem:[%s198 + $0xd8] sm:%s191]
                %255 = vst [vmem:[%s199 + $0xd8] sm:%s191] %v254
                %v256 = vld [vmem:[%s198 + $0xe0] sm:%s191]
                %257 = vst [vmem:[%s199 + $0xe0] sm:%s191] %v256
                %v258 = vld [vmem:[%s198 + $0xe8] sm:%s191]
                %259 = vst [vmem:[%s199 + $0xe8] sm:%s191] %v258
                %v260 = vld [vmem:[%s198 + $0xf0] sm:%s191]
                %261 = vst [vmem:[%s199 + $0xf0] sm:%s191] %v260
                %v262 = vld [vmem:[%s198 + $0xf8] sm:%s191]
                %263 = vst [vmem:[%s199 + $0xf8] sm:%s191] %v262
                %v264 = vld [vmem:[%s198 + $0x100] sm:%s191]
                %265 = vst [vmem:[%s199 + $0x100] sm:%s191] %v264
                %v266 = vld [vmem:[%s198 + $0x108] sm:%s191]
                %267 = vst [vmem:[%s199 + $0x108] sm:%s191] %v266
                %v268 = vld [vmem:[%s198 + $0x110] sm:%s191]
                %269 = vst [vmem:[%s199 + $0x110] sm:%s191] %v268
                %v270 = vld [vmem:[%s198 + $0x118] sm:%s191]
                %271 = vst [vmem:[%s199 + $0x118] sm:%s191] %v270
                %v272 = vld [vmem:[%s198 + $0x120] sm:%s191]
                %273 = vst [vmem:[%s199 + $0x120] sm:%s191] %v272
                %v274 = vld [vmem:[%s198 + $0x128] sm:%s191]
                %275 = vst [vmem:[%s199 + $0x128] sm:%s191] %v274
                %v276 = vld [vmem:[%s198 + $0x130] sm:%s191]
                %277 = vst [vmem:[%s199 + $0x130] sm:%s191] %v276
                %v278 = vld [vmem:[%s198 + $0x138] sm:%s191]
                %279 = vst [vmem:[%s199 + $0x138] sm:%s191] %v278
                %v280 = vld [vmem:[%s198 + $0x140] sm:%s191]
                %281 = vst [vmem:[%s199 + $0x140] sm:%s191] %v280
                %v282 = vld [vmem:[%s198 + $0x148] sm:%s191]
                %283 = vst [vmem:[%s199 + $0x148] sm:%s191] %v282
                %v284 = vld [vmem:[%s198 + $0x150] sm:%s191]
                %285 = vst [vmem:[%s199 + $0x150] sm:%s191] %v284
                %v286 = vld [vmem:[%s198 + $0x158] sm:%s191]
                %287 = vst [vmem:[%s199 + $0x158] sm:%s191] %v286
                %v288 = vld [vmem:[%s198 + $0x160] sm:%s191]
                %289 = vst [vmem:[%s199 + $0x160] sm:%s191] %v288
                %v290 = vld [vmem:[%s198 + $0x168] sm:%s191]
                %291 = vst [vmem:[%s199 + $0x168] sm:%s191] %v290
                %v292 = vld [vmem:[%s198 + $0x170] sm:%s191]
                %293 = vst [vmem:[%s199 + $0x170] sm:%s191] %v292
                %v294 = vld [vmem:[%s198 + $0x178] sm:%s191]
                %295 = vst [vmem:[%s199 + $0x178] sm:%s191] %v294
                %v296 = vld [vmem:[%s198 + $0x180] sm:%s191]
                %297 = vst [vmem:[%s199 + $0x180] sm:%s191] %v296
                %v298 = vld [vmem:[%s198 + $0x188] sm:%s191]
                %299 = vst [vmem:[%s199 + $0x188] sm:%s191] %v298
                %v300 = vld [vmem:[%s198 + $0x190] sm:%s191]
                %301 = vst [vmem:[%s199 + $0x190] sm:%s191] %v300
                %v302 = vld [vmem:[%s198 + $0x198] sm:%s191]
                %303 = vst [vmem:[%s199 + $0x198] sm:%s191] %v302
                %v304 = vld [vmem:[%s198 + $0x1a0] sm:%s191]
                %305 = vst [vmem:[%s199 + $0x1a0] sm:%s191] %v304
                %v306 = vld [vmem:[%s198 + $0x1a8] sm:%s191]
                %307 = vst [vmem:[%s199 + $0x1a8] sm:%s191] %v306
                %v308 = vld [vmem:[%s198 + $0x1b0] sm:%s191]
                %309 = vst [vmem:[%s199 + $0x1b0] sm:%s191] %v308
                %v310 = vld [vmem:[%s198 + $0x1b8] sm:%s191]
                %311 = vst [vmem:[%s199 + $0x1b8] sm:%s191] %v310
                %v312 = vld [vmem:[%s198 + $0x1c0] sm:%s191]
                %313 = vst [vmem:[%s199 + $0x1c0] sm:%s191] %v312
                %v314 = vld [vmem:[%s198 + $0x1c8] sm:%s191]
                %315 = vst [vmem:[%s199 + $0x1c8] sm:%s191] %v314
                %v316 = vld [vmem:[%s198 + $0x1d0] sm:%s191]
                %317 = vst [vmem:[%s199 + $0x1d0] sm:%s191] %v316
                %v318 = vld [vmem:[%s198 + $0x1d8] sm:%s191]
                %319 = vst [vmem:[%s199 + $0x1d8] sm:%s191] %v318
                %v320 = vld [vmem:[%s198 + $0x1e0] sm:%s191]
                %321 = vst [vmem:[%s199 + $0x1e0] sm:%s191] %v320
                %v322 = vld [vmem:[%s198 + $0x1e8] sm:%s191]
                %323 = vst [vmem:[%s199 + $0x1e8] sm:%s191] %v322
                %v324 = vld [vmem:[%s198 + $0x1f0] sm:%s191]
                %325 = vst [vmem:[%s199 + $0x1f0] sm:%s191] %v324
                %v326 = vld [vmem:[%s198 + $0x1f8] sm:%s191]
                %327 = vst [vmem:[%s199 + $0x1f8] sm:%s191] %v326
                %v328 = vld [vmem:[%s198 + $0x400] sm:%s191]
                %329 = vst [vmem:[%s199 + $0x200] sm:%s191] %v328
                %v330 = vld [vmem:[%s198 + $0x408] sm:%s191]
                %331 = vst [vmem:[%s199 + $0x208] sm:%s191] %v330
                %v332 = vld [vmem:[%s198 + $0x410] sm:%s191]
                %333 = vst [vmem:[%s199 + $0x210] sm:%s191] %v332
                %v334 = vld [vmem:[%s198 + $0x418] sm:%s191]
                %335 = vst [vmem:[%s199 + $0x218] sm:%s191] %v334
                %v336 = vld [vmem:[%s198 + $0x420] sm:%s191]
                %337 = vst [vmem:[%s199 + $0x220] sm:%s191] %v336
                %v338 = vld [vmem:[%s198 + $0x428] sm:%s191]
                %339 = vst [vmem:[%s199 + $0x228] sm:%s191] %v338
                %v340 = vld [vmem:[%s198 + $0x430] sm:%s191]
                %341 = vst [vmem:[%s199 + $0x230] sm:%s191] %v340
                %v342 = vld [vmem:[%s198 + $0x438] sm:%s191]
                %343 = vst [vmem:[%s199 + $0x238] sm:%s191] %v342
                %v344 = vld [vmem:[%s198 + $0x440] sm:%s191]
                %345 = vst [vmem:[%s199 + $0x240] sm:%s191] %v344
                %v346 = vld [vmem:[%s198 + $0x448] sm:%s191]
                %347 = vst [vmem:[%s199 + $0x248] sm:%s191] %v346
                %v348 = vld [vmem:[%s198 + $0x450] sm:%s191]
                %349 = vst [vmem:[%s199 + $0x250] sm:%s191] %v348
                %v350 = vld [vmem:[%s198 + $0x458] sm:%s191]
                %351 = vst [vmem:[%s199 + $0x258] sm:%s191] %v350
                %v352 = vld [vmem:[%s198 + $0x460] sm:%s191]
                %353 = vst [vmem:[%s199 + $0x260] sm:%s191] %v352
                %v354 = vld [vmem:[%s198 + $0x468] sm:%s191]
                %355 = vst [vmem:[%s199 + $0x268] sm:%s191] %v354
                %v356 = vld [vmem:[%s198 + $0x470] sm:%s191]
                %357 = vst [vmem:[%s199 + $0x270] sm:%s191] %v356
                %v358 = vld [vmem:[%s198 + $0x478] sm:%s191]
                %359 = vst [vmem:[%s199 + $0x278] sm:%s191] %v358
                %v360 = vld [vmem:[%s198 + $0x480] sm:%s191]
                %361 = vst [vmem:[%s199 + $0x280] sm:%s191] %v360
                %v362 = vld [vmem:[%s198 + $0x488] sm:%s191]
                %363 = vst [vmem:[%s199 + $0x288] sm:%s191] %v362
                %v364 = vld [vmem:[%s198 + $0x490] sm:%s191]
                %365 = vst [vmem:[%s199 + $0x290] sm:%s191] %v364
                %v366 = vld [vmem:[%s198 + $0x498] sm:%s191]
                %367 = vst [vmem:[%s199 + $0x298] sm:%s191] %v366
                %v368 = vld [vmem:[%s198 + $0x4a0] sm:%s191]
                %369 = vst [vmem:[%s199 + $0x2a0] sm:%s191] %v368
                %v370 = vld [vmem:[%s198 + $0x4a8] sm:%s191]
                %371 = vst [vmem:[%s199 + $0x2a8] sm:%s191] %v370
                %v372 = vld [vmem:[%s198 + $0x4b0] sm:%s191]
                %373 = vst [vmem:[%s199 + $0x2b0] sm:%s191] %v372
                %v374 = vld [vmem:[%s198 + $0x4b8] sm:%s191]
                %375 = vst [vmem:[%s199 + $0x2b8] sm:%s191] %v374
                %v376 = vld [vmem:[%s198 + $0x4c0] sm:%s191]
                %377 = vst [vmem:[%s199 + $0x2c0] sm:%s191] %v376
                %v378 = vld [vmem:[%s198 + $0x4c8] sm:%s191]
                %379 = vst [vmem:[%s199 + $0x2c8] sm:%s191] %v378
                %v380 = vld [vmem:[%s198 + $0x4d0] sm:%s191]
                %381 = vst [vmem:[%s199 + $0x2d0] sm:%s191] %v380
                %v382 = vld [vmem:[%s198 + $0x4d8] sm:%s191]
                %383 = vst [vmem:[%s199 + $0x2d8] sm:%s191] %v382
                %v384 = vld [vmem:[%s198 + $0x4e0] sm:%s191]
                %385 = vst [vmem:[%s199 + $0x2e0] sm:%s191] %v384
                %v386 = vld [vmem:[%s198 + $0x4e8] sm:%s191]
                %387 = vst [vmem:[%s199 + $0x2e8] sm:%s191] %v386
                %v388 = vld [vmem:[%s198 + $0x4f0] sm:%s191]
                %389 = vst [vmem:[%s199 + $0x2f0] sm:%s191] %v388
                %v390 = vld [vmem:[%s198 + $0x4f8] sm:%s191]
                %391 = vst [vmem:[%s199 + $0x2f8] sm:%s191] %v390
                %v392 = vld [vmem:[%s198 + $0x500] sm:%s191]
                %393 = vst [vmem:[%s199 + $0x300] sm:%s191] %v392
                %v394 = vld [vmem:[%s198 + $0x508] sm:%s191]
                %395 = vst [vmem:[%s199 + $0x308] sm:%s191] %v394
                %v396 = vld [vmem:[%s198 + $0x510] sm:%s191]
                %397 = vst [vmem:[%s199 + $0x310] sm:%s191] %v396
                %v398 = vld [vmem:[%s198 + $0x518] sm:%s191]
                %399 = vst [vmem:[%s199 + $0x318] sm:%s191] %v398
                %v400 = vld [vmem:[%s198 + $0x520] sm:%s191]
                %401 = vst [vmem:[%s199 + $0x320] sm:%s191] %v400
                %v402 = vld [vmem:[%s198 + $0x528] sm:%s191]
                %403 = vst [vmem:[%s199 + $0x328] sm:%s191] %v402
                %v404 = vld [vmem:[%s198 + $0x530] sm:%s191]
                %405 = vst [vmem:[%s199 + $0x330] sm:%s191] %v404
                %v406 = vld [vmem:[%s198 + $0x538] sm:%s191]
                %407 = vst [vmem:[%s199 + $0x338] sm:%s191] %v406
                %v408 = vld [vmem:[%s198 + $0x540] sm:%s191]
                %409 = vst [vmem:[%s199 + $0x340] sm:%s191] %v408
                %v410 = vld [vmem:[%s198 + $0x548] sm:%s191]
                %411 = vst [vmem:[%s199 + $0x348] sm:%s191] %v410
                %v412 = vld [vmem:[%s198 + $0x550] sm:%s191]
                %413 = vst [vmem:[%s199 + $0x350] sm:%s191] %v412
                %v414 = vld [vmem:[%s198 + $0x558] sm:%s191]
                %415 = vst [vmem:[%s199 + $0x358] sm:%s191] %v414
                %v416 = vld [vmem:[%s198 + $0x560] sm:%s191]
                %417 = vst [vmem:[%s199 + $0x360] sm:%s191] %v416
                %v418 = vld [vmem:[%s198 + $0x568] sm:%s191]
                %419 = vst [vmem:[%s199 + $0x368] sm:%s191] %v418
                %v420 = vld [vmem:[%s198 + $0x570] sm:%s191]
                %421 = vst [vmem:[%s199 + $0x370] sm:%s191] %v420
                %v422 = vld [vmem:[%s198 + $0x578] sm:%s191]
                %423 = vst [vmem:[%s199 + $0x378] sm:%s191] %v422
                %v424 = vld [vmem:[%s198 + $0x580] sm:%s191]
                %425 = vst [vmem:[%s199 + $0x380] sm:%s191] %v424
                %v426 = vld [vmem:[%s198 + $0x588] sm:%s191]
                %427 = vst [vmem:[%s199 + $0x388] sm:%s191] %v426
                %v428 = vld [vmem:[%s198 + $0x590] sm:%s191]
                %429 = vst [vmem:[%s199 + $0x390] sm:%s191] %v428
                %v430 = vld [vmem:[%s198 + $0x598] sm:%s191]
                %431 = vst [vmem:[%s199 + $0x398] sm:%s191] %v430
                %v432 = vld [vmem:[%s198 + $0x5a0] sm:%s191]
                %433 = vst [vmem:[%s199 + $0x3a0] sm:%s191] %v432
                %v434 = vld [vmem:[%s198 + $0x5a8] sm:%s191]
                %435 = vst [vmem:[%s199 + $0x3a8] sm:%s191] %v434
                %v436 = vld [vmem:[%s198 + $0x5b0] sm:%s191]
                %437 = vst [vmem:[%s199 + $0x3b0] sm:%s191] %v436
                %v438 = vld [vmem:[%s198 + $0x5b8] sm:%s191]
                %439 = vst [vmem:[%s199 + $0x3b8] sm:%s191] %v438
                %v440 = vld [vmem:[%s198 + $0x5c0] sm:%s191]
                %441 = vst [vmem:[%s199 + $0x3c0] sm:%s191] %v440
                %v442 = vld [vmem:[%s198 + $0x5c8] sm:%s191]
                %443 = vst [vmem:[%s199 + $0x3c8] sm:%s191] %v442
                %v444 = vld [vmem:[%s198 + $0x5d0] sm:%s191]
                %445 = vst [vmem:[%s199 + $0x3d0] sm:%s191] %v444
                %v446 = vld [vmem:[%s198 + $0x5d8] sm:%s191]
                %447 = vst [vmem:[%s199 + $0x3d8] sm:%s191] %v446
                %v448 = vld [vmem:[%s198 + $0x5e0] sm:%s191]
                %449 = vst [vmem:[%s199 + $0x3e0] sm:%s191] %v448
                %v450 = vld [vmem:[%s198 + $0x5e8] sm:%s191]
                %451 = vst [vmem:[%s199 + $0x3e8] sm:%s191] %v450
                %v452 = vld [vmem:[%s198 + $0x5f0] sm:%s191]
                %453 = vst [vmem:[%s199 + $0x3f0] sm:%s191] %v452
                %v454 = vld [vmem:[%s198 + $0x5f8] sm:%s191]
                %455 = vst [vmem:[%s199 + $0x3f8] sm:%s191] %v454
                %v456 = vld [vmem:[%s198 + $0x800] sm:%s191]
                %457 = vst [vmem:[%s199 + $0x400] sm:%s191] %v456
                %v458 = vld [vmem:[%s198 + $0x808] sm:%s191]
                %459 = vst [vmem:[%s199 + $0x408] sm:%s191] %v458
                %v460 = vld [vmem:[%s198 + $0x810] sm:%s191]
                %461 = vst [vmem:[%s199 + $0x410] sm:%s191] %v460
                %v462 = vld [vmem:[%s198 + $0x818] sm:%s191]
                %463 = vst [vmem:[%s199 + $0x418] sm:%s191] %v462
                %v464 = vld [vmem:[%s198 + $0x820] sm:%s191]
                %465 = vst [vmem:[%s199 + $0x420] sm:%s191] %v464
                %v466 = vld [vmem:[%s198 + $0x828] sm:%s191]
                %467 = vst [vmem:[%s199 + $0x428] sm:%s191] %v466
                %v468 = vld [vmem:[%s198 + $0x830] sm:%s191]
                %469 = vst [vmem:[%s199 + $0x430] sm:%s191] %v468
                %v470 = vld [vmem:[%s198 + $0x838] sm:%s191]
                %471 = vst [vmem:[%s199 + $0x438] sm:%s191] %v470
                %v472 = vld [vmem:[%s198 + $0x840] sm:%s191]
                %473 = vst [vmem:[%s199 + $0x440] sm:%s191] %v472
                %v474 = vld [vmem:[%s198 + $0x848] sm:%s191]
                %475 = vst [vmem:[%s199 + $0x448] sm:%s191] %v474
                %v476 = vld [vmem:[%s198 + $0x850] sm:%s191]
                %477 = vst [vmem:[%s199 + $0x450] sm:%s191] %v476
                %v478 = vld [vmem:[%s198 + $0x858] sm:%s191]
                %479 = vst [vmem:[%s199 + $0x458] sm:%s191] %v478
                %v480 = vld [vmem:[%s198 + $0x860] sm:%s191]
                %481 = vst [vmem:[%s199 + $0x460] sm:%s191] %v480
                %v482 = vld [vmem:[%s198 + $0x868] sm:%s191]
                %483 = vst [vmem:[%s199 + $0x468] sm:%s191] %v482
                %v484 = vld [vmem:[%s198 + $0x870] sm:%s191]
                %485 = vst [vmem:[%s199 + $0x470] sm:%s191] %v484
                %v486 = vld [vmem:[%s198 + $0x878] sm:%s191]
                %487 = vst [vmem:[%s199 + $0x478] sm:%s191] %v486
                %v488 = vld [vmem:[%s198 + $0x880] sm:%s191]
                %489 = vst [vmem:[%s199 + $0x480] sm:%s191] %v488
                %v490 = vld [vmem:[%s198 + $0x888] sm:%s191]
                %491 = vst [vmem:[%s199 + $0x488] sm:%s191] %v490
                %v492 = vld [vmem:[%s198 + $0x890] sm:%s191]
                %493 = vst [vmem:[%s199 + $0x490] sm:%s191] %v492
                %v494 = vld [vmem:[%s198 + $0x898] sm:%s191]
                %495 = vst [vmem:[%s199 + $0x498] sm:%s191] %v494
                %v496 = vld [vmem:[%s198 + $0x8a0] sm:%s191]
                %497 = vst [vmem:[%s199 + $0x4a0] sm:%s191] %v496
                %v498 = vld [vmem:[%s198 + $0x8a8] sm:%s191]
                %499 = vst [vmem:[%s199 + $0x4a8] sm:%s191] %v498
                %v500 = vld [vmem:[%s198 + $0x8b0] sm:%s191]
                %501 = vst [vmem:[%s199 + $0x4b0] sm:%s191] %v500
                %v502 = vld [vmem:[%s198 + $0x8b8] sm:%s191]
                %503 = vst [vmem:[%s199 + $0x4b8] sm:%s191] %v502
                %v504 = vld [vmem:[%s198 + $0x8c0] sm:%s191]
                %505 = vst [vmem:[%s199 + $0x4c0] sm:%s191] %v504
                %v506 = vld [vmem:[%s198 + $0x8c8] sm:%s191]
                %507 = vst [vmem:[%s199 + $0x4c8] sm:%s191] %v506
                %v508 = vld [vmem:[%s198 + $0x8d0] sm:%s191]
                %509 = vst [vmem:[%s199 + $0x4d0] sm:%s191] %v508
                %v510 = vld [vmem:[%s198 + $0x8d8] sm:%s191]
                %511 = vst [vmem:[%s199 + $0x4d8] sm:%s191] %v510
                %v512 = vld [vmem:[%s198 + $0x8e0] sm:%s191]
                %513 = vst [vmem:[%s199 + $0x4e0] sm:%s191] %v512
                %v514 = vld [vmem:[%s198 + $0x8e8] sm:%s191]
                %515 = vst [vmem:[%s199 + $0x4e8] sm:%s191] %v514
                %v516 = vld [vmem:[%s198 + $0x8f0] sm:%s191]
                %517 = vst [vmem:[%s199 + $0x4f0] sm:%s191] %v516
                %v518 = vld [vmem:[%s198 + $0x8f8] sm:%s191]
                %519 = vst [vmem:[%s199 + $0x4f8] sm:%s191] %v518
                %v520 = vld [vmem:[%s198 + $0x900] sm:%s191]
                %521 = vst [vmem:[%s199 + $0x500] sm:%s191] %v520
                %v522 = vld [vmem:[%s198 + $0x908] sm:%s191]
                %523 = vst [vmem:[%s199 + $0x508] sm:%s191] %v522
                %v524 = vld [vmem:[%s198 + $0x910] sm:%s191]
                %525 = vst [vmem:[%s199 + $0x510] sm:%s191] %v524
                %v526 = vld [vmem:[%s198 + $0x918] sm:%s191]
                %527 = vst [vmem:[%s199 + $0x518] sm:%s191] %v526
                %v528 = vld [vmem:[%s198 + $0x920] sm:%s191]
                %529 = vst [vmem:[%s199 + $0x520] sm:%s191] %v528
                %v530 = vld [vmem:[%s198 + $0x928] sm:%s191]
                %531 = vst [vmem:[%s199 + $0x528] sm:%s191] %v530
                %v532 = vld [vmem:[%s198 + $0x930] sm:%s191]
                %533 = vst [vmem:[%s199 + $0x530] sm:%s191] %v532
                %v534 = vld [vmem:[%s198 + $0x938] sm:%s191]
                %535 = vst [vmem:[%s199 + $0x538] sm:%s191] %v534
                %v536 = vld [vmem:[%s198 + $0x940] sm:%s191]
                %537 = vst [vmem:[%s199 + $0x540] sm:%s191] %v536
                %v538 = vld [vmem:[%s198 + $0x948] sm:%s191]
                %539 = vst [vmem:[%s199 + $0x548] sm:%s191] %v538
                %v540 = vld [vmem:[%s198 + $0x950] sm:%s191]
                %541 = vst [vmem:[%s199 + $0x550] sm:%s191] %v540
                %v542 = vld [vmem:[%s198 + $0x958] sm:%s191]
                %543 = vst [vmem:[%s199 + $0x558] sm:%s191] %v542
                %v544 = vld [vmem:[%s198 + $0x960] sm:%s191]
                %545 = vst [vmem:[%s199 + $0x560] sm:%s191] %v544
                %v546 = vld [vmem:[%s198 + $0x968] sm:%s191]
                %547 = vst [vmem:[%s199 + $0x568] sm:%s191] %v546
                %v548 = vld [vmem:[%s198 + $0x970] sm:%s191]
                %549 = vst [vmem:[%s199 + $0x570] sm:%s191] %v548
                %v550 = vld [vmem:[%s198 + $0x978] sm:%s191]
                %551 = vst [vmem:[%s199 + $0x578] sm:%s191] %v550
                %v552 = vld [vmem:[%s198 + $0x980] sm:%s191]
                %553 = vst [vmem:[%s199 + $0x580] sm:%s191] %v552
                %v554 = vld [vmem:[%s198 + $0x988] sm:%s191]
                %555 = vst [vmem:[%s199 + $0x588] sm:%s191] %v554
                %v556 = vld [vmem:[%s198 + $0x990] sm:%s191]
                %557 = vst [vmem:[%s199 + $0x590] sm:%s191] %v556
                %v558 = vld [vmem:[%s198 + $0x998] sm:%s191]
                %559 = vst [vmem:[%s199 + $0x598] sm:%s191] %v558
                %v560 = vld [vmem:[%s198 + $0x9a0] sm:%s191]
                %561 = vst [vmem:[%s199 + $0x5a0] sm:%s191] %v560
                %v562 = vld [vmem:[%s198 + $0x9a8] sm:%s191]
                %563 = vst [vmem:[%s199 + $0x5a8] sm:%s191] %v562
                %v564 = vld [vmem:[%s198 + $0x9b0] sm:%s191]
                %565 = vst [vmem:[%s199 + $0x5b0] sm:%s191] %v564
                %v566 = vld [vmem:[%s198 + $0x9b8] sm:%s191]
                %567 = vst [vmem:[%s199 + $0x5b8] sm:%s191] %v566
                %v568 = vld [vmem:[%s198 + $0x9c0] sm:%s191]
                %569 = vst [vmem:[%s199 + $0x5c0] sm:%s191] %v568
                %v570 = vld [vmem:[%s198 + $0x9c8] sm:%s191]
                %571 = vst [vmem:[%s199 + $0x5c8] sm:%s191] %v570
                %v572 = vld [vmem:[%s198 + $0x9d0] sm:%s191]
                %573 = vst [vmem:[%s199 + $0x5d0] sm:%s191] %v572
                %v574 = vld [vmem:[%s198 + $0x9d8] sm:%s191]
                %575 = vst [vmem:[%s199 + $0x5d8] sm:%s191] %v574
                %v576 = vld [vmem:[%s198 + $0x9e0] sm:%s191]
                %577 = vst [vmem:[%s199 + $0x5e0] sm:%s191] %v576
                %v578 = vld [vmem:[%s198 + $0x9e8] sm:%s191]
                %579 = vst [vmem:[%s199 + $0x5e8] sm:%s191] %v578
                %v580 = vld [vmem:[%s198 + $0x9f0] sm:%s191]
                %581 = vst [vmem:[%s199 + $0x5f0] sm:%s191] %v580
                %v582 = vld [vmem:[%s198 + $0x9f8] sm:%s191]
                %583 = vst [vmem:[%s199 + $0x5f8] sm:%s191] %v582
                %v584 = vld [vmem:[%s198 + $0xc00] sm:%s191]
                %585 = vst [vmem:[%s199 + $0x600] sm:%s191] %v584
                %v586 = vld [vmem:[%s198 + $0xc08] sm:%s191]
                %587 = vst [vmem:[%s199 + $0x608] sm:%s191] %v586
                %v588 = vld [vmem:[%s198 + $0xc10] sm:%s191]
                %589 = vst [vmem:[%s199 + $0x610] sm:%s191] %v588
                %v590 = vld [vmem:[%s198 + $0xc18] sm:%s191]
                %591 = vst [vmem:[%s199 + $0x618] sm:%s191] %v590
                %v592 = vld [vmem:[%s198 + $0xc20] sm:%s191]
                %593 = vst [vmem:[%s199 + $0x620] sm:%s191] %v592
                %v594 = vld [vmem:[%s198 + $0xc28] sm:%s191]
                %595 = vst [vmem:[%s199 + $0x628] sm:%s191] %v594
                %v596 = vld [vmem:[%s198 + $0xc30] sm:%s191]
                %597 = vst [vmem:[%s199 + $0x630] sm:%s191] %v596
                %v598 = vld [vmem:[%s198 + $0xc38] sm:%s191]
                %599 = vst [vmem:[%s199 + $0x638] sm:%s191] %v598
                %v600 = vld [vmem:[%s198 + $0xc40] sm:%s191]
                %601 = vst [vmem:[%s199 + $0x640] sm:%s191] %v600
                %v602 = vld [vmem:[%s198 + $0xc48] sm:%s191]
                %603 = vst [vmem:[%s199 + $0x648] sm:%s191] %v602
                %v604 = vld [vmem:[%s198 + $0xc50] sm:%s191]
                %605 = vst [vmem:[%s199 + $0x650] sm:%s191] %v604
                %v606 = vld [vmem:[%s198 + $0xc58] sm:%s191]
                %607 = vst [vmem:[%s199 + $0x658] sm:%s191] %v606
                %v608 = vld [vmem:[%s198 + $0xc60] sm:%s191]
                %609 = vst [vmem:[%s199 + $0x660] sm:%s191] %v608
                %v610 = vld [vmem:[%s198 + $0xc68] sm:%s191]
                %611 = vst [vmem:[%s199 + $0x668] sm:%s191] %v610
                %v612 = vld [vmem:[%s198 + $0xc70] sm:%s191]
                %613 = vst [vmem:[%s199 + $0x670] sm:%s191] %v612
                %v614 = vld [vmem:[%s198 + $0xc78] sm:%s191]
                %615 = vst [vmem:[%s199 + $0x678] sm:%s191] %v614
                %v616 = vld [vmem:[%s198 + $0xc80] sm:%s191]
                %617 = vst [vmem:[%s199 + $0x680] sm:%s191] %v616
                %v618 = vld [vmem:[%s198 + $0xc88] sm:%s191]
                %619 = vst [vmem:[%s199 + $0x688] sm:%s191] %v618
                %v620 = vld [vmem:[%s198 + $0xc90] sm:%s191]
                %621 = vst [vmem:[%s199 + $0x690] sm:%s191] %v620
                %v622 = vld [vmem:[%s198 + $0xc98] sm:%s191]
                %623 = vst [vmem:[%s199 + $0x698] sm:%s191] %v622
                %v624 = vld [vmem:[%s198 + $0xca0] sm:%s191]
                %625 = vst [vmem:[%s199 + $0x6a0] sm:%s191] %v624
                %v626 = vld [vmem:[%s198 + $0xca8] sm:%s191]
                %627 = vst [vmem:[%s199 + $0x6a8] sm:%s191] %v626
                %v628 = vld [vmem:[%s198 + $0xcb0] sm:%s191]
                %629 = vst [vmem:[%s199 + $0x6b0] sm:%s191] %v628
                %v630 = vld [vmem:[%s198 + $0xcb8] sm:%s191]
                %631 = vst [vmem:[%s199 + $0x6b8] sm:%s191] %v630
                %v632 = vld [vmem:[%s198 + $0xcc0] sm:%s191]
                %633 = vst [vmem:[%s199 + $0x6c0] sm:%s191] %v632
                %v634 = vld [vmem:[%s198 + $0xcc8] sm:%s191]
                %635 = vst [vmem:[%s199 + $0x6c8] sm:%s191] %v634
                %v636 = vld [vmem:[%s198 + $0xcd0] sm:%s191]
                %637 = vst [vmem:[%s199 + $0x6d0] sm:%s191] %v636
                %v638 = vld [vmem:[%s198 + $0xcd8] sm:%s191]
                %639 = vst [vmem:[%s199 + $0x6d8] sm:%s191] %v638
                %v640 = vld [vmem:[%s198 + $0xce0] sm:%s191]
                %641 = vst [vmem:[%s199 + $0x6e0] sm:%s191] %v640
                %v642 = vld [vmem:[%s198 + $0xce8] sm:%s191]
                %643 = vst [vmem:[%s199 + $0x6e8] sm:%s191] %v642
                %v644 = vld [vmem:[%s198 + $0xcf0] sm:%s191]
                %645 = vst [vmem:[%s199 + $0x6f0] sm:%s191] %v644
                %v646 = vld [vmem:[%s198 + $0xcf8] sm:%s191]
                %647 = vst [vmem:[%s199 + $0x6f8] sm:%s191] %v646
                %v648 = vld [vmem:[%s198 + $0xd00] sm:%s191]
                %649 = vst [vmem:[%s199 + $0x700] sm:%s191] %v648
                %v650 = vld [vmem:[%s198 + $0xd08] sm:%s191]
                %651 = vst [vmem:[%s199 + $0x708] sm:%s191] %v650
                %v652 = vld [vmem:[%s198 + $0xd10] sm:%s191]
                %653 = vst [vmem:[%s199 + $0x710] sm:%s191] %v652
                %v654 = vld [vmem:[%s198 + $0xd18] sm:%s191]
                %655 = vst [vmem:[%s199 + $0x718] sm:%s191] %v654
                %v656 = vld [vmem:[%s198 + $0xd20] sm:%s191]
                %657 = vst [vmem:[%s199 + $0x720] sm:%s191] %v656
                %v658 = vld [vmem:[%s198 + $0xd28] sm:%s191]
                %659 = vst [vmem:[%s199 + $0x728] sm:%s191] %v658
                %v660 = vld [vmem:[%s198 + $0xd30] sm:%s191]
                %661 = vst [vmem:[%s199 + $0x730] sm:%s191] %v660
                %v662 = vld [vmem:[%s198 + $0xd38] sm:%s191]
                %663 = vst [vmem:[%s199 + $0x738] sm:%s191] %v662
                %v664 = vld [vmem:[%s198 + $0xd40] sm:%s191]
                %665 = vst [vmem:[%s199 + $0x740] sm:%s191] %v664
                %v666 = vld [vmem:[%s198 + $0xd48] sm:%s191]
                %667 = vst [vmem:[%s199 + $0x748] sm:%s191] %v666
                %v668 = vld [vmem:[%s198 + $0xd50] sm:%s191]
                %669 = vst [vmem:[%s199 + $0x750] sm:%s191] %v668
                %v670 = vld [vmem:[%s198 + $0xd58] sm:%s191]
                %671 = vst [vmem:[%s199 + $0x758] sm:%s191] %v670
                %v672 = vld [vmem:[%s198 + $0xd60] sm:%s191]
                %673 = vst [vmem:[%s199 + $0x760] sm:%s191] %v672
                %v674 = vld [vmem:[%s198 + $0xd68] sm:%s191]
                %675 = vst [vmem:[%s199 + $0x768] sm:%s191] %v674
                %v676 = vld [vmem:[%s198 + $0xd70] sm:%s191]
                %677 = vst [vmem:[%s199 + $0x770] sm:%s191] %v676
                %v678 = vld [vmem:[%s198 + $0xd78] sm:%s191]
                %679 = vst [vmem:[%s199 + $0x778] sm:%s191] %v678
                %v680 = vld [vmem:[%s198 + $0xd80] sm:%s191]
                %681 = vst [vmem:[%s199 + $0x780] sm:%s191] %v680
                %v682 = vld [vmem:[%s198 + $0xd88] sm:%s191]
                %683 = vst [vmem:[%s199 + $0x788] sm:%s191] %v682
                %v684 = vld [vmem:[%s198 + $0xd90] sm:%s191]
                %685 = vst [vmem:[%s199 + $0x790] sm:%s191] %v684
                %v686 = vld [vmem:[%s198 + $0xd98] sm:%s191]
                %687 = vst [vmem:[%s199 + $0x798] sm:%s191] %v686
                %v688 = vld [vmem:[%s198 + $0xda0] sm:%s191]
                %689 = vst [vmem:[%s199 + $0x7a0] sm:%s191] %v688
                %v690 = vld [vmem:[%s198 + $0xda8] sm:%s191]
                %691 = vst [vmem:[%s199 + $0x7a8] sm:%s191] %v690
                %v692 = vld [vmem:[%s198 + $0xdb0] sm:%s191]
                %693 = vst [vmem:[%s199 + $0x7b0] sm:%s191] %v692
                %v694 = vld [vmem:[%s198 + $0xdb8] sm:%s191]
                %695 = vst [vmem:[%s199 + $0x7b8] sm:%s191] %v694
                %v696 = vld [vmem:[%s198 + $0xdc0] sm:%s191]
                %697 = vst [vmem:[%s199 + $0x7c0] sm:%s191] %v696
                %v698 = vld [vmem:[%s198 + $0xdc8] sm:%s191]
                %699 = vst [vmem:[%s199 + $0x7c8] sm:%s191] %v698
                %v700 = vld [vmem:[%s198 + $0xdd0] sm:%s191]
                %701 = vst [vmem:[%s199 + $0x7d0] sm:%s191] %v700
                %v702 = vld [vmem:[%s198 + $0xdd8] sm:%s191]
                %703 = vst [vmem:[%s199 + $0x7d8] sm:%s191] %v702
                %v704 = vld [vmem:[%s198 + $0xde0] sm:%s191]
                %705 = vst [vmem:[%s199 + $0x7e0] sm:%s191] %v704
                %v706 = vld [vmem:[%s198 + $0xde8] sm:%s191]
                %707 = vst [vmem:[%s199 + $0x7e8] sm:%s191] %v706
                %v708 = vld [vmem:[%s198 + $0xdf0] sm:%s191]
                %709 = vst [vmem:[%s199 + $0x7f0] sm:%s191] %v708
                %v710 = vld [vmem:[%s198 + $0xdf8] sm:%s191]
                %711 = vst [vmem:[%s199 + $0x7f8] sm:%s191] %v710
              $region53: #{channel_attention_forward.1} parent=47 // loop_footer
                %s197 = sadd.s32 1, %s193
              $region54: #{channel_attention_forward.1} parent=47 // loop_footer_branch
                %192 = sbr.rel target = $region50
              $region55: #{channel_attention_forward.1} parent=47 // loop_exit
                _
            $region48: #{channel_attention_forward.1} parent=39 // pred_fallthru
              _
          $region40: #{channel_attention_forward.1} parent=35 // pred_fallthru
            _
          %2296 = vnop
        $region36: #{channel_attention_forward.1} parent=31 // pred_fallthru
          _
      $region32: #{channel_attention_forward.1} parent=5 // pred_fallthru
        _
      %p2297 = scmp.le.s32.totalorder 1, %s12
      %p2298 = scmp.lt.s32.totalorder %s12, 3
      %p2299 = pnand %p2297, %p2298
      %p2300 = pneg %p2299
      // Predicated region
      $region85: #{channel_attention_forward.1} parent=5 // pred_check
        _
      $region86: #{channel_attention_forward.1} parent=5 // pred_check_branch
        %2302 = sbr.rel (%p2299) target = $region88
      $region87: #{channel_attention_forward.1} parent=5 // pred_region
        %s2303 = ssub.s32 %s12, 1
        %s2304 = sand.u32 %s25, 1
        %s2305 = sand.u32 %s25, 1
        %s2306 = smul.addr %s2305, 2048
        %s2307 = scalar_lea.vmem [#allocation4], %s2306
        // Predicated region
        $region89: #{channel_attention_forward.1} parent=87 // pred_check
          %p2308 = pneg %p38
        $region90: #{channel_attention_forward.1} parent=87 // pred_check_branch
          %2310 = sbr.rel (%p2308) target = $region92
        $region91: #{channel_attention_forward.1} parent=87 // pred_region
          _
        $region92: #{channel_attention_forward.1} parent=87 // pred_fallthru
          _
        %s2311 = sand.u32 %s25, 1
        %s2312 = sand.u32 %s25, 1
        %s2313 = smul.addr %s2312, 2048
        %s2314 = scalar_lea.vmem [#allocation4], %s2313
        %p2315 = pneg %p38
        %p2316 = pneg %p35
        %p2317 = pneg %p59
        %p2318 = pneg %p56
        %p2319 = pneg %p80
        %p2320 = pneg %p77
        %p2321 = pneg %p101
        %p2322 = pneg %p98
        %p2323 = pneg %p122
        %p2324 = pneg %p119
        %p2325 = pneg %p143
        %p2326 = pneg %p140
        %s2327 = smul.u32 64, %s17
        %p2328 = scmp.eq.s32.totalorder %s17, 0
        // Predicated region
        $region93: #{channel_attention_forward.1} parent=87 // pred_check
          %p2329 = pneg %p2328
        $region94: #{channel_attention_forward.1} parent=87 // pred_check_branch
          %2331 = sbr.rel (%p2329) target = $region96
        $region95: #{channel_attention_forward.1} parent=87 // pred_region
          %2332 = vst [vmem:[#allocation2] sm:$0xf] 0.0
          %2333 = vst [vmem:[#allocation3] sm:$0xf] -inf
        $region96: #{channel_attention_forward.1} parent=87 // pred_fallthru
          _
        %v2334 = vld [vmem:[%s2307] sm:$0xff]
        %v2335 = vld [vmem:[%s2307 + $0x8] sm:$0xff]
        %v2336 = vld [vmem:[%s2307 + $0x10] sm:$0xff]
        %v2337 = vld [vmem:[%s2307 + $0x18] sm:$0xff]
        %v2338 = vld [vmem:[%s2307 + $0x20] sm:$0xff]
        %v2339 = vld [vmem:[%s2307 + $0x28] sm:$0xff]
        %v2340 = vld [vmem:[%s2307 + $0x30] sm:$0xff]
        %v2341 = vld [vmem:[%s2307 + $0x38] sm:$0xff]
        %v2342 = vld [vmem:[%s2307 + $0x40] sm:$0xff]
        %v2343 = vld [vmem:[%s2307 + $0x48] sm:$0xff]
        %v2344 = vld [vmem:[%s2307 + $0x50] sm:$0xff]
        %v2345 = vld [vmem:[%s2307 + $0x58] sm:$0xff]
        %v2346 = vld [vmem:[%s2307 + $0x60] sm:$0xff]
        %v2347 = vld [vmem:[%s2307 + $0x68] sm:$0xff]
        %v2348 = vld [vmem:[%s2307 + $0x70] sm:$0xff]
        %v2349 = vld [vmem:[%s2307 + $0x78] sm:$0xff]
        %v2350 = vld [vmem:[%s2307 + $0x80] sm:$0xff]
        %v2351 = vld [vmem:[%s2307 + $0x88] sm:$0xff]
        %v2352 = vld [vmem:[%s2307 + $0x90] sm:$0xff]
        %v2353 = vld [vmem:[%s2307 + $0x98] sm:$0xff]
        %v2354 = vld [vmem:[%s2307 + $0xa0] sm:$0xff]
        %v2355 = vld [vmem:[%s2307 + $0xa8] sm:$0xff]
        %v2356 = vld [vmem:[%s2307 + $0xb0] sm:$0xff]
        %v2357 = vld [vmem:[%s2307 + $0xb8] sm:$0xff]
        %v2358 = vld [vmem:[%s2307 + $0xc0] sm:$0xff]
        %v2359 = vld [vmem:[%s2307 + $0xc8] sm:$0xff]
        %v2360 = vld [vmem:[%s2307 + $0xd0] sm:$0xff]
        %v2361 = vld [vmem:[%s2307 + $0xd8] sm:$0xff]
        %v2362 = vld [vmem:[%s2307 + $0xe0] sm:$0xff]
        %v2363 = vld [vmem:[%s2307 + $0xe8] sm:$0xff]
        %v2364 = vld [vmem:[%s2307 + $0xf0] sm:$0xff]
        %v2365 = vld [vmem:[%s2307 + $0xf8] sm:$0xff]
        %v2366 = vld [vmem:[%s2307 + $0x100] sm:$0xff]
        %v2367 = vld [vmem:[%s2307 + $0x108] sm:$0xff]
        %v2368 = vld [vmem:[%s2307 + $0x110] sm:$0xff]
        %v2369 = vld [vmem:[%s2307 + $0x118] sm:$0xff]
        %v2370 = vld [vmem:[%s2307 + $0x120] sm:$0xff]
        %v2371 = vld [vmem:[%s2307 + $0x128] sm:$0xff]
        %v2372 = vld [vmem:[%s2307 + $0x130] sm:$0xff]
        %v2373 = vld [vmem:[%s2307 + $0x138] sm:$0xff]
        %v2374 = vld [vmem:[%s2307 + $0x140] sm:$0xff]
        %v2375 = vld [vmem:[%s2307 + $0x148] sm:$0xff]
        %v2376 = vld [vmem:[%s2307 + $0x150] sm:$0xff]
        %v2377 = vld [vmem:[%s2307 + $0x158] sm:$0xff]
        %v2378 = vld [vmem:[%s2307 + $0x160] sm:$0xff]
        %v2379 = vld [vmem:[%s2307 + $0x168] sm:$0xff]
        %v2380 = vld [vmem:[%s2307 + $0x170] sm:$0xff]
        %v2381 = vld [vmem:[%s2307 + $0x178] sm:$0xff]
        %v2382 = vld [vmem:[%s2307 + $0x180] sm:$0xff]
        %v2383 = vld [vmem:[%s2307 + $0x188] sm:$0xff]
        %v2384 = vld [vmem:[%s2307 + $0x190] sm:$0xff]
        %v2385 = vld [vmem:[%s2307 + $0x198] sm:$0xff]
        %v2386 = vld [vmem:[%s2307 + $0x1a0] sm:$0xff]
        %v2387 = vld [vmem:[%s2307 + $0x1a8] sm:$0xff]
        %v2388 = vld [vmem:[%s2307 + $0x1b0] sm:$0xff]
        %v2389 = vld [vmem:[%s2307 + $0x1b8] sm:$0xff]
        %v2390 = vld [vmem:[%s2307 + $0x1c0] sm:$0xff]
        %v2391 = vld [vmem:[%s2307 + $0x1c8] sm:$0xff]
        %v2392 = vld [vmem:[%s2307 + $0x1d0] sm:$0xff]
        %v2393 = vld [vmem:[%s2307 + $0x1d8] sm:$0xff]
        %v2394 = vld [vmem:[%s2307 + $0x1e0] sm:$0xff]
        %v2395 = vld [vmem:[%s2307 + $0x1e8] sm:$0xff]
        %v2396 = vld [vmem:[%s2307 + $0x1f0] sm:$0xff]
        %v2397 = vld [vmem:[%s2307 + $0x1f8] sm:$0xff]
        %v2398 = vld [vmem:[%s2307 + $0x200] sm:$0xff]
        %v2399 = vld [vmem:[%s2307 + $0x208] sm:$0xff]
        %v2400 = vld [vmem:[%s2307 + $0x210] sm:$0xff]
        %v2401 = vld [vmem:[%s2307 + $0x218] sm:$0xff]
        %v2402 = vld [vmem:[%s2307 + $0x220] sm:$0xff]
        %v2403 = vld [vmem:[%s2307 + $0x228] sm:$0xff]
        %v2404 = vld [vmem:[%s2307 + $0x230] sm:$0xff]
        %v2405 = vld [vmem:[%s2307 + $0x238] sm:$0xff]
        %v2406 = vld [vmem:[%s2307 + $0x240] sm:$0xff]
        %v2407 = vld [vmem:[%s2307 + $0x248] sm:$0xff]
        %v2408 = vld [vmem:[%s2307 + $0x250] sm:$0xff]
        %v2409 = vld [vmem:[%s2307 + $0x258] sm:$0xff]
        %v2410 = vld [vmem:[%s2307 + $0x260] sm:$0xff]
        %v2411 = vld [vmem:[%s2307 + $0x268] sm:$0xff]
        %v2412 = vld [vmem:[%s2307 + $0x270] sm:$0xff]
        %v2413 = vld [vmem:[%s2307 + $0x278] sm:$0xff]
        %v2414 = vld [vmem:[%s2307 + $0x280] sm:$0xff]
        %v2415 = vld [vmem:[%s2307 + $0x288] sm:$0xff]
        %v2416 = vld [vmem:[%s2307 + $0x290] sm:$0xff]
        %v2417 = vld [vmem:[%s2307 + $0x298] sm:$0xff]
        %v2418 = vld [vmem:[%s2307 + $0x2a0] sm:$0xff]
        %v2419 = vld [vmem:[%s2307 + $0x2a8] sm:$0xff]
        %v2420 = vld [vmem:[%s2307 + $0x2b0] sm:$0xff]
        %v2421 = vld [vmem:[%s2307 + $0x2b8] sm:$0xff]
        %v2422 = vld [vmem:[%s2307 + $0x2c0] sm:$0xff]
        %v2423 = vld [vmem:[%s2307 + $0x2c8] sm:$0xff]
        %v2424 = vld [vmem:[%s2307 + $0x2d0] sm:$0xff]
        %v2425 = vld [vmem:[%s2307 + $0x2d8] sm:$0xff]
        %v2426 = vld [vmem:[%s2307 + $0x2e0] sm:$0xff]
        %v2427 = vld [vmem:[%s2307 + $0x2e8] sm:$0xff]
        %v2428 = vld [vmem:[%s2307 + $0x2f0] sm:$0xff]
        %v2429 = vld [vmem:[%s2307 + $0x2f8] sm:$0xff]
        %v2430 = vld [vmem:[%s2307 + $0x300] sm:$0xff]
        %v2431 = vld [vmem:[%s2307 + $0x308] sm:$0xff]
        %v2432 = vld [vmem:[%s2307 + $0x310] sm:$0xff]
        %v2433 = vld [vmem:[%s2307 + $0x318] sm:$0xff]
        %v2434 = vld [vmem:[%s2307 + $0x320] sm:$0xff]
        %v2435 = vld [vmem:[%s2307 + $0x328] sm:$0xff]
        %v2436 = vld [vmem:[%s2307 + $0x330] sm:$0xff]
        %v2437 = vld [vmem:[%s2307 + $0x338] sm:$0xff]
        %v2438 = vld [vmem:[%s2307 + $0x340] sm:$0xff]
        %v2439 = vld [vmem:[%s2307 + $0x348] sm:$0xff]
        %v2440 = vld [vmem:[%s2307 + $0x350] sm:$0xff]
        %v2441 = vld [vmem:[%s2307 + $0x358] sm:$0xff]
        %v2442 = vld [vmem:[%s2307 + $0x360] sm:$0xff]
        %v2443 = vld [vmem:[%s2307 + $0x368] sm:$0xff]
        %v2444 = vld [vmem:[%s2307 + $0x370] sm:$0xff]
        %v2445 = vld [vmem:[%s2307 + $0x378] sm:$0xff]
        %v2446 = vld [vmem:[%s2307 + $0x380] sm:$0xff]
        %v2447 = vld [vmem:[%s2307 + $0x388] sm:$0xff]
        %v2448 = vld [vmem:[%s2307 + $0x390] sm:$0xff]
        %v2449 = vld [vmem:[%s2307 + $0x398] sm:$0xff]
        %v2450 = vld [vmem:[%s2307 + $0x3a0] sm:$0xff]
        %v2451 = vld [vmem:[%s2307 + $0x3a8] sm:$0xff]
        %v2452 = vld [vmem:[%s2307 + $0x3b0] sm:$0xff]
        %v2453 = vld [vmem:[%s2307 + $0x3b8] sm:$0xff]
        %v2454 = vld [vmem:[%s2307 + $0x3c0] sm:$0xff]
        %v2455 = vld [vmem:[%s2307 + $0x3c8] sm:$0xff]
        %v2456 = vld [vmem:[%s2307 + $0x3d0] sm:$0xff]
        %v2457 = vld [vmem:[%s2307 + $0x3d8] sm:$0xff]
        %v2458 = vld [vmem:[%s2307 + $0x3e0] sm:$0xff]
        %v2459 = vld [vmem:[%s2307 + $0x3e8] sm:$0xff]
        %v2460 = vld [vmem:[%s2307 + $0x3f0] sm:$0xff]
        %v2461 = vld [vmem:[%s2307 + $0x3f8] sm:$0xff]
        %v2462 = vld [vmem:[%s2307 + $0x400] sm:$0xff]
        %v2463 = vld [vmem:[%s2307 + $0x408] sm:$0xff]
        %v2464 = vld [vmem:[%s2307 + $0x410] sm:$0xff]
        %v2465 = vld [vmem:[%s2307 + $0x418] sm:$0xff]
        %v2466 = vld [vmem:[%s2307 + $0x420] sm:$0xff]
        %v2467 = vld [vmem:[%s2307 + $0x428] sm:$0xff]
        %v2468 = vld [vmem:[%s2307 + $0x430] sm:$0xff]
        %v2469 = vld [vmem:[%s2307 + $0x438] sm:$0xff]
        %v2470 = vld [vmem:[%s2307 + $0x440] sm:$0xff]
        %v2471 = vld [vmem:[%s2307 + $0x448] sm:$0xff]
        %v2472 = vld [vmem:[%s2307 + $0x450] sm:$0xff]
        %v2473 = vld [vmem:[%s2307 + $0x458] sm:$0xff]
        %v2474 = vld [vmem:[%s2307 + $0x460] sm:$0xff]
        %v2475 = vld [vmem:[%s2307 + $0x468] sm:$0xff]
        %v2476 = vld [vmem:[%s2307 + $0x470] sm:$0xff]
        %v2477 = vld [vmem:[%s2307 + $0x478] sm:$0xff]
        %v2478 = vld [vmem:[%s2307 + $0x480] sm:$0xff]
        %v2479 = vld [vmem:[%s2307 + $0x488] sm:$0xff]
        %v2480 = vld [vmem:[%s2307 + $0x490] sm:$0xff]
        %v2481 = vld [vmem:[%s2307 + $0x498] sm:$0xff]
        %v2482 = vld [vmem:[%s2307 + $0x4a0] sm:$0xff]
        %v2483 = vld [vmem:[%s2307 + $0x4a8] sm:$0xff]
        %v2484 = vld [vmem:[%s2307 + $0x4b0] sm:$0xff]
        %v2485 = vld [vmem:[%s2307 + $0x4b8] sm:$0xff]
        %v2486 = vld [vmem:[%s2307 + $0x4c0] sm:$0xff]
        %v2487 = vld [vmem:[%s2307 + $0x4c8] sm:$0xff]
        %v2488 = vld [vmem:[%s2307 + $0x4d0] sm:$0xff]
        %v2489 = vld [vmem:[%s2307 + $0x4d8] sm:$0xff]
        %v2490 = vld [vmem:[%s2307 + $0x4e0] sm:$0xff]
        %v2491 = vld [vmem:[%s2307 + $0x4e8] sm:$0xff]
        %v2492 = vld [vmem:[%s2307 + $0x4f0] sm:$0xff]
        %v2493 = vld [vmem:[%s2307 + $0x4f8] sm:$0xff]
        %v2494 = vld [vmem:[%s2307 + $0x500] sm:$0xff]
        %v2495 = vld [vmem:[%s2307 + $0x508] sm:$0xff]
        %v2496 = vld [vmem:[%s2307 + $0x510] sm:$0xff]
        %v2497 = vld [vmem:[%s2307 + $0x518] sm:$0xff]
        %v2498 = vld [vmem:[%s2307 + $0x520] sm:$0xff]
        %v2499 = vld [vmem:[%s2307 + $0x528] sm:$0xff]
        %v2500 = vld [vmem:[%s2307 + $0x530] sm:$0xff]
        %v2501 = vld [vmem:[%s2307 + $0x538] sm:$0xff]
        %v2502 = vld [vmem:[%s2307 + $0x540] sm:$0xff]
        %v2503 = vld [vmem:[%s2307 + $0x548] sm:$0xff]
        %v2504 = vld [vmem:[%s2307 + $0x550] sm:$0xff]
        %v2505 = vld [vmem:[%s2307 + $0x558] sm:$0xff]
        %v2506 = vld [vmem:[%s2307 + $0x560] sm:$0xff]
        %v2507 = vld [vmem:[%s2307 + $0x568] sm:$0xff]
        %v2508 = vld [vmem:[%s2307 + $0x570] sm:$0xff]
        %v2509 = vld [vmem:[%s2307 + $0x578] sm:$0xff]
        %v2510 = vld [vmem:[%s2307 + $0x580] sm:$0xff]
        %v2511 = vld [vmem:[%s2307 + $0x588] sm:$0xff]
        %v2512 = vld [vmem:[%s2307 + $0x590] sm:$0xff]
        %v2513 = vld [vmem:[%s2307 + $0x598] sm:$0xff]
        %v2514 = vld [vmem:[%s2307 + $0x5a0] sm:$0xff]
        %v2515 = vld [vmem:[%s2307 + $0x5a8] sm:$0xff]
        %v2516 = vld [vmem:[%s2307 + $0x5b0] sm:$0xff]
        %v2517 = vld [vmem:[%s2307 + $0x5b8] sm:$0xff]
        %v2518 = vld [vmem:[%s2307 + $0x5c0] sm:$0xff]
        %v2519 = vld [vmem:[%s2307 + $0x5c8] sm:$0xff]
        %v2520 = vld [vmem:[%s2307 + $0x5d0] sm:$0xff]
        %v2521 = vld [vmem:[%s2307 + $0x5d8] sm:$0xff]
        %v2522 = vld [vmem:[%s2307 + $0x5e0] sm:$0xff]
        %v2523 = vld [vmem:[%s2307 + $0x5e8] sm:$0xff]
        %v2524 = vld [vmem:[%s2307 + $0x5f0] sm:$0xff]
        %v2525 = vld [vmem:[%s2307 + $0x5f8] sm:$0xff]
        %v2526 = vld [vmem:[%s2307 + $0x600] sm:$0xff]
        %v2527 = vld [vmem:[%s2307 + $0x608] sm:$0xff]
        %v2528 = vld [vmem:[%s2307 + $0x610] sm:$0xff]
        %v2529 = vld [vmem:[%s2307 + $0x618] sm:$0xff]
        %v2530 = vld [vmem:[%s2307 + $0x620] sm:$0xff]
        %v2531 = vld [vmem:[%s2307 + $0x628] sm:$0xff]
        %v2532 = vld [vmem:[%s2307 + $0x630] sm:$0xff]
        %v2533 = vld [vmem:[%s2307 + $0x638] sm:$0xff]
        %v2534 = vld [vmem:[%s2307 + $0x640] sm:$0xff]
        %v2535 = vld [vmem:[%s2307 + $0x648] sm:$0xff]
        %v2536 = vld [vmem:[%s2307 + $0x650] sm:$0xff]
        %v2537 = vld [vmem:[%s2307 + $0x658] sm:$0xff]
        %v2538 = vld [vmem:[%s2307 + $0x660] sm:$0xff]
        %v2539 = vld [vmem:[%s2307 + $0x668] sm:$0xff]
        %v2540 = vld [vmem:[%s2307 + $0x670] sm:$0xff]
        %v2541 = vld [vmem:[%s2307 + $0x678] sm:$0xff]
        %v2542 = vld [vmem:[%s2307 + $0x680] sm:$0xff]
        %v2543 = vld [vmem:[%s2307 + $0x688] sm:$0xff]
        %v2544 = vld [vmem:[%s2307 + $0x690] sm:$0xff]
        %v2545 = vld [vmem:[%s2307 + $0x698] sm:$0xff]
        %v2546 = vld [vmem:[%s2307 + $0x6a0] sm:$0xff]
        %v2547 = vld [vmem:[%s2307 + $0x6a8] sm:$0xff]
        %v2548 = vld [vmem:[%s2307 + $0x6b0] sm:$0xff]
        %v2549 = vld [vmem:[%s2307 + $0x6b8] sm:$0xff]
        %v2550 = vld [vmem:[%s2307 + $0x6c0] sm:$0xff]
        %v2551 = vld [vmem:[%s2307 + $0x6c8] sm:$0xff]
        %v2552 = vld [vmem:[%s2307 + $0x6d0] sm:$0xff]
        %v2553 = vld [vmem:[%s2307 + $0x6d8] sm:$0xff]
        %v2554 = vld [vmem:[%s2307 + $0x6e0] sm:$0xff]
        %v2555 = vld [vmem:[%s2307 + $0x6e8] sm:$0xff]
        %v2556 = vld [vmem:[%s2307 + $0x6f0] sm:$0xff]
        %v2557 = vld [vmem:[%s2307 + $0x6f8] sm:$0xff]
        %v2558 = vld [vmem:[%s2307 + $0x700] sm:$0xff]
        %v2559 = vld [vmem:[%s2307 + $0x708] sm:$0xff]
        %v2560 = vld [vmem:[%s2307 + $0x710] sm:$0xff]
        %v2561 = vld [vmem:[%s2307 + $0x718] sm:$0xff]
        %v2562 = vld [vmem:[%s2307 + $0x720] sm:$0xff]
        %v2563 = vld [vmem:[%s2307 + $0x728] sm:$0xff]
        %v2564 = vld [vmem:[%s2307 + $0x730] sm:$0xff]
        %v2565 = vld [vmem:[%s2307 + $0x738] sm:$0xff]
        %v2566 = vld [vmem:[%s2307 + $0x740] sm:$0xff]
        %v2567 = vld [vmem:[%s2307 + $0x748] sm:$0xff]
        %v2568 = vld [vmem:[%s2307 + $0x750] sm:$0xff]
        %v2569 = vld [vmem:[%s2307 + $0x758] sm:$0xff]
        %v2570 = vld [vmem:[%s2307 + $0x760] sm:$0xff]
        %v2571 = vld [vmem:[%s2307 + $0x768] sm:$0xff]
        %v2572 = vld [vmem:[%s2307 + $0x770] sm:$0xff]
        %v2573 = vld [vmem:[%s2307 + $0x778] sm:$0xff]
        %v2574 = vld [vmem:[%s2307 + $0x780] sm:$0xff]
        %v2575 = vld [vmem:[%s2307 + $0x788] sm:$0xff]
        %v2576 = vld [vmem:[%s2307 + $0x790] sm:$0xff]
        %v2577 = vld [vmem:[%s2307 + $0x798] sm:$0xff]
        %v2578 = vld [vmem:[%s2307 + $0x7a0] sm:$0xff]
        %v2579 = vld [vmem:[%s2307 + $0x7a8] sm:$0xff]
        %v2580 = vld [vmem:[%s2307 + $0x7b0] sm:$0xff]
        %v2581 = vld [vmem:[%s2307 + $0x7b8] sm:$0xff]
        %v2582 = vld [vmem:[%s2307 + $0x7c0] sm:$0xff]
        %v2583 = vld [vmem:[%s2307 + $0x7c8] sm:$0xff]
        %v2584 = vld [vmem:[%s2307 + $0x7d0] sm:$0xff]
        %v2585 = vld [vmem:[%s2307 + $0x7d8] sm:$0xff]
        %v2586 = vld [vmem:[%s2307 + $0x7e0] sm:$0xff]
        %v2587 = vld [vmem:[%s2307 + $0x7e8] sm:$0xff]
        %v2588 = vld [vmem:[%s2307 + $0x7f0] sm:$0xff]
        %v2589 = vld [vmem:[%s2307 + $0x7f8] sm:$0xff]
        %v2590 = vld [vmem:[#allocation2] sm:$0xf]
        %v2591 = vadd.f32 %v2334, %v2335
        %v2592 = vadd.f32 %v2591, %v2336
        %v2593 = vadd.f32 %v2592, %v2337
        %v2594 = vadd.f32 %v2593, %v2338
        %v2595 = vadd.f32 %v2594, %v2339
        %v2596 = vadd.f32 %v2595, %v2340
        %v2597 = vadd.f32 %v2596, %v2341
        %v2598 = vadd.f32 %v2597, %v2342
        %v2599 = vadd.f32 %v2598, %v2343
        %v2600 = vadd.f32 %v2599, %v2344
        %v2601 = vadd.f32 %v2600, %v2345
        %v2602 = vadd.f32 %v2601, %v2346
        %v2603 = vadd.f32 %v2602, %v2347
        %v2604 = vadd.f32 %v2603, %v2348
        %v2605 = vadd.f32 %v2604, %v2349
        %v2606 = vadd.f32 %v2605, %v2350
        %v2607 = vadd.f32 %v2606, %v2351
        %v2608 = vadd.f32 %v2607, %v2352
        %v2609 = vadd.f32 %v2608, %v2353
        %v2610 = vadd.f32 %v2609, %v2354
        %v2611 = vadd.f32 %v2610, %v2355
        %v2612 = vadd.f32 %v2611, %v2356
        %v2613 = vadd.f32 %v2612, %v2357
        %v2614 = vadd.f32 %v2613, %v2358
        %v2615 = vadd.f32 %v2614, %v2359
        %v2616 = vadd.f32 %v2615, %v2360
        %v2617 = vadd.f32 %v2616, %v2361
        %v2618 = vadd.f32 %v2617, %v2362
        %v2619 = vadd.f32 %v2618, %v2363
        %v2620 = vadd.f32 %v2619, %v2364
        %v2621 = vadd.f32 %v2620, %v2365
        %v2622 = vadd.f32 %v2621, %v2366
        %v2623 = vadd.f32 %v2622, %v2367
        %v2624 = vadd.f32 %v2623, %v2368
        %v2625 = vadd.f32 %v2624, %v2369
        %v2626 = vadd.f32 %v2625, %v2370
        %v2627 = vadd.f32 %v2626, %v2371
        %v2628 = vadd.f32 %v2627, %v2372
        %v2629 = vadd.f32 %v2628, %v2373
        %v2630 = vadd.f32 %v2629, %v2374
        %v2631 = vadd.f32 %v2630, %v2375
        %v2632 = vadd.f32 %v2631, %v2376
        %v2633 = vadd.f32 %v2632, %v2377
        %v2634 = vadd.f32 %v2633, %v2378
        %v2635 = vadd.f32 %v2634, %v2379
        %v2636 = vadd.f32 %v2635, %v2380
        %v2637 = vadd.f32 %v2636, %v2381
        %v2638 = vadd.f32 %v2637, %v2382
        %v2639 = vadd.f32 %v2638, %v2383
        %v2640 = vadd.f32 %v2639, %v2384
        %v2641 = vadd.f32 %v2640, %v2385
        %v2642 = vadd.f32 %v2641, %v2386
        %v2643 = vadd.f32 %v2642, %v2387
        %v2644 = vadd.f32 %v2643, %v2388
        %v2645 = vadd.f32 %v2644, %v2389
        %v2646 = vadd.f32 %v2645, %v2390
        %v2647 = vadd.f32 %v2646, %v2391
        %v2648 = vadd.f32 %v2647, %v2392
        %v2649 = vadd.f32 %v2648, %v2393
        %v2650 = vadd.f32 %v2649, %v2394
        %v2651 = vadd.f32 %v2650, %v2395
        %v2652 = vadd.f32 %v2651, %v2396
        %v2653 = vadd.f32 %v2652, %v2397
        %v2654 = vrot.slane %v2653, 4
        %v2655 = vadd.f32 %v2653, %v2654
        %v2656 = vrot.slane %v2655, 2
        %v2657 = vadd.f32 %v2655, %v2656
        %v2658 = vrot.slane %v2657, 1
        %v2659 = vadd.f32 %v2657, %v2658
        %v2660 = vadd.f32 %v2398, %v2399
        %v2661 = vadd.f32 %v2660, %v2400
        %v2662 = vadd.f32 %v2661, %v2401
        %v2663 = vadd.f32 %v2662, %v2402
        %v2664 = vadd.f32 %v2663, %v2403
        %v2665 = vadd.f32 %v2664, %v2404
        %v2666 = vadd.f32 %v2665, %v2405
        %v2667 = vadd.f32 %v2666, %v2406
        %v2668 = vadd.f32 %v2667, %v2407
        %v2669 = vadd.f32 %v2668, %v2408
        %v2670 = vadd.f32 %v2669, %v2409
        %v2671 = vadd.f32 %v2670, %v2410
        %v2672 = vadd.f32 %v2671, %v2411
        %v2673 = vadd.f32 %v2672, %v2412
        %v2674 = vadd.f32 %v2673, %v2413
        %v2675 = vadd.f32 %v2674, %v2414
        %v2676 = vadd.f32 %v2675, %v2415
        %v2677 = vadd.f32 %v2676, %v2416
        %v2678 = vadd.f32 %v2677, %v2417
        %v2679 = vadd.f32 %v2678, %v2418
        %v2680 = vadd.f32 %v2679, %v2419
        %v2681 = vadd.f32 %v2680, %v2420
        %v2682 = vadd.f32 %v2681, %v2421
        %v2683 = vadd.f32 %v2682, %v2422
        %v2684 = vadd.f32 %v2683, %v2423
        %v2685 = vadd.f32 %v2684, %v2424
        %v2686 = vadd.f32 %v2685, %v2425
        %v2687 = vadd.f32 %v2686, %v2426
        %v2688 = vadd.f32 %v2687, %v2427
        %v2689 = vadd.f32 %v2688, %v2428
        %v2690 = vadd.f32 %v2689, %v2429
        %v2691 = vadd.f32 %v2690, %v2430
        %v2692 = vadd.f32 %v2691, %v2431
        %v2693 = vadd.f32 %v2692, %v2432
        %v2694 = vadd.f32 %v2693, %v2433
        %v2695 = vadd.f32 %v2694, %v2434
        %v2696 = vadd.f32 %v2695, %v2435
        %v2697 = vadd.f32 %v2696, %v2436
        %v2698 = vadd.f32 %v2697, %v2437
        %v2699 = vadd.f32 %v2698, %v2438
        %v2700 = vadd.f32 %v2699, %v2439
        %v2701 = vadd.f32 %v2700, %v2440
        %v2702 = vadd.f32 %v2701, %v2441
        %v2703 = vadd.f32 %v2702, %v2442
        %v2704 = vadd.f32 %v2703, %v2443
        %v2705 = vadd.f32 %v2704, %v2444
        %v2706 = vadd.f32 %v2705, %v2445
        %v2707 = vadd.f32 %v2706, %v2446
        %v2708 = vadd.f32 %v2707, %v2447
        %v2709 = vadd.f32 %v2708, %v2448
        %v2710 = vadd.f32 %v2709, %v2449
        %v2711 = vadd.f32 %v2710, %v2450
        %v2712 = vadd.f32 %v2711, %v2451
        %v2713 = vadd.f32 %v2712, %v2452
        %v2714 = vadd.f32 %v2713, %v2453
        %v2715 = vadd.f32 %v2714, %v2454
        %v2716 = vadd.f32 %v2715, %v2455
        %v2717 = vadd.f32 %v2716, %v2456
        %v2718 = vadd.f32 %v2717, %v2457
        %v2719 = vadd.f32 %v2718, %v2458
        %v2720 = vadd.f32 %v2719, %v2459
        %v2721 = vadd.f32 %v2720, %v2460
        %v2722 = vadd.f32 %v2721, %v2461
        %v2723 = vrot.slane %v2722, 4
        %v2724 = vadd.f32 %v2722, %v2723
        %v2725 = vrot.slane %v2724, 2
        %v2726 = vadd.f32 %v2724, %v2725
        %v2727 = vrot.slane %v2726, 1
        %v2728 = vadd.f32 %v2726, %v2727
        %v2729 = vadd.f32 %v2462, %v2463
        %v2730 = vadd.f32 %v2729, %v2464
        %v2731 = vadd.f32 %v2730, %v2465
        %v2732 = vadd.f32 %v2731, %v2466
        %v2733 = vadd.f32 %v2732, %v2467
        %v2734 = vadd.f32 %v2733, %v2468
        %v2735 = vadd.f32 %v2734, %v2469
        %v2736 = vadd.f32 %v2735, %v2470
        %v2737 = vadd.f32 %v2736, %v2471
        %v2738 = vadd.f32 %v2737, %v2472
        %v2739 = vadd.f32 %v2738, %v2473
        %v2740 = vadd.f32 %v2739, %v2474
        %v2741 = vadd.f32 %v2740, %v2475
        %v2742 = vadd.f32 %v2741, %v2476
        %v2743 = vadd.f32 %v2742, %v2477
        %v2744 = vadd.f32 %v2743, %v2478
        %v2745 = vadd.f32 %v2744, %v2479
        %v2746 = vadd.f32 %v2745, %v2480
        %v2747 = vadd.f32 %v2746, %v2481
        %v2748 = vadd.f32 %v2747, %v2482
        %v2749 = vadd.f32 %v2748, %v2483
        %v2750 = vadd.f32 %v2749, %v2484
        %v2751 = vadd.f32 %v2750, %v2485
        %v2752 = vadd.f32 %v2751, %v2486
        %v2753 = vadd.f32 %v2752, %v2487
        %v2754 = vadd.f32 %v2753, %v2488
        %v2755 = vadd.f32 %v2754, %v2489
        %v2756 = vadd.f32 %v2755, %v2490
        %v2757 = vadd.f32 %v2756, %v2491
        %v2758 = vadd.f32 %v2757, %v2492
        %v2759 = vadd.f32 %v2758, %v2493
        %v2760 = vadd.f32 %v2759, %v2494
        %v2761 = vadd.f32 %v2760, %v2495
        %v2762 = vadd.f32 %v2761, %v2496
        %v2763 = vadd.f32 %v2762, %v2497
        %v2764 = vadd.f32 %v2763, %v2498
        %v2765 = vadd.f32 %v2764, %v2499
        %v2766 = vadd.f32 %v2765, %v2500
        %v2767 = vadd.f32 %v2766, %v2501
        %v2768 = vadd.f32 %v2767, %v2502
        %v2769 = vadd.f32 %v2768, %v2503
        %v2770 = vadd.f32 %v2769, %v2504
        %v2771 = vadd.f32 %v2770, %v2505
        %v2772 = vadd.f32 %v2771, %v2506
        %v2773 = vadd.f32 %v2772, %v2507
        %v2774 = vadd.f32 %v2773, %v2508
        %v2775 = vadd.f32 %v2774, %v2509
        %v2776 = vadd.f32 %v2775, %v2510
        %v2777 = vadd.f32 %v2776, %v2511
        %v2778 = vadd.f32 %v2777, %v2512
        %v2779 = vadd.f32 %v2778, %v2513
        %v2780 = vadd.f32 %v2779, %v2514
        %v2781 = vadd.f32 %v2780, %v2515
        %v2782 = vadd.f32 %v2781, %v2516
        %v2783 = vadd.f32 %v2782, %v2517
        %v2784 = vadd.f32 %v2783, %v2518
        %v2785 = vadd.f32 %v2784, %v2519
        %v2786 = vadd.f32 %v2785, %v2520
        %v2787 = vadd.f32 %v2786, %v2521
        %v2788 = vadd.f32 %v2787, %v2522
        %v2789 = vadd.f32 %v2788, %v2523
        %v2790 = vadd.f32 %v2789, %v2524
        %v2791 = vadd.f32 %v2790, %v2525
        %v2792 = vrot.slane %v2791, 4
        %v2793 = vadd.f32 %v2791, %v2792
        %v2794 = vrot.slane %v2793, 2
        %v2795 = vadd.f32 %v2793, %v2794
        %v2796 = vrot.slane %v2795, 1
        %v2797 = vadd.f32 %v2795, %v2796
        %v2798 = vadd.f32 %v2526, %v2527
        %v2799 = vadd.f32 %v2798, %v2528
        %v2800 = vadd.f32 %v2799, %v2529
        %v2801 = vadd.f32 %v2800, %v2530
        %v2802 = vadd.f32 %v2801, %v2531
        %v2803 = vadd.f32 %v2802, %v2532
        %v2804 = vadd.f32 %v2803, %v2533
        %v2805 = vadd.f32 %v2804, %v2534
        %v2806 = vadd.f32 %v2805, %v2535
        %v2807 = vadd.f32 %v2806, %v2536
        %v2808 = vadd.f32 %v2807, %v2537
        %v2809 = vadd.f32 %v2808, %v2538
        %v2810 = vadd.f32 %v2809, %v2539
        %v2811 = vadd.f32 %v2810, %v2540
        %v2812 = vadd.f32 %v2811, %v2541
        %v2813 = vadd.f32 %v2812, %v2542
        %v2814 = vadd.f32 %v2813, %v2543
        %v2815 = vadd.f32 %v2814, %v2544
        %v2816 = vadd.f32 %v2815, %v2545
        %v2817 = vadd.f32 %v2816, %v2546
        %v2818 = vadd.f32 %v2817, %v2547
        %v2819 = vadd.f32 %v2818, %v2548
        %v2820 = vadd.f32 %v2819, %v2549
        %v2821 = vadd.f32 %v2820, %v2550
        %v2822 = vadd.f32 %v2821, %v2551
        %v2823 = vadd.f32 %v2822, %v2552
        %v2824 = vadd.f32 %v2823, %v2553
        %v2825 = vadd.f32 %v2824, %v2554
        %v2826 = vadd.f32 %v2825, %v2555
        %v2827 = vadd.f32 %v2826, %v2556
        %v2828 = vadd.f32 %v2827, %v2557
        %v2829 = vadd.f32 %v2828, %v2558
        %v2830 = vadd.f32 %v2829, %v2559
        %v2831 = vadd.f32 %v2830, %v2560
        %v2832 = vadd.f32 %v2831, %v2561
        %v2833 = vadd.f32 %v2832, %v2562
        %v2834 = vadd.f32 %v2833, %v2563
        %v2835 = vadd.f32 %v2834, %v2564
        %v2836 = vadd.f32 %v2835, %v2565
        %v2837 = vadd.f32 %v2836, %v2566
        %v2838 = vadd.f32 %v2837, %v2567
        %v2839 = vadd.f32 %v2838, %v2568
        %v2840 = vadd.f32 %v2839, %v2569
        %v2841 = vadd.f32 %v2840, %v2570
        %v2842 = vadd.f32 %v2841, %v2571
        %v2843 = vadd.f32 %v2842, %v2572
        %v2844 = vadd.f32 %v2843, %v2573
        %v2845 = vadd.f32 %v2844, %v2574
        %v2846 = vadd.f32 %v2845, %v2575
        %v2847 = vadd.f32 %v2846, %v2576
        %v2848 = vadd.f32 %v2847, %v2577
        %v2849 = vadd.f32 %v2848, %v2578
        %v2850 = vadd.f32 %v2849, %v2579
        %v2851 = vadd.f32 %v2850, %v2580
        %v2852 = vadd.f32 %v2851, %v2581
        %v2853 = vadd.f32 %v2852, %v2582
        %v2854 = vadd.f32 %v2853, %v2583
        %v2855 = vadd.f32 %v2854, %v2584
        %v2856 = vadd.f32 %v2855, %v2585
        %v2857 = vadd.f32 %v2856, %v2586
        %v2858 = vadd.f32 %v2857, %v2587
        %v2859 = vadd.f32 %v2858, %v2588
        %v2860 = vadd.f32 %v2859, %v2589
        %v2861 = vrot.slane %v2860, 4
        %v2862 = vadd.f32 %v2860, %v2861
        %v2863 = vrot.slane %v2862, 2
        %v2864 = vadd.f32 %v2862, %v2863
        %v2865 = vrot.slane %v2864, 1
        %v2866 = vadd.f32 %v2864, %v2865
        %vm2871 = vcmask 1041409
        %v2872 = vsel %vm2871, %v2728, %v2659
        %vm2873 = vcmask 1042434
        %v2874 = vsel %vm2873, %v2797, %v2872
        %vm2875 = vcmask 1043459
        %v2876 = vsel %vm2875, %v2866, %v2874
        %v2878 = vadd.f32 %v2590, %v2876
        %2879 = vst [vmem:[#allocation2] sm:$0xf] %v2878
        %v2880 = vld [vmem:[#allocation3] sm:$0xf]
        %v2881 = vmax.f32 %v2334, %v2335
        %v2882 = vmax.f32 %v2881, %v2336
        %v2883 = vmax.f32 %v2882, %v2337
        %v2884 = vmax.f32 %v2883, %v2338
        %v2885 = vmax.f32 %v2884, %v2339
        %v2886 = vmax.f32 %v2885, %v2340
        %v2887 = vmax.f32 %v2886, %v2341
        %v2888 = vmax.f32 %v2887, %v2342
        %v2889 = vmax.f32 %v2888, %v2343
        %v2890 = vmax.f32 %v2889, %v2344
        %v2891 = vmax.f32 %v2890, %v2345
        %v2892 = vmax.f32 %v2891, %v2346
        %v2893 = vmax.f32 %v2892, %v2347
        %v2894 = vmax.f32 %v2893, %v2348
        %v2895 = vmax.f32 %v2894, %v2349
        %v2896 = vmax.f32 %v2895, %v2350
        %v2897 = vmax.f32 %v2896, %v2351
        %v2898 = vmax.f32 %v2897, %v2352
        %v2899 = vmax.f32 %v2898, %v2353
        %v2900 = vmax.f32 %v2899, %v2354
        %v2901 = vmax.f32 %v2900, %v2355
        %v2902 = vmax.f32 %v2901, %v2356
        %v2903 = vmax.f32 %v2902, %v2357
        %v2904 = vmax.f32 %v2903, %v2358
        %v2905 = vmax.f32 %v2904, %v2359
        %v2906 = vmax.f32 %v2905, %v2360
        %v2907 = vmax.f32 %v2906, %v2361
        %v2908 = vmax.f32 %v2907, %v2362
        %v2909 = vmax.f32 %v2908, %v2363
        %v2910 = vmax.f32 %v2909, %v2364
        %v2911 = vmax.f32 %v2910, %v2365
        %v2912 = vmax.f32 %v2911, %v2366
        %v2913 = vmax.f32 %v2912, %v2367
        %v2914 = vmax.f32 %v2913, %v2368
        %v2915 = vmax.f32 %v2914, %v2369
        %v2916 = vmax.f32 %v2915, %v2370
        %v2917 = vmax.f32 %v2916, %v2371
        %v2918 = vmax.f32 %v2917, %v2372
        %v2919 = vmax.f32 %v2918, %v2373
        %v2920 = vmax.f32 %v2919, %v2374
        %v2921 = vmax.f32 %v2920, %v2375
        %v2922 = vmax.f32 %v2921, %v2376
        %v2923 = vmax.f32 %v2922, %v2377
        %v2924 = vmax.f32 %v2923, %v2378
        %v2925 = vmax.f32 %v2924, %v2379
        %v2926 = vmax.f32 %v2925, %v2380
        %v2927 = vmax.f32 %v2926, %v2381
        %v2928 = vmax.f32 %v2927, %v2382
        %v2929 = vmax.f32 %v2928, %v2383
        %v2930 = vmax.f32 %v2929, %v2384
        %v2931 = vmax.f32 %v2930, %v2385
        %v2932 = vmax.f32 %v2931, %v2386
        %v2933 = vmax.f32 %v2932, %v2387
        %v2934 = vmax.f32 %v2933, %v2388
        %v2935 = vmax.f32 %v2934, %v2389
        %v2936 = vmax.f32 %v2935, %v2390
        %v2937 = vmax.f32 %v2936, %v2391
        %v2938 = vmax.f32 %v2937, %v2392
        %v2939 = vmax.f32 %v2938, %v2393
        %v2940 = vmax.f32 %v2939, %v2394
        %v2941 = vmax.f32 %v2940, %v2395
        %v2942 = vmax.f32 %v2941, %v2396
        %v2943 = vmax.f32 %v2942, %v2397
        %v2944 = vrot.slane %v2943, 4
        %v2945 = vmax.f32 %v2943, %v2944
        %v2946 = vrot.slane %v2945, 2
        %v2947 = vmax.f32 %v2945, %v2946
        %v2948 = vrot.slane %v2947, 1
        %v2949 = vmax.f32 %v2947, %v2948
        %v2950 = vmax.f32 %v2398, %v2399
        %v2951 = vmax.f32 %v2950, %v2400
        %v2952 = vmax.f32 %v2951, %v2401
        %v2953 = vmax.f32 %v2952, %v2402
        %v2954 = vmax.f32 %v2953, %v2403
        %v2955 = vmax.f32 %v2954, %v2404
        %v2956 = vmax.f32 %v2955, %v2405
        %v2957 = vmax.f32 %v2956, %v2406
        %v2958 = vmax.f32 %v2957, %v2407
        %v2959 = vmax.f32 %v2958, %v2408
        %v2960 = vmax.f32 %v2959, %v2409
        %v2961 = vmax.f32 %v2960, %v2410
        %v2962 = vmax.f32 %v2961, %v2411
        %v2963 = vmax.f32 %v2962, %v2412
        %v2964 = vmax.f32 %v2963, %v2413
        %v2965 = vmax.f32 %v2964, %v2414
        %v2966 = vmax.f32 %v2965, %v2415
        %v2967 = vmax.f32 %v2966, %v2416
        %v2968 = vmax.f32 %v2967, %v2417
        %v2969 = vmax.f32 %v2968, %v2418
        %v2970 = vmax.f32 %v2969, %v2419
        %v2971 = vmax.f32 %v2970, %v2420
        %v2972 = vmax.f32 %v2971, %v2421
        %v2973 = vmax.f32 %v2972, %v2422
        %v2974 = vmax.f32 %v2973, %v2423
        %v2975 = vmax.f32 %v2974, %v2424
        %v2976 = vmax.f32 %v2975, %v2425
        %v2977 = vmax.f32 %v2976, %v2426
        %v2978 = vmax.f32 %v2977, %v2427
        %v2979 = vmax.f32 %v2978, %v2428
        %v2980 = vmax.f32 %v2979, %v2429
        %v2981 = vmax.f32 %v2980, %v2430
        %v2982 = vmax.f32 %v2981, %v2431
        %v2983 = vmax.f32 %v2982, %v2432
        %v2984 = vmax.f32 %v2983, %v2433
        %v2985 = vmax.f32 %v2984, %v2434
        %v2986 = vmax.f32 %v2985, %v2435
        %v2987 = vmax.f32 %v2986, %v2436
        %v2988 = vmax.f32 %v2987, %v2437
        %v2989 = vmax.f32 %v2988, %v2438
        %v2990 = vmax.f32 %v2989, %v2439
        %v2991 = vmax.f32 %v2990, %v2440
        %v2992 = vmax.f32 %v2991, %v2441
        %v2993 = vmax.f32 %v2992, %v2442
        %v2994 = vmax.f32 %v2993, %v2443
        %v2995 = vmax.f32 %v2994, %v2444
        %v2996 = vmax.f32 %v2995, %v2445
        %v2997 = vmax.f32 %v2996, %v2446
        %v2998 = vmax.f32 %v2997, %v2447
        %v2999 = vmax.f32 %v2998, %v2448
        %v3000 = vmax.f32 %v2999, %v2449
        %v3001 = vmax.f32 %v3000, %v2450
        %v3002 = vmax.f32 %v3001, %v2451
        %v3003 = vmax.f32 %v3002, %v2452
        %v3004 = vmax.f32 %v3003, %v2453
        %v3005 = vmax.f32 %v3004, %v2454
        %v3006 = vmax.f32 %v3005, %v2455
        %v3007 = vmax.f32 %v3006, %v2456
        %v3008 = vmax.f32 %v3007, %v2457
        %v3009 = vmax.f32 %v3008, %v2458
        %v3010 = vmax.f32 %v3009, %v2459
        %v3011 = vmax.f32 %v3010, %v2460
        %v3012 = vmax.f32 %v3011, %v2461
        %v3013 = vrot.slane %v3012, 4
        %v3014 = vmax.f32 %v3012, %v3013
        %v3015 = vrot.slane %v3014, 2
        %v3016 = vmax.f32 %v3014, %v3015
        %v3017 = vrot.slane %v3016, 1
        %v3018 = vmax.f32 %v3016, %v3017
        %v3019 = vmax.f32 %v2462, %v2463
        %v3020 = vmax.f32 %v3019, %v2464
        %v3021 = vmax.f32 %v3020, %v2465
        %v3022 = vmax.f32 %v3021, %v2466
        %v3023 = vmax.f32 %v3022, %v2467
        %v3024 = vmax.f32 %v3023, %v2468
        %v3025 = vmax.f32 %v3024, %v2469
        %v3026 = vmax.f32 %v3025, %v2470
        %v3027 = vmax.f32 %v3026, %v2471
        %v3028 = vmax.f32 %v3027, %v2472
        %v3029 = vmax.f32 %v3028, %v2473
        %v3030 = vmax.f32 %v3029, %v2474
        %v3031 = vmax.f32 %v3030, %v2475
        %v3032 = vmax.f32 %v3031, %v2476
        %v3033 = vmax.f32 %v3032, %v2477
        %v3034 = vmax.f32 %v3033, %v2478
        %v3035 = vmax.f32 %v3034, %v2479
        %v3036 = vmax.f32 %v3035, %v2480
        %v3037 = vmax.f32 %v3036, %v2481
        %v3038 = vmax.f32 %v3037, %v2482
        %v3039 = vmax.f32 %v3038, %v2483
        %v3040 = vmax.f32 %v3039, %v2484
        %v3041 = vmax.f32 %v3040, %v2485
        %v3042 = vmax.f32 %v3041, %v2486
        %v3043 = vmax.f32 %v3042, %v2487
        %v3044 = vmax.f32 %v3043, %v2488
        %v3045 = vmax.f32 %v3044, %v2489
        %v3046 = vmax.f32 %v3045, %v2490
        %v3047 = vmax.f32 %v3046, %v2491
        %v3048 = vmax.f32 %v3047, %v2492
        %v3049 = vmax.f32 %v3048, %v2493
        %v3050 = vmax.f32 %v3049, %v2494
        %v3051 = vmax.f32 %v3050, %v2495
        %v3052 = vmax.f32 %v3051, %v2496
        %v3053 = vmax.f32 %v3052, %v2497
        %v3054 = vmax.f32 %v3053, %v2498
        %v3055 = vmax.f32 %v3054, %v2499
        %v3056 = vmax.f32 %v3055, %v2500
        %v3057 = vmax.f32 %v3056, %v2501
        %v3058 = vmax.f32 %v3057, %v2502
        %v3059 = vmax.f32 %v3058, %v2503
        %v3060 = vmax.f32 %v3059, %v2504
        %v3061 = vmax.f32 %v3060, %v2505
        %v3062 = vmax.f32 %v3061, %v2506
        %v3063 = vmax.f32 %v3062, %v2507
        %v3064 = vmax.f32 %v3063, %v2508
        %v3065 = vmax.f32 %v3064, %v2509
        %v3066 = vmax.f32 %v3065, %v2510
        %v3067 = vmax.f32 %v3066, %v2511
        %v3068 = vmax.f32 %v3067, %v2512
        %v3069 = vmax.f32 %v3068, %v2513
        %v3070 = vmax.f32 %v3069, %v2514
        %v3071 = vmax.f32 %v3070, %v2515
        %v3072 = vmax.f32 %v3071, %v2516
        %v3073 = vmax.f32 %v3072, %v2517
        %v3074 = vmax.f32 %v3073, %v2518
        %v3075 = vmax.f32 %v3074, %v2519
        %v3076 = vmax.f32 %v3075, %v2520
        %v3077 = vmax.f32 %v3076, %v2521
        %v3078 = vmax.f32 %v3077, %v2522
        %v3079 = vmax.f32 %v3078, %v2523
        %v3080 = vmax.f32 %v3079, %v2524
        %v3081 = vmax.f32 %v3080, %v2525
        %v3082 = vrot.slane %v3081, 4
        %v3083 = vmax.f32 %v3081, %v3082
        %v3084 = vrot.slane %v3083, 2
        %v3085 = vmax.f32 %v3083, %v3084
        %v3086 = vrot.slane %v3085, 1
        %v3087 = vmax.f32 %v3085, %v3086
        %v3088 = vmax.f32 %v2526, %v2527
        %v3089 = vmax.f32 %v3088, %v2528
        %v3090 = vmax.f32 %v3089, %v2529
        %v3091 = vmax.f32 %v3090, %v2530
        %v3092 = vmax.f32 %v3091, %v2531
        %v3093 = vmax.f32 %v3092, %v2532
        %v3094 = vmax.f32 %v3093, %v2533
        %v3095 = vmax.f32 %v3094, %v2534
        %v3096 = vmax.f32 %v3095, %v2535
        %v3097 = vmax.f32 %v3096, %v2536
        %v3098 = vmax.f32 %v3097, %v2537
        %v3099 = vmax.f32 %v3098, %v2538
        %v3100 = vmax.f32 %v3099, %v2539
        %v3101 = vmax.f32 %v3100, %v2540
        %v3102 = vmax.f32 %v3101, %v2541
        %v3103 = vmax.f32 %v3102, %v2542
        %v3104 = vmax.f32 %v3103, %v2543
        %v3105 = vmax.f32 %v3104, %v2544
        %v3106 = vmax.f32 %v3105, %v2545
        %v3107 = vmax.f32 %v3106, %v2546
        %v3108 = vmax.f32 %v3107, %v2547
        %v3109 = vmax.f32 %v3108, %v2548
        %v3110 = vmax.f32 %v3109, %v2549
        %v3111 = vmax.f32 %v3110, %v2550
        %v3112 = vmax.f32 %v3111, %v2551
        %v3113 = vmax.f32 %v3112, %v2552
        %v3114 = vmax.f32 %v3113, %v2553
        %v3115 = vmax.f32 %v3114, %v2554
        %v3116 = vmax.f32 %v3115, %v2555
        %v3117 = vmax.f32 %v3116, %v2556
        %v3118 = vmax.f32 %v3117, %v2557
        %v3119 = vmax.f32 %v3118, %v2558
        %v3120 = vmax.f32 %v3119, %v2559
        %v3121 = vmax.f32 %v3120, %v2560
        %v3122 = vmax.f32 %v3121, %v2561
        %v3123 = vmax.f32 %v3122, %v2562
        %v3124 = vmax.f32 %v3123, %v2563
        %v3125 = vmax.f32 %v3124, %v2564
        %v3126 = vmax.f32 %v3125, %v2565
        %v3127 = vmax.f32 %v3126, %v2566
        %v3128 = vmax.f32 %v3127, %v2567
        %v3129 = vmax.f32 %v3128, %v2568
        %v3130 = vmax.f32 %v3129, %v2569
        %v3131 = vmax.f32 %v3130, %v2570
        %v3132 = vmax.f32 %v3131, %v2571
        %v3133 = vmax.f32 %v3132, %v2572
        %v3134 = vmax.f32 %v3133, %v2573
        %v3135 = vmax.f32 %v3134, %v2574
        %v3136 = vmax.f32 %v3135, %v2575
        %v3137 = vmax.f32 %v3136, %v2576
        %v3138 = vmax.f32 %v3137, %v2577
        %v3139 = vmax.f32 %v3138, %v2578
        %v3140 = vmax.f32 %v3139, %v2579
        %v3141 = vmax.f32 %v3140, %v2580
        %v3142 = vmax.f32 %v3141, %v2581
        %v3143 = vmax.f32 %v3142, %v2582
        %v3144 = vmax.f32 %v3143, %v2583
        %v3145 = vmax.f32 %v3144, %v2584
        %v3146 = vmax.f32 %v3145, %v2585
        %v3147 = vmax.f32 %v3146, %v2586
        %v3148 = vmax.f32 %v3147, %v2587
        %v3149 = vmax.f32 %v3148, %v2588
        %v3150 = vmax.f32 %v3149, %v2589
        %v3151 = vrot.slane %v3150, 4
        %v3152 = vmax.f32 %v3150, %v3151
        %v3153 = vrot.slane %v3152, 2
        %v3154 = vmax.f32 %v3152, %v3153
        %v3155 = vrot.slane %v3154, 1
        %v3156 = vmax.f32 %v3154, %v3155
        %v3161 = vsel %vm2871, %v3018, %v2949
        %v3162 = vsel %vm2873, %v3087, %v3161
        %v3163 = vsel %vm2875, %v3156, %v3162
        %v3165 = vmax.f32 %v2880, %v3163
        %3166 = vst [vmem:[#allocation3] sm:$0xf] %v3165
        %p3167 = scmp.eq.s32.totalorder %s17, 1
        // Predicated region
        $region97: #{channel_attention_forward.1} parent=87 // pred_check
          %p3168 = pneg %p3167
        $region98: #{channel_attention_forward.1} parent=87 // pred_check_branch
          %3170 = sbr.rel (%p3168) target = $region100
        $region99: #{channel_attention_forward.1} parent=87 // pred_region
          %v3171 = vld [vmem:[%s1] sm:$0xff]
          %v3172 = vld [vmem:[%s1 + $0x8] sm:$0xff]
          %v3173 = vld [vmem:[%s1 + $0x10] sm:$0xff]
          %v3174 = vld [vmem:[%s1 + $0x18] sm:$0xff]
          %v3175 = vld [vmem:[%s1 + $0x20] sm:$0xff]
          %v3176 = vld [vmem:[%s1 + $0x28] sm:$0xff]
          %v3177 = vld [vmem:[%s1 + $0x30] sm:$0xff]
          %v3178 = vld [vmem:[%s1 + $0x38] sm:$0xff]
          %v3179 = vld [vmem:[%s1 + $0x40] sm:$0xff]
          %v3180 = vld [vmem:[%s1 + $0x48] sm:$0xff]
          %v3181 = vld [vmem:[%s1 + $0x50] sm:$0xff]
          %v3182 = vld [vmem:[%s1 + $0x58] sm:$0xff]
          %v3183 = vld [vmem:[%s1 + $0x60] sm:$0xff]
          %v3184 = vld [vmem:[%s1 + $0x68] sm:$0xff]
          %v3185 = vld [vmem:[%s1 + $0x70] sm:$0xff]
          %v3186 = vld [vmem:[%s1 + $0x78] sm:$0xff]
          %v3187 = vld [vmem:[%s2] sm:$0x1]
          %v3188 = vld [vmem:[%s3] sm:$0xff]
          %v3189 = vld [vmem:[%s4] sm:$0x1]
          %v3190 = vld [vmem:[#allocation2] sm:$0xf]
          %v3191 = vmul.f32 %v3190, 0.0009765625
          %v3193 = vperm.slane %v3187, 0
          %3195 = vmatpush.msra.mxu0 %v3186
          %3196 = vmatpush.msra.mxu0 %v3185
          %3197 = vmatpush.msra.mxu0 %v3184
          %3198 = vmatpush.msra.mxu0 %v3183
          %3199 = vmatpush.msra.mxu0 %v3182
          %3200 = vmatpush.msra.mxu0 %v3181
          %3201 = vmatpush.msra.mxu0 %v3180
          %3202 = vmatpush.msra.mxu0 %v3179
          %3203 = vmatpush.msra.mxu0 %v3178
          %3204 = vmatpush.msra.mxu0 %v3177
          %3205 = vmatpush.msra.mxu0 %v3176
          %3206 = vmatpush.msra.mxu0 %v3175
          %3207 = vmatpush.msra.mxu0 %v3174
          %3208 = vmatpush.msra.mxu0 %v3173
          %3209 = vmatpush.msra.mxu0 %v3172
          %3210 = vmatpush.msra.mxu0 %v3171
          %3211 = vmatmul.f32.gmra.mxu0 %v3191
          %v3212 = vpop.f32.mrf.mxu0
          %v3213 = vadd.f32 %v3193, %v3212
          %3214 = vdwg.mxu0
          %v3215 = vsub.f32 0.0, %v3213
          %v3216 = vmul.f32 %v3215, 1.442695
          %v3217 = vpow.pop %v3216
          %v3218 = vadd.f32 %v3217, 1.0
          %v3219 = vrcp.pop %v3218
          %v3220 = vmul.f32 %v3213, %v3219
          %v3222 = vperm.slane %v3189, 0
          %vm3224 = vcmask 64512
          %v3226 = vsel %vm3224, %v3220, 0
          %3228 = vmatpush.msra.mxu0 0.0
          %3229 = vmatpush.msra.mxu0 0.0
          %3230 = vmatpush.msra.mxu0 0.0
          %3231 = vmatpush.msra.mxu0 0.0
          %3232 = vmatpush.msra.mxu0 0.0
          %3233 = vmatpush.msra.mxu0 0.0
          %3234 = vmatpush.msra.mxu0 0.0
          %3235 = vmatpush.msra.mxu0 0.0
          %3236 = vmatpush.msra.mxu0 0.0
          %3237 = vmatpush.msra.mxu0 0.0
          %3238 = vmatpush.msra.mxu0 0.0
          %3239 = vmatpush.msra.mxu0 0.0
          %3240 = vmatpush.msra.mxu0 0.0
          %3241 = vmatpush.msra.mxu0 0.0
          %3242 = vmatpush.msra.mxu0 0.0
          %3243 = vmatpush.msra.mxu0 %v3188
          %3244 = vmatmul.f32.gmra.mxu0 %v3226
          %v3245 = vpop.f32.mrf.mxu0
          %v3246 = vadd.f32 %v3222, %v3245
          %3247 = vdwg.mxu0
          %v3248 = vld [vmem:[#allocation3] sm:$0xf]
          %3249 = vmatpush.msra.mxu0 %v3186
          %3250 = vmatpush.msra.mxu0 %v3185
          %3251 = vmatpush.msra.mxu0 %v3184
          %3252 = vmatpush.msra.mxu0 %v3183
          %3253 = vmatpush.msra.mxu0 %v3182
          %3254 = vmatpush.msra.mxu0 %v3181
          %3255 = vmatpush.msra.mxu0 %v3180
          %3256 = vmatpush.msra.mxu0 %v3179
          %3257 = vmatpush.msra.mxu0 %v3178
          %3258 = vmatpush.msra.mxu0 %v3177
          %3259 = vmatpush.msra.mxu0 %v3176
          %3260 = vmatpush.msra.mxu0 %v3175
          %3261 = vmatpush.msra.mxu0 %v3174
          %3262 = vmatpush.msra.mxu0 %v3173
          %3263 = vmatpush.msra.mxu0 %v3172
          %3264 = vmatpush.msra.mxu0 %v3171
          %3265 = vmatmul.f32.gmra.mxu0 %v3248
          %v3266 = vpop.f32.mrf.mxu0
          %v3267 = vadd.f32 %v3193, %v3266
          %3268 = vdwg.mxu0
          %v3269 = vsub.f32 0.0, %v3267
          %v3270 = vmul.f32 %v3269, 1.442695
          %v3271 = vpow.pop %v3270
          %v3272 = vadd.f32 %v3271, 1.0
          %v3273 = vrcp.pop %v3272
          %v3274 = vmul.f32 %v3267, %v3273
          %v3276 = vsel %vm3224, %v3274, 0
          %3278 = vmatpush.msra.mxu0 0.0
          %3279 = vmatpush.msra.mxu0 0.0
          %3280 = vmatpush.msra.mxu0 0.0
          %3281 = vmatpush.msra.mxu0 0.0
          %3282 = vmatpush.msra.mxu0 0.0
          %3283 = vmatpush.msra.mxu0 0.0
          %3284 = vmatpush.msra.mxu0 0.0
          %3285 = vmatpush.msra.mxu0 0.0
          %3286 = vmatpush.msra.mxu0 0.0
          %3287 = vmatpush.msra.mxu0 0.0
          %3288 = vmatpush.msra.mxu0 0.0
          %3289 = vmatpush.msra.mxu0 0.0
          %3290 = vmatpush.msra.mxu0 0.0
          %3291 = vmatpush.msra.mxu0 0.0
          %3292 = vmatpush.msra.mxu0 0.0
          %3293 = vmatpush.msra.mxu0 %v3188
          %3294 = vmatmul.f32.gmra.mxu0 %v3276
          %v3295 = vpop.f32.mrf.mxu0
          %v3296 = vadd.f32 %v3222, %v3295
          %3297 = vdwg.mxu0
          %v3298 = vadd.f32 %v3246, %v3296
          %v3299 = vsub.f32 0.0, %v3298
          %v3300 = vmul.f32 %v3299, 1.442695
          %v3301 = vpow.pop %v3300
          %v3302 = vadd.f32 %v3301, 1.0
          %v3303 = vrcp.pop %v3302
          %3304 = vst [vmem:[#allocation5] sm:$0xf] %v3303
        $region100: #{channel_attention_forward.1} parent=87 // pred_fallthru
          _
        // Predicated region
        $region101: #{channel_attention_forward.1} parent=87 // pred_check
          %p3305 = pneg %p140
        $region102: #{channel_attention_forward.1} parent=87 // pred_check_branch
          %3307 = sbr.rel (%p3305) target = $region104
        $region103: #{channel_attention_forward.1} parent=87 // pred_region
          %3309 = vsyncadd [#allocation6], 0
          %s3311 = sshll.u32 [#allocation5], 4
          %s3312 = int_to_ptr.vmem [resolvable:$true] %s3311
          %s3313 = sshll.u32 %s5, 4
          %s3314 = int_to_ptr.hbm [resolvable:$true] %s3313
          %3316 = dma.vmem_to_hbm [thread:$0]  %s3312, 64, %s3314, [#allocation6]
        $region104: #{channel_attention_forward.1} parent=87 // pred_fallthru
          _
        // Predicated region
        $region105: #{channel_attention_forward.1} parent=87 // pred_check
          %p3317 = pneg %p140
        $region106: #{channel_attention_forward.1} parent=87 // pred_check_branch
          %3319 = sbr.rel (%p3317) target = $region108
        $region107: #{channel_attention_forward.1} parent=87 // pred_region
          %3321 = dma.done [#allocation6], 64
        $region108: #{channel_attention_forward.1} parent=87 // pred_fallthru
          _
      $region88: #{channel_attention_forward.1} parent=5 // pred_fallthru
        _
      %p3322 = scmp.le.s32.totalorder 2, %s12
      // Predicated region
      $region109: #{channel_attention_forward.1} parent=5 // pred_check
        %p3323 = pneg %p3322
      $region110: #{channel_attention_forward.1} parent=5 // pred_check_branch
        %3325 = sbr.rel (%p3323) target = $region112
      $region111: #{channel_attention_forward.1} parent=5 // pred_region
        %s3326 = ssub.s32 %s12, 2
      $region112: #{channel_attention_forward.1} parent=5 // pred_fallthru
        _
    $region6: #{channel_attention_forward.1} parent=1 // loop_footer
      %s16 = sadd.s32 1, %s12
    $region7: #{channel_attention_forward.1} parent=1 // loop_footer_branch
      %11 = sbr.rel target = $region3
    $region8: #{channel_attention_forward.1} parent=1 // loop_exit
      _
    %3327 = vsyncpa [#allocation6], 1
    %s3328 = scalar_lea.sflag [#allocation6], 1
    %3329 = vsyncpa %s3328, 1

</llo_original>
